<compile_context>
chip_gen: v7x
topology: tpu7x:2x2x1
jax: 0.10.0
libtpu: 0.0.40
codegen_flags: <defaults>
</compile_context>

<pallas_src>
import jax
import jax.numpy as jnp
from jax.experimental import pallas as pl
from jax.experimental.pallas import tpu as pltpu

OUT_CH = 128
CONV1_KERNELS = (1, 2, 3, 4, 5)


# ----------------------------- kernel helpers -----------------------------
def _max_pool2(acc, lp):
    """MaxPool1d(kernel=2, stride=2) over rows of `acc` (Lout, C) -> (lp, C)."""
    lout = acc.shape[0]
    rows = jax.lax.broadcasted_iota(jnp.int32, (lp, lout), 0)
    cols = jax.lax.broadcasted_iota(jnp.int32, (lp, lout), 1)
    sel_even = (cols == 2 * rows).astype(jnp.float32)
    sel_odd = (cols == 2 * rows + 1).astype(jnp.float32)
    even = jnp.dot(sel_even, acc, preferred_element_type=jnp.float32)
    odd = jnp.dot(sel_odd, acc, preferred_element_type=jnp.float32)
    return jnp.maximum(even, odd)


def _conv_relu_pool(x, w, b, k):
    """Conv1d(valid, kernel=k) + ReLU + MaxPool1d(2, 2) on one batch element.

    x: (Lin, Cin) f32, w: (k*Cin, Cout) im2col-flattened, b: (1, Cout).
    Returns ((Lin - k + 1) // 2, Cout) f32.
    """
    lin = x.shape[0]
    lout = lin - k + 1
    if k == 1:
        lhs = x
    else:
        # im2col: one MXU push with contraction k*Cin instead of k tiny dots.
        lhs = jnp.concatenate([x[j:j + lout, :] for j in range(k)], axis=1)
    acc = jnp.dot(lhs, w, preferred_element_type=jnp.float32) + b
    acc = jnp.maximum(acc, 0.0)                          # ReLU
    return _max_pool2(acc, lout // 2)                    # MaxPool1d(2, 2)


def _fused_cnn_attn_kernel(x_ref, *refs):
    """CNN forward + attention-score head for one batch element.

    refs = 16 weight/bias refs
           (w1,b1,...,w5,b5, wc2,bc2, wc3,bc3, w_attn(1,128), b_attn(1,1))
           followed by y_ref (1, L_final, 128) and s_ref (1, L_final, 1).
    """
    y_ref, s_ref = refs[-2], refs[-1]
    w_refs = refs[:-2]
    x = x_ref[0]                                         # (Lin, Cin) f32

    # Five conv1 branches, each Conv1d + ReLU + MaxPool1d(2, 2).
    feats = []
    for i, k in enumerate(CONV1_KERNELS):
        w = w_refs[2 * i][...]
        b = w_refs[2 * i + 1][...]
        feats.append(_conv_relu_pool(x, w, b, k))
    # torch.cat(dim=2) in NCL == concat along the length axis (rows here).
    y = jnp.concatenate(feats, axis=0)                   # (44, 128)

    # conv2 and conv3 (kernel_size=3), each fused with ReLU + MaxPool1d(2, 2).
    y = _conv_relu_pool(y, w_refs[10][...], w_refs[11][...], 3)   # (21, 128)
    y = _conv_relu_pool(y, w_refs[12][...], w_refs[13][...], 3)   # (9, 128)

    # Attention score head: Linear(128 -> 1) + tanh, done on data already in
    # vregs.  Implemented as a lane reduction (avoids an N=1 MXU matmul).
    wa = w_refs[14][...]                                 # (1, 128)
    ba = w_refs[15][...]                                 # (1, 1)
    s = jnp.sum(y * wa, axis=1, keepdims=True) + ba      # (9, 1)
    s = jnp.tanh(s)

    y_ref[0] = y.astype(y_ref.dtype)                     # lane-dense (…,128)
    s_ref[0] = s.astype(s_ref.dtype)


# --------------------------------- wrapper ---------------------------------
def cnn_attn_forward(params, x):
    """x: (B, seq_len, embedding_dim) f32 -> (B, 128, 1), exactly as the
    PyTorch `nn.Sequential(CNN, Attention)` branch of `Model` computes it."""
    B, lin, cin = x.shape

    # Flatten conv weights to im2col layout (K*Cin, Cout), biases to (1, Cout).
    flat = []
    for k, (w, b) in zip(CONV1_KERNELS, params["conv1"]):
        flat.append(w.reshape(k * cin, OUT_CH))
        flat.append(b.reshape(1, OUT_CH))
    for name in ("conv2", "conv3"):
        w, b = params[name]
        flat.append(w.reshape(3 * OUT_CH, OUT_CH))
        flat.append(b.reshape(1, OUT_CH))
    wa, ba = params["attn"]
    flat.append(wa.reshape(1, OUT_CH))                   # Linear(128->1) weight
    flat.append(ba.reshape(1, 1))                        # Linear(128->1) bias

    # Static shape bookkeeping (matches the kernel's unrolled math).
    l_cat = sum((lin - k + 1) // 2 for k in CONV1_KERNELS)
    l2 = (l_cat - 3 + 1) // 2
    l3 = (l2 - 3 + 1) // 2

    def full_block(a):            # every weight/bias is a full 2-D block
        return pl.BlockSpec(a.shape, lambda i: (0, 0))

    y, s = pl.pallas_call(
        _fused_cnn_attn_kernel,
        out_shape=(jax.ShapeDtypeStruct((B, l3, OUT_CH), x.dtype),
                   jax.ShapeDtypeStruct((B, l3, 1), jnp.float32)),
        grid=(B,),
        in_specs=[pl.BlockSpec((1, lin, cin), lambda i: (i, 0, 0))]
                 + [full_block(a) for a in flat],
        out_specs=(pl.BlockSpec((1, l3, OUT_CH), lambda i: (i, 0, 0)),
                   pl.BlockSpec((1, l3, 1), lambda i: (i, 0, 0))),
        compiler_params=pltpu.CompilerParams(
            dimension_semantics=("parallel",)),
    )(x, *flat)

    # torch nn.Softmax() without dim: legacy default for a 3-D tensor is dim=0
    # (the batch axis).  It couples batch elements, so this tiny epilogue runs
    # outside the batch-parallel kernel.  r = bmm(x^T, alpha) -> (B, 128, 1).
    alpha = jax.nn.softmax(s, axis=0)                    # (B, L3, 1)
    r = jnp.einsum('blc,blo->bco', y, alpha)             # (B, 128, 1)
    return r


def init_params(key, embedding_dim, out_channels=OUT_CH):
    """Deterministic synthetic parameters matching the nn.Module shapes."""
    keys = jax.random.split(key, 16)
    idx = 0
    params = {"conv1": []}
    for k in CONV1_KERNELS:  # Conv1d(embedding_dim -> 128, kernel_size=k)
        w = jax.random.normal(keys[idx], (k, embedding_dim, out_channels),
                              jnp.float32) * 0.05
        b = jax.random.normal(keys[idx + 1], (out_channels,), jnp.float32) * 0.05
        params["conv1"].append((w, b))
        idx += 2
    for name in ("conv2", "conv3"):  # Conv1d(128 -> 128, kernel_size=3)
        w = jax.random.normal(keys[idx], (3, out_channels, out_channels),
                              jnp.float32) * 0.05
        b = jax.random.normal(keys[idx + 1], (out_channels,), jnp.float32) * 0.05
        params[name] = (w, b)
        idx += 2
    # Attention: Linear(128 -> 1), torch layout (out=1, in=128) and bias (1,).
    params["attn"] = (
        jax.random.normal(keys[14], (1, out_channels), jnp.float32) * 0.05,
        jax.random.normal(keys[15], (1,), jnp.float32) * 0.05,
    )
    return params


# ---------------- pure-JAX reference (for correctness check) ----------------
def _ref_conv_relu_pool(x, w, b):
    B, Lin, Cin = x.shape
    K, _, Cout = w.shape
    Lout = Lin - K + 1
    acc = jnp.zeros((B, Lout, Cout), jnp.float32)
    for k in range(K):
        acc = acc + jnp.einsum('blc,cd->bld', x[:, k:k + Lout, :], w[k])
    acc = jnp.maximum(acc + b, 0.0)
    Lp = Lout // 2
    return jnp.max(acc[:, :2 * Lp].reshape(B, Lp, 2, Cout), axis=2)


def _ref_cnn_attn(params, x):
    feats = [_ref_conv_relu_pool(x, w, b) for (w, b) in params["conv1"]]
    y = jnp.concatenate(feats, axis=1)
    y = _ref_conv_relu_pool(y, *params["conv2"])
    y = _ref_conv_relu_pool(y, *params["conv3"])          # (B, L3, 128)
    wa, ba = params["attn"]
    m = jnp.tanh(jnp.einsum('blc,oc->blo', y, wa) + ba)   # (B, L3, 1)
    alpha = jax.nn.softmax(m, axis=0)                     # legacy torch dim=0
    return jnp.einsum('blc,blo->bco', y, alpha)           # (B, 128, 1)


if __name__ == "__main__":
    B, SEQ, EMB = 2, 20, 32   # batch=2, max_seq_len=20, embedding_dim=32
    key = jax.random.PRNGKey(0)
    kp, kx = jax.random.split(key)
    params = init_params(kp, EMB)
    x = jax.random.normal(kx, (B, SEQ, EMB), jnp.float32)

    out = jax.block_until_ready(jax.jit(cnn_attn_forward)(params, x))

    # Lengths: cat(10+9+9+8+8)=44 -> conv2/pool -> 21 -> conv3/pool -> 9.
    assert out.shape == (B, 128, 1), out.shape
    ref = _ref_cnn_attn(params, x)
    assert jnp.allclose(out, ref, atol=1e-4, rtol=1e-4), \
        float(jnp.max(jnp.abs(out - ref)))
    print("KERNEL_OK")
</pallas_src>

<mosaic_0001>
module attributes {stable_mosaic.version = 11 : i64} {
  func.func @_fused_cnn_attn_kernel(%arg0: i32, %arg1: memref<1x20x32xf32, #tpu.memory_space<vmem>>, %arg2: memref<32x128xf32, #tpu.memory_space<vmem>>, %arg3: memref<1x128xf32, #tpu.memory_space<vmem>>, %arg4: memref<64x128xf32, #tpu.memory_space<vmem>>, %arg5: memref<1x128xf32, #tpu.memory_space<vmem>>, %arg6: memref<96x128xf32, #tpu.memory_space<vmem>>, %arg7: memref<1x128xf32, #tpu.memory_space<vmem>>, %arg8: memref<128x128xf32, #tpu.memory_space<vmem>>, %arg9: memref<1x128xf32, #tpu.memory_space<vmem>>, %arg10: memref<160x128xf32, #tpu.memory_space<vmem>>, %arg11: memref<1x128xf32, #tpu.memory_space<vmem>>, %arg12: memref<384x128xf32, #tpu.memory_space<vmem>>, %arg13: memref<1x128xf32, #tpu.memory_space<vmem>>, %arg14: memref<384x128xf32, #tpu.memory_space<vmem>>, %arg15: memref<1x128xf32, #tpu.memory_space<vmem>>, %arg16: memref<1x128xf32, #tpu.memory_space<vmem>>, %arg17: memref<1x1xf32, #tpu.memory_space<vmem>>, %arg18: memref<1x9x128xf32, #tpu.memory_space<vmem>>, %arg19: memref<1x9x1xf32, #tpu.memory_space<vmem>>) attributes {dimension_semantics = [#tpu.dimension_semantics<parallel>], iteration_bounds = array<i64: 2>, scalar_prefetch = 0 : i64, scratch_operands = 0 : i64, tpu.core_type = #tpu.core_type<tc>, window_params = [{transform_indices = @transform_0, window_bounds = array<i64: 1, 20, 32>}, {pipeline_mode = #tpu.pipeline_mode<synchronous>, transform_indices = @transform_1, window_bounds = array<i64: 32, 128>}, {pipeline_mode = #tpu.pipeline_mode<synchronous>, transform_indices = @transform_2, window_bounds = array<i64: 1, 128>}, {pipeline_mode = #tpu.pipeline_mode<synchronous>, transform_indices = @transform_3, window_bounds = array<i64: 64, 128>}, {pipeline_mode = #tpu.pipeline_mode<synchronous>, transform_indices = @transform_4, window_bounds = array<i64: 1, 128>}, {pipeline_mode = #tpu.pipeline_mode<synchronous>, transform_indices = @transform_5, window_bounds = array<i64: 96, 128>}, {pipeline_mode = #tpu.pipeline_mode<synchronous>, transform_indices = @transform_6, window_bounds = array<i64: 1, 128>}, {pipeline_mode = #tpu.pipeline_mode<synchronous>, transform_indices = @transform_7, window_bounds = array<i64: 128, 128>}, {pipeline_mode = #tpu.pipeline_mode<synchronous>, transform_indices = @transform_8, window_bounds = array<i64: 1, 128>}, {pipeline_mode = #tpu.pipeline_mode<synchronous>, transform_indices = @transform_9, window_bounds = array<i64: 160, 128>}, {pipeline_mode = #tpu.pipeline_mode<synchronous>, transform_indices = @transform_10, window_bounds = array<i64: 1, 128>}, {pipeline_mode = #tpu.pipeline_mode<synchronous>, transform_indices = @transform_11, window_bounds = array<i64: 384, 128>}, {pipeline_mode = #tpu.pipeline_mode<synchronous>, transform_indices = @transform_12, window_bounds = array<i64: 1, 128>}, {pipeline_mode = #tpu.pipeline_mode<synchronous>, transform_indices = @transform_13, window_bounds = array<i64: 384, 128>}, {pipeline_mode = #tpu.pipeline_mode<synchronous>, transform_indices = @transform_14, window_bounds = array<i64: 1, 128>}, {pipeline_mode = #tpu.pipeline_mode<synchronous>, transform_indices = @transform_15, window_bounds = array<i64: 1, 128>}, {pipeline_mode = #tpu.pipeline_mode<synchronous>, transform_indices = @transform_16, window_bounds = array<i64: 1, 1>}, {transform_indices = @transform_17, window_bounds = array<i64: 1, 9, 128>}, {transform_indices = @transform_18, window_bounds = array<i64: 1, 9, 1>}]} {
    %c0 = arith.constant 0 : index
    %c0_0 = arith.constant 0 : index
    %c0_1 = arith.constant 0 : index
    %0 = vector.load %arg1[%c0, %c0_0, %c0_1] : memref<1x20x32xf32, #tpu.memory_space<vmem>>, vector<1x20x32xf32>
    %1 = vector.shape_cast %0 : vector<1x20x32xf32> to vector<20x32xf32>
    %c0_2 = arith.constant 0 : index
    %c0_3 = arith.constant 0 : index
    %2 = vector.load %arg2[%c0_2, %c0_3] : memref<32x128xf32, #tpu.memory_space<vmem>>, vector<32x128xf32>
    %c0_4 = arith.constant 0 : index
    %c0_5 = arith.constant 0 : index
    %3 = vector.load %arg3[%c0_4, %c0_5] : memref<1x128xf32, #tpu.memory_space<vmem>>, vector<1x128xf32>
    %cst = arith.constant dense<0.000000e+00> : vector<20x128xf32>
    %4 = tpu.matmul %1, %2, %cst {dimension_numbers = #tpu.dot_dimension_numbers<[1], [0], [0], [1], [0, 0, 1, 1], [], []>} : vector<20x32xf32>, vector<32x128xf32>, vector<20x128xf32> -> vector<20x128xf32>
    %5 = vector.broadcast %3 : vector<1x128xf32> to vector<20x128xf32>
    %6 = arith.addf %4, %5 : vector<20x128xf32>
    %cst_6 = arith.constant 0.000000e+00 : f32
    %7 = vector.broadcast %cst_6 : f32 to vector<20x128xf32>
    %8 = arith.maximumf %6, %7 : vector<20x128xf32>
    %9 = tpu.iota {dimensions = array<i32: 0>} : vector<10x20xi32>
    %10 = tpu.iota {dimensions = array<i32: 1>} : vector<10x20xi32>
    %c2_i32 = arith.constant 2 : i32
    %11 = vector.broadcast %c2_i32 : i32 to vector<10x20xi32>
    %12 = arith.muli %11, %9 : vector<10x20xi32>
    %13 = arith.cmpi eq, %10, %12 : vector<10x20xi32>
    %14 = arith.extui %13 : vector<10x20xi1> to vector<10x20xi32>
    %15 = arith.sitofp %14 : vector<10x20xi32> to vector<10x20xf32>
    %c2_i32_7 = arith.constant 2 : i32
    %16 = vector.broadcast %c2_i32_7 : i32 to vector<10x20xi32>
    %17 = arith.muli %16, %9 : vector<10x20xi32>
    %c1_i32 = arith.constant 1 : i32
    %18 = vector.broadcast %c1_i32 : i32 to vector<10x20xi32>
    %19 = arith.addi %17, %18 : vector<10x20xi32>
    %20 = arith.cmpi eq, %10, %19 : vector<10x20xi32>
    %21 = arith.extui %20 : vector<10x20xi1> to vector<10x20xi32>
    %22 = arith.sitofp %21 : vector<10x20xi32> to vector<10x20xf32>
    %cst_8 = arith.constant dense<0.000000e+00> : vector<10x128xf32>
    %23 = tpu.matmul %15, %8, %cst_8 {dimension_numbers = #tpu.dot_dimension_numbers<[1], [0], [0], [1], [0, 0, 1, 1], [], []>} : vector<10x20xf32>, vector<20x128xf32>, vector<10x128xf32> -> vector<10x128xf32>
    %cst_9 = arith.constant dense<0.000000e+00> : vector<10x128xf32>
    %24 = tpu.matmul %22, %8, %cst_9 {dimension_numbers = #tpu.dot_dimension_numbers<[1], [0], [0], [1], [0, 0, 1, 1], [], []>} : vector<10x20xf32>, vector<20x128xf32>, vector<10x128xf32> -> vector<10x128xf32>
    %25 = arith.maximumf %23, %24 : vector<10x128xf32>
    %c0_10 = arith.constant 0 : index
    %c0_11 = arith.constant 0 : index
    %26 = vector.load %arg4[%c0_10, %c0_11] : memref<64x128xf32, #tpu.memory_space<vmem>>, vector<64x128xf32>
    %c0_12 = arith.constant 0 : index
    %c0_13 = arith.constant 0 : index
    %27 = vector.load %arg5[%c0_12, %c0_13] : memref<1x128xf32, #tpu.memory_space<vmem>>, vector<1x128xf32>
    %28 = vector.extract_strided_slice %1 {offsets = [0, 0], sizes = [19, 32], strides = [1, 1]} : vector<20x32xf32> to vector<19x32xf32>
    %29 = vector.extract_strided_slice %1 {offsets = [1, 0], sizes = [19, 32], strides = [1, 1]} : vector<20x32xf32> to vector<19x32xf32>
    %30 = tpu.concatenate %28, %29 in 1 : vector<19x32xf32>, vector<19x32xf32> -> vector<19x64xf32>
    %cst_14 = arith.constant dense<0.000000e+00> : vector<19x128xf32>
    %31 = tpu.matmul %30, %26, %cst_14 {dimension_numbers = #tpu.dot_dimension_numbers<[1], [0], [0], [1], [0, 0, 1, 1], [], []>} : vector<19x64xf32>, vector<64x128xf32>, vector<19x128xf32> -> vector<19x128xf32>
    %32 = vector.broadcast %27 : vector<1x128xf32> to vector<19x128xf32>
    %33 = arith.addf %31, %32 : vector<19x128xf32>
    %cst_15 = arith.constant 0.000000e+00 : f32
    %34 = vector.broadcast %cst_15 : f32 to vector<19x128xf32>
    %35 = arith.maximumf %33, %34 : vector<19x128xf32>
    %36 = tpu.iota {dimensions = array<i32: 0>} : vector<9x19xi32>
    %37 = tpu.iota {dimensions = array<i32: 1>} : vector<9x19xi32>
    %c2_i32_16 = arith.constant 2 : i32
    %38 = vector.broadcast %c2_i32_16 : i32 to vector<9x19xi32>
    %39 = arith.muli %38, %36 : vector<9x19xi32>
    %40 = arith.cmpi eq, %37, %39 : vector<9x19xi32>
    %41 = arith.extui %40 : vector<9x19xi1> to vector<9x19xi32>
    %42 = arith.sitofp %41 : vector<9x19xi32> to vector<9x19xf32>
    %c2_i32_17 = arith.constant 2 : i32
    %43 = vector.broadcast %c2_i32_17 : i32 to vector<9x19xi32>
    %44 = arith.muli %43, %36 : vector<9x19xi32>
    %c1_i32_18 = arith.constant 1 : i32
    %45 = vector.broadcast %c1_i32_18 : i32 to vector<9x19xi32>
    %46 = arith.addi %44, %45 : vector<9x19xi32>
    %47 = arith.cmpi eq, %37, %46 : vector<9x19xi32>
    %48 = arith.extui %47 : vector<9x19xi1> to vector<9x19xi32>
    %49 = arith.sitofp %48 : vector<9x19xi32> to vector<9x19xf32>
    %cst_19 = arith.constant dense<0.000000e+00> : vector<9x128xf32>
    %50 = tpu.matmul %42, %35, %cst_19 {dimension_numbers = #tpu.dot_dimension_numbers<[1], [0], [0], [1], [0, 0, 1, 1], [], []>} : vector<9x19xf32>, vector<19x128xf32>, vector<9x128xf32> -> vector<9x128xf32>
    %cst_20 = arith.constant dense<0.000000e+00> : vector<9x128xf32>
    %51 = tpu.matmul %49, %35, %cst_20 {dimension_numbers = #tpu.dot_dimension_numbers<[1], [0], [0], [1], [0, 0, 1, 1], [], []>} : vector<9x19xf32>, vector<19x128xf32>, vector<9x128xf32> -> vector<9x128xf32>
    %52 = arith.maximumf %50, %51 : vector<9x128xf32>
    %c0_21 = arith.constant 0 : index
    %c0_22 = arith.constant 0 : index
    %53 = vector.load %arg6[%c0_21, %c0_22] : memref<96x128xf32, #tpu.memory_space<vmem>>, vector<96x128xf32>
    %c0_23 = arith.constant 0 : index
    %c0_24 = arith.constant 0 : index
    %54 = vector.load %arg7[%c0_23, %c0_24] : memref<1x128xf32, #tpu.memory_space<vmem>>, vector<1x128xf32>
    %55 = vector.extract_strided_slice %1 {offsets = [0, 0], sizes = [18, 32], strides = [1, 1]} : vector<20x32xf32> to vector<18x32xf32>
    %56 = vector.extract_strided_slice %1 {offsets = [1, 0], sizes = [18, 32], strides = [1, 1]} : vector<20x32xf32> to vector<18x32xf32>
    %57 = vector.extract_strided_slice %1 {offsets = [2, 0], sizes = [18, 32], strides = [1, 1]} : vector<20x32xf32> to vector<18x32xf32>
    %58 = tpu.concatenate %55, %56, %57 in 1 : vector<18x32xf32>, vector<18x32xf32>, vector<18x32xf32> -> vector<18x96xf32>
    %cst_25 = arith.constant dense<0.000000e+00> : vector<18x128xf32>
    %59 = tpu.matmul %58, %53, %cst_25 {dimension_numbers = #tpu.dot_dimension_numbers<[1], [0], [0], [1], [0, 0, 1, 1], [], []>} : vector<18x96xf32>, vector<96x128xf32>, vector<18x128xf32> -> vector<18x128xf32>
    %60 = vector.broadcast %54 : vector<1x128xf32> to vector<18x128xf32>
    %61 = arith.addf %59, %60 : vector<18x128xf32>
    %cst_26 = arith.constant 0.000000e+00 : f32
    %62 = vector.broadcast %cst_26 : f32 to vector<18x128xf32>
    %63 = arith.maximumf %61, %62 : vector<18x128xf32>
    %64 = tpu.iota {dimensions = array<i32: 0>} : vector<9x18xi32>
    %65 = tpu.iota {dimensions = array<i32: 1>} : vector<9x18xi32>
    %c2_i32_27 = arith.constant 2 : i32
    %66 = vector.broadcast %c2_i32_27 : i32 to vector<9x18xi32>
    %67 = arith.muli %66, %64 : vector<9x18xi32>
    %68 = arith.cmpi eq, %65, %67 : vector<9x18xi32>
    %69 = arith.extui %68 : vector<9x18xi1> to vector<9x18xi32>
    %70 = arith.sitofp %69 : vector<9x18xi32> to vector<9x18xf32>
    %c2_i32_28 = arith.constant 2 : i32
    %71 = vector.broadcast %c2_i32_28 : i32 to vector<9x18xi32>
    %72 = arith.muli %71, %64 : vector<9x18xi32>
    %c1_i32_29 = arith.constant 1 : i32
    %73 = vector.broadcast %c1_i32_29 : i32 to vector<9x18xi32>
    %74 = arith.addi %72, %73 : vector<9x18xi32>
    %75 = arith.cmpi eq, %65, %74 : vector<9x18xi32>
    %76 = arith.extui %75 : vector<9x18xi1> to vector<9x18xi32>
    %77 = arith.sitofp %76 : vector<9x18xi32> to vector<9x18xf32>
    %cst_30 = arith.constant dense<0.000000e+00> : vector<9x128xf32>
    %78 = tpu.matmul %70, %63, %cst_30 {dimension_numbers = #tpu.dot_dimension_numbers<[1], [0], [0], [1], [0, 0, 1, 1], [], []>} : vector<9x18xf32>, vector<18x128xf32>, vector<9x128xf32> -> vector<9x128xf32>
    %cst_31 = arith.constant dense<0.000000e+00> : vector<9x128xf32>
    %79 = tpu.matmul %77, %63, %cst_31 {dimension_numbers = #tpu.dot_dimension_numbers<[1], [0], [0], [1], [0, 0, 1, 1], [], []>} : vector<9x18xf32>, vector<18x128xf32>, vector<9x128xf32> -> vector<9x128xf32>
    %80 = arith.maximumf %78, %79 : vector<9x128xf32>
    %c0_32 = arith.constant 0 : index
    %c0_33 = arith.constant 0 : index
    %81 = vector.load %arg8[%c0_32, %c0_33] : memref<128x128xf32, #tpu.memory_space<vmem>>, vector<128x128xf32>
    %c0_34 = arith.constant 0 : index
    %c0_35 = arith.constant 0 : index
    %82 = vector.load %arg9[%c0_34, %c0_35] : memref<1x128xf32, #tpu.memory_space<vmem>>, vector<1x128xf32>
    %83 = vector.extract_strided_slice %1 {offsets = [0, 0], sizes = [17, 32], strides = [1, 1]} : vector<20x32xf32> to vector<17x32xf32>
    %84 = vector.extract_strided_slice %1 {offsets = [1, 0], sizes = [17, 32], strides = [1, 1]} : vector<20x32xf32> to vector<17x32xf32>
    %85 = vector.extract_strided_slice %1 {offsets = [2, 0], sizes = [17, 32], strides = [1, 1]} : vector<20x32xf32> to vector<17x32xf32>
    %86 = vector.extract_strided_slice %1 {offsets = [3, 0], sizes = [17, 32], strides = [1, 1]} : vector<20x32xf32> to vector<17x32xf32>
    %87 = tpu.concatenate %83, %84, %85, %86 in 1 : vector<17x32xf32>, vector<17x32xf32>, vector<17x32xf32>, vector<17x32xf32> -> vector<17x128xf32>
    %cst_36 = arith.constant dense<0.000000e+00> : vector<17x128xf32>
    %88 = tpu.matmul %87, %81, %cst_36 {dimension_numbers = #tpu.dot_dimension_numbers<[1], [0], [0], [1], [0, 0, 1, 1], [], []>} : vector<17x128xf32>, vector<128x128xf32>, vector<17x128xf32> -> vector<17x128xf32>
    %89 = vector.broadcast %82 : vector<1x128xf32> to vector<17x128xf32>
    %90 = arith.addf %88, %89 : vector<17x128xf32>
    %cst_37 = arith.constant 0.000000e+00 : f32
    %91 = vector.broadcast %cst_37 : f32 to vector<17x128xf32>
    %92 = arith.maximumf %90, %91 : vector<17x128xf32>
    %93 = tpu.iota {dimensions = array<i32: 0>} : vector<8x17xi32>
    %94 = tpu.iota {dimensions = array<i32: 1>} : vector<8x17xi32>
    %c2_i32_38 = arith.constant 2 : i32
    %95 = vector.broadcast %c2_i32_38 : i32 to vector<8x17xi32>
    %96 = arith.muli %95, %93 : vector<8x17xi32>
    %97 = arith.cmpi eq, %94, %96 : vector<8x17xi32>
    %98 = arith.extui %97 : vector<8x17xi1> to vector<8x17xi32>
    %99 = arith.sitofp %98 : vector<8x17xi32> to vector<8x17xf32>
    %c2_i32_39 = arith.constant 2 : i32
    %100 = vector.broadcast %c2_i32_39 : i32 to vector<8x17xi32>
    %101 = arith.muli %100, %93 : vector<8x17xi32>
    %c1_i32_40 = arith.constant 1 : i32
    %102 = vector.broadcast %c1_i32_40 : i32 to vector<8x17xi32>
    %103 = arith.addi %101, %102 : vector<8x17xi32>
    %104 = arith.cmpi eq, %94, %103 : vector<8x17xi32>
    %105 = arith.extui %104 : vector<8x17xi1> to vector<8x17xi32>
    %106 = arith.sitofp %105 : vector<8x17xi32> to vector<8x17xf32>
    %cst_41 = arith.constant dense<0.000000e+00> : vector<8x128xf32>
    %107 = tpu.matmul %99, %92, %cst_41 {dimension_numbers = #tpu.dot_dimension_numbers<[1], [0], [0], [1], [0, 0, 1, 1], [], []>} : vector<8x17xf32>, vector<17x128xf32>, vector<8x128xf32> -> vector<8x128xf32>
    %cst_42 = arith.constant dense<0.000000e+00> : vector<8x128xf32>
    %108 = tpu.matmul %106, %92, %cst_42 {dimension_numbers = #tpu.dot_dimension_numbers<[1], [0], [0], [1], [0, 0, 1, 1], [], []>} : vector<8x17xf32>, vector<17x128xf32>, vector<8x128xf32> -> vector<8x128xf32>
    %109 = arith.maximumf %107, %108 : vector<8x128xf32>
    %c0_43 = arith.constant 0 : index
    %c0_44 = arith.constant 0 : index
    %110 = vector.load %arg10[%c0_43, %c0_44] : memref<160x128xf32, #tpu.memory_space<vmem>>, vector<160x128xf32>
    %c0_45 = arith.constant 0 : index
    %c0_46 = arith.constant 0 : index
    %111 = vector.load %arg11[%c0_45, %c0_46] : memref<1x128xf32, #tpu.memory_space<vmem>>, vector<1x128xf32>
    %112 = vector.extract_strided_slice %1 {offsets = [0, 0], sizes = [16, 32], strides = [1, 1]} : vector<20x32xf32> to vector<16x32xf32>
    %113 = vector.extract_strided_slice %1 {offsets = [1, 0], sizes = [16, 32], strides = [1, 1]} : vector<20x32xf32> to vector<16x32xf32>
    %114 = vector.extract_strided_slice %1 {offsets = [2, 0], sizes = [16, 32], strides = [1, 1]} : vector<20x32xf32> to vector<16x32xf32>
    %115 = vector.extract_strided_slice %1 {offsets = [3, 0], sizes = [16, 32], strides = [1, 1]} : vector<20x32xf32> to vector<16x32xf32>
    %116 = vector.extract_strided_slice %1 {offsets = [4, 0], sizes = [16, 32], strides = [1, 1]} : vector<20x32xf32> to vector<16x32xf32>
    %117 = tpu.concatenate %112, %113, %114, %115, %116 in 1 : vector<16x32xf32>, vector<16x32xf32>, vector<16x32xf32>, vector<16x32xf32>, vector<16x32xf32> -> vector<16x160xf32>
    %cst_47 = arith.constant dense<0.000000e+00> : vector<16x128xf32>
    %118 = tpu.matmul %117, %110, %cst_47 {dimension_numbers = #tpu.dot_dimension_numbers<[1], [0], [0], [1], [0, 0, 1, 1], [], []>} : vector<16x160xf32>, vector<160x128xf32>, vector<16x128xf32> -> vector<16x128xf32>
    %119 = vector.broadcast %111 : vector<1x128xf32> to vector<16x128xf32>
    %120 = arith.addf %118, %119 : vector<16x128xf32>
    %cst_48 = arith.constant 0.000000e+00 : f32
    %121 = vector.broadcast %cst_48 : f32 to vector<16x128xf32>
    %122 = arith.maximumf %120, %121 : vector<16x128xf32>
    %123 = tpu.iota {dimensions = array<i32: 0>} : vector<8x16xi32>
    %124 = tpu.iota {dimensions = array<i32: 1>} : vector<8x16xi32>
    %c2_i32_49 = arith.constant 2 : i32
    %125 = vector.broadcast %c2_i32_49 : i32 to vector<8x16xi32>
    %126 = arith.muli %125, %123 : vector<8x16xi32>
    %127 = arith.cmpi eq, %124, %126 : vector<8x16xi32>
    %128 = arith.extui %127 : vector<8x16xi1> to vector<8x16xi32>
    %129 = arith.sitofp %128 : vector<8x16xi32> to vector<8x16xf32>
    %c2_i32_50 = arith.constant 2 : i32
    %130 = vector.broadcast %c2_i32_50 : i32 to vector<8x16xi32>
    %131 = arith.muli %130, %123 : vector<8x16xi32>
    %c1_i32_51 = arith.constant 1 : i32
    %132 = vector.broadcast %c1_i32_51 : i32 to vector<8x16xi32>
    %133 = arith.addi %131, %132 : vector<8x16xi32>
    %134 = arith.cmpi eq, %124, %133 : vector<8x16xi32>
    %135 = arith.extui %134 : vector<8x16xi1> to vector<8x16xi32>
    %136 = arith.sitofp %135 : vector<8x16xi32> to vector<8x16xf32>
    %cst_52 = arith.constant dense<0.000000e+00> : vector<8x128xf32>
    %137 = tpu.matmul %129, %122, %cst_52 {dimension_numbers = #tpu.dot_dimension_numbers<[1], [0], [0], [1], [0, 0, 1, 1], [], []>} : vector<8x16xf32>, vector<16x128xf32>, vector<8x128xf32> -> vector<8x128xf32>
    %cst_53 = arith.constant dense<0.000000e+00> : vector<8x128xf32>
    %138 = tpu.matmul %136, %122, %cst_53 {dimension_numbers = #tpu.dot_dimension_numbers<[1], [0], [0], [1], [0, 0, 1, 1], [], []>} : vector<8x16xf32>, vector<16x128xf32>, vector<8x128xf32> -> vector<8x128xf32>
    %139 = arith.maximumf %137, %138 : vector<8x128xf32>
    %140 = tpu.concatenate %25, %52, %80, %109, %139 in 0 : vector<10x128xf32>, vector<9x128xf32>, vector<9x128xf32>, vector<8x128xf32>, vector<8x128xf32> -> vector<44x128xf32>
    %c0_54 = arith.constant 0 : index
    %c0_55 = arith.constant 0 : index
    %141 = vector.load %arg12[%c0_54, %c0_55] : memref<384x128xf32, #tpu.memory_space<vmem>>, vector<384x128xf32>
    %c0_56 = arith.constant 0 : index
    %c0_57 = arith.constant 0 : index
    %142 = vector.load %arg13[%c0_56, %c0_57] : memref<1x128xf32, #tpu.memory_space<vmem>>, vector<1x128xf32>
    %143 = vector.extract_strided_slice %140 {offsets = [0, 0], sizes = [42, 128], strides = [1, 1]} : vector<44x128xf32> to vector<42x128xf32>
    %144 = vector.extract_strided_slice %140 {offsets = [1, 0], sizes = [42, 128], strides = [1, 1]} : vector<44x128xf32> to vector<42x128xf32>
    %145 = vector.extract_strided_slice %140 {offsets = [2, 0], sizes = [42, 128], strides = [1, 1]} : vector<44x128xf32> to vector<42x128xf32>
    %146 = tpu.concatenate %143, %144, %145 in 1 : vector<42x128xf32>, vector<42x128xf32>, vector<42x128xf32> -> vector<42x384xf32>
    %cst_58 = arith.constant dense<0.000000e+00> : vector<42x128xf32>
    %147 = tpu.matmul %146, %141, %cst_58 {dimension_numbers = #tpu.dot_dimension_numbers<[1], [0], [0], [1], [0, 0, 1, 1], [], []>} : vector<42x384xf32>, vector<384x128xf32>, vector<42x128xf32> -> vector<42x128xf32>
    %148 = vector.broadcast %142 : vector<1x128xf32> to vector<42x128xf32>
    %149 = arith.addf %147, %148 : vector<42x128xf32>
    %cst_59 = arith.constant 0.000000e+00 : f32
    %150 = vector.broadcast %cst_59 : f32 to vector<42x128xf32>
    %151 = arith.maximumf %149, %150 : vector<42x128xf32>
    %152 = tpu.iota {dimensions = array<i32: 0>} : vector<21x42xi32>
    %153 = tpu.iota {dimensions = array<i32: 1>} : vector<21x42xi32>
    %c2_i32_60 = arith.constant 2 : i32
    %154 = vector.broadcast %c2_i32_60 : i32 to vector<21x42xi32>
    %155 = arith.muli %154, %152 : vector<21x42xi32>
    %156 = arith.cmpi eq, %153, %155 : vector<21x42xi32>
    %157 = arith.extui %156 : vector<21x42xi1> to vector<21x42xi32>
    %158 = arith.sitofp %157 : vector<21x42xi32> to vector<21x42xf32>
    %c2_i32_61 = arith.constant 2 : i32
    %159 = vector.broadcast %c2_i32_61 : i32 to vector<21x42xi32>
    %160 = arith.muli %159, %152 : vector<21x42xi32>
    %c1_i32_62 = arith.constant 1 : i32
    %161 = vector.broadcast %c1_i32_62 : i32 to vector<21x42xi32>
    %162 = arith.addi %160, %161 : vector<21x42xi32>
    %163 = arith.cmpi eq, %153, %162 : vector<21x42xi32>
    %164 = arith.extui %163 : vector<21x42xi1> to vector<21x42xi32>
    %165 = arith.sitofp %164 : vector<21x42xi32> to vector<21x42xf32>
    %cst_63 = arith.constant dense<0.000000e+00> : vector<21x128xf32>
    %166 = tpu.matmul %158, %151, %cst_63 {dimension_numbers = #tpu.dot_dimension_numbers<[1], [0], [0], [1], [0, 0, 1, 1], [], []>} : vector<21x42xf32>, vector<42x128xf32>, vector<21x128xf32> -> vector<21x128xf32>
    %cst_64 = arith.constant dense<0.000000e+00> : vector<21x128xf32>
    %167 = tpu.matmul %165, %151, %cst_64 {dimension_numbers = #tpu.dot_dimension_numbers<[1], [0], [0], [1], [0, 0, 1, 1], [], []>} : vector<21x42xf32>, vector<42x128xf32>, vector<21x128xf32> -> vector<21x128xf32>
    %168 = arith.maximumf %166, %167 : vector<21x128xf32>
    %c0_65 = arith.constant 0 : index
    %c0_66 = arith.constant 0 : index
    %169 = vector.load %arg14[%c0_65, %c0_66] : memref<384x128xf32, #tpu.memory_space<vmem>>, vector<384x128xf32>
    %c0_67 = arith.constant 0 : index
    %c0_68 = arith.constant 0 : index
    %170 = vector.load %arg15[%c0_67, %c0_68] : memref<1x128xf32, #tpu.memory_space<vmem>>, vector<1x128xf32>
    %171 = vector.extract_strided_slice %168 {offsets = [0, 0], sizes = [19, 128], strides = [1, 1]} : vector<21x128xf32> to vector<19x128xf32>
    %172 = vector.extract_strided_slice %168 {offsets = [1, 0], sizes = [19, 128], strides = [1, 1]} : vector<21x128xf32> to vector<19x128xf32>
    %173 = vector.extract_strided_slice %168 {offsets = [2, 0], sizes = [19, 128], strides = [1, 1]} : vector<21x128xf32> to vector<19x128xf32>
    %174 = tpu.concatenate %171, %172, %173 in 1 : vector<19x128xf32>, vector<19x128xf32>, vector<19x128xf32> -> vector<19x384xf32>
    %cst_69 = arith.constant dense<0.000000e+00> : vector<19x128xf32>
    %175 = tpu.matmul %174, %169, %cst_69 {dimension_numbers = #tpu.dot_dimension_numbers<[1], [0], [0], [1], [0, 0, 1, 1], [], []>} : vector<19x384xf32>, vector<384x128xf32>, vector<19x128xf32> -> vector<19x128xf32>
    %176 = vector.broadcast %170 : vector<1x128xf32> to vector<19x128xf32>
    %177 = arith.addf %175, %176 : vector<19x128xf32>
    %cst_70 = arith.constant 0.000000e+00 : f32
    %178 = vector.broadcast %cst_70 : f32 to vector<19x128xf32>
    %179 = arith.maximumf %177, %178 : vector<19x128xf32>
    %180 = tpu.iota {dimensions = array<i32: 0>} : vector<9x19xi32>
    %181 = tpu.iota {dimensions = array<i32: 1>} : vector<9x19xi32>
    %c2_i32_71 = arith.constant 2 : i32
    %182 = vector.broadcast %c2_i32_71 : i32 to vector<9x19xi32>
    %183 = arith.muli %182, %180 : vector<9x19xi32>
    %184 = arith.cmpi eq, %181, %183 : vector<9x19xi32>
    %185 = arith.extui %184 : vector<9x19xi1> to vector<9x19xi32>
    %186 = arith.sitofp %185 : vector<9x19xi32> to vector<9x19xf32>
    %c2_i32_72 = arith.constant 2 : i32
    %187 = vector.broadcast %c2_i32_72 : i32 to vector<9x19xi32>
    %188 = arith.muli %187, %180 : vector<9x19xi32>
    %c1_i32_73 = arith.constant 1 : i32
    %189 = vector.broadcast %c1_i32_73 : i32 to vector<9x19xi32>
    %190 = arith.addi %188, %189 : vector<9x19xi32>
    %191 = arith.cmpi eq, %181, %190 : vector<9x19xi32>
    %192 = arith.extui %191 : vector<9x19xi1> to vector<9x19xi32>
    %193 = arith.sitofp %192 : vector<9x19xi32> to vector<9x19xf32>
    %cst_74 = arith.constant dense<0.000000e+00> : vector<9x128xf32>
    %194 = tpu.matmul %186, %179, %cst_74 {dimension_numbers = #tpu.dot_dimension_numbers<[1], [0], [0], [1], [0, 0, 1, 1], [], []>} : vector<9x19xf32>, vector<19x128xf32>, vector<9x128xf32> -> vector<9x128xf32>
    %cst_75 = arith.constant dense<0.000000e+00> : vector<9x128xf32>
    %195 = tpu.matmul %193, %179, %cst_75 {dimension_numbers = #tpu.dot_dimension_numbers<[1], [0], [0], [1], [0, 0, 1, 1], [], []>} : vector<9x19xf32>, vector<19x128xf32>, vector<9x128xf32> -> vector<9x128xf32>
    %196 = arith.maximumf %194, %195 : vector<9x128xf32>
    %c0_76 = arith.constant 0 : index
    %c0_77 = arith.constant 0 : index
    %197 = vector.load %arg16[%c0_76, %c0_77] : memref<1x128xf32, #tpu.memory_space<vmem>>, vector<1x128xf32>
    %c0_78 = arith.constant 0 : index
    %c0_79 = arith.constant 0 : index
    %198 = vector.load %arg17[%c0_78, %c0_79] : memref<1x1xf32, #tpu.memory_space<vmem>>, vector<1x1xf32>
    %199 = vector.broadcast %197 : vector<1x128xf32> to vector<9x128xf32>
    %200 = arith.mulf %196, %199 : vector<9x128xf32>
    %cst_80 = arith.constant dense<0.000000e+00> : vector<9xf32>
    %201 = vector.multi_reduction <add>, %200, %cst_80 [1] : vector<9x128xf32> to vector<9xf32>
    %202 = vector.shape_cast %201 : vector<9xf32> to vector<9x1xf32>
    %203 = vector.broadcast %198 : vector<1x1xf32> to vector<9x1xf32>
    %204 = arith.addf %202, %203 : vector<9x1xf32>
    %205 = math.tanh %204 : vector<9x1xf32>
    %c0_81 = arith.constant 0 : index
    %c0_82 = arith.constant 0 : index
    %c0_83 = arith.constant 0 : index
    %206 = vector.load %arg18[%c0_81, %c0_82, %c0_83] : memref<1x9x128xf32, #tpu.memory_space<vmem>>, vector<1x9x128xf32>
    %207 = vector.shape_cast %206 : vector<1x9x128xf32> to vector<9x128xf32>
    %208 = vector.shape_cast %196 : vector<9x128xf32> to vector<1x9x128xf32>
    tpu.vector_store %arg18[%c0_81, %c0_82, %c0_83], %208 {strides = array<i32>} : memref<1x9x128xf32, #tpu.memory_space<vmem>>, vector<1x9x128xf32>,
    %c0_84 = arith.constant 0 : index
    %c0_85 = arith.constant 0 : index
    %c0_86 = arith.constant 0 : index
    %209 = vector.load %arg19[%c0_84, %c0_85, %c0_86] : memref<1x9x1xf32, #tpu.memory_space<vmem>>, vector<1x9x1xf32>
    %210 = vector.shape_cast %209 : vector<1x9x1xf32> to vector<9x1xf32>
    %211 = vector.shape_cast %205 : vector<9x1xf32> to vector<1x9x1xf32>
    tpu.vector_store %arg19[%c0_84, %c0_85, %c0_86], %211 {strides = array<i32>} : memref<1x9x1xf32, #tpu.memory_space<vmem>>, vector<1x9x1xf32>,
    return
  }
  func.func @transform_0(%arg0: i32) -> (i32, i32, i32) {
    %c0_i32 = arith.constant 0 : i32
    %c0_i32_0 = arith.constant 0 : i32
    %c0_i32_1 = arith.constant 0 : i32
    return %arg0, %c0_i32, %c0_i32_0 : i32, i32, i32
  }
  func.func @transform_1(%arg0: i32) -> (i32, i32) {
    %c0_i32 = arith.constant 0 : i32
    %c0_i32_0 = arith.constant 0 : i32
    %c0_i32_1 = arith.constant 0 : i32
    return %c0_i32, %c0_i32_0 : i32, i32
  }
  func.func @transform_2(%arg0: i32) -> (i32, i32) {
    %c0_i32 = arith.constant 0 : i32
    %c0_i32_0 = arith.constant 0 : i32
    %c0_i32_1 = arith.constant 0 : i32
    return %c0_i32, %c0_i32_0 : i32, i32
  }
  func.func @transform_3(%arg0: i32) -> (i32, i32) {
    %c0_i32 = arith.constant 0 : i32
    %c0_i32_0 = arith.constant 0 : i32
    %c0_i32_1 = arith.constant 0 : i32
    return %c0_i32, %c0_i32_0 : i32, i32
  }
  func.func @transform_4(%arg0: i32) -> (i32, i32) {
    %c0_i32 = arith.constant 0 : i32
    %c0_i32_0 = arith.constant 0 : i32
    %c0_i32_1 = arith.constant 0 : i32
    return %c0_i32, %c0_i32_0 : i32, i32
  }
  func.func @transform_5(%arg0: i32) -> (i32, i32) {
    %c0_i32 = arith.constant 0 : i32
    %c0_i32_0 = arith.constant 0 : i32
    %c0_i32_1 = arith.constant 0 : i32
    return %c0_i32, %c0_i32_0 : i32, i32
  }
  func.func @transform_6(%arg0: i32) -> (i32, i32) {
    %c0_i32 = arith.constant 0 : i32
    %c0_i32_0 = arith.constant 0 : i32
    %c0_i32_1 = arith.constant 0 : i32
    return %c0_i32, %c0_i32_0 : i32, i32
  }
  func.func @transform_7(%arg0: i32) -> (i32, i32) {
    %c0_i32 = arith.constant 0 : i32
    %c0_i32_0 = arith.constant 0 : i32
    %c0_i32_1 = arith.constant 0 : i32
    return %c0_i32, %c0_i32_0 : i32, i32
  }
  func.func @transform_8(%arg0: i32) -> (i32, i32) {
    %c0_i32 = arith.constant 0 : i32
    %c0_i32_0 = arith.constant 0 : i32
    %c0_i32_1 = arith.constant 0 : i32
    return %c0_i32, %c0_i32_0 : i32, i32
  }
  func.func @transform_9(%arg0: i32) -> (i32, i32) {
    %c0_i32 = arith.constant 0 : i32
    %c0_i32_0 = arith.constant 0 : i32
    %c0_i32_1 = arith.constant 0 : i32
    return %c0_i32, %c0_i32_0 : i32, i32
  }
  func.func @transform_10(%arg0: i32) -> (i32, i32) {
    %c0_i32 = arith.constant 0 : i32
    %c0_i32_0 = arith.constant 0 : i32
    %c0_i32_1 = arith.constant 0 : i32
    return %c0_i32, %c0_i32_0 : i32, i32
  }
  func.func @transform_11(%arg0: i32) -> (i32, i32) {
    %c0_i32 = arith.constant 0 : i32
    %c0_i32_0 = arith.constant 0 : i32
    %c0_i32_1 = arith.constant 0 : i32
    return %c0_i32, %c0_i32_0 : i32, i32
  }
  func.func @transform_12(%arg0: i32) -> (i32, i32) {
    %c0_i32 = arith.constant 0 : i32
    %c0_i32_0 = arith.constant 0 : i32
    %c0_i32_1 = arith.constant 0 : i32
    return %c0_i32, %c0_i32_0 : i32, i32
  }
  func.func @transform_13(%arg0: i32) -> (i32, i32) {
    %c0_i32 = arith.constant 0 : i32
    %c0_i32_0 = arith.constant 0 : i32
    %c0_i32_1 = arith.constant 0 : i32
    return %c0_i32, %c0_i32_0 : i32, i32
  }
  func.func @transform_14(%arg0: i32) -> (i32, i32) {
    %c0_i32 = arith.constant 0 : i32
    %c0_i32_0 = arith.constant 0 : i32
    %c0_i32_1 = arith.constant 0 : i32
    return %c0_i32, %c0_i32_0 : i32, i32
  }
  func.func @transform_15(%arg0: i32) -> (i32, i32) {
    %c0_i32 = arith.constant 0 : i32
    %c0_i32_0 = arith.constant 0 : i32
    %c0_i32_1 = arith.constant 0 : i32
    return %c0_i32, %c0_i32_0 : i32, i32
  }
  func.func @transform_16(%arg0: i32) -> (i32, i32) {
    %c0_i32 = arith.constant 0 : i32
    %c0_i32_0 = arith.constant 0 : i32
    %c0_i32_1 = arith.constant 0 : i32
    return %c0_i32, %c0_i32_0 : i32, i32
  }
  func.func @transform_17(%arg0: i32) -> (i32, i32, i32) {
    %c0_i32 = arith.constant 0 : i32
    %c0_i32_0 = arith.constant 0 : i32
    %c0_i32_1 = arith.constant 0 : i32
    return %arg0, %c0_i32, %c0_i32_0 : i32, i32, i32
  }
  func.func @transform_18(%arg0: i32) -> (i32, i32, i32) {
    %c0_i32 = arith.constant 0 : i32
    %c0_i32_0 = arith.constant 0 : i32
    %c0_i32_1 = arith.constant 0 : i32
    return %arg0, %c0_i32, %c0_i32_0 : i32, i32, i32
  }
}

</mosaic_0001>

<llo_original>
// kernel: cnn_attn_forward.1
$region0: #{cnn_attn_forward.1}
  #allocation0 [shape = 'u32[]', space=smem, size = 0x4, offset = 0x4, fixed_abs, tag = 'smem constant byte address 0x4 - core index']
  #allocation1 [shape = 'u32[144,128]{1,0:T(1,128)}', space=vmem, size = 0x12000, scoped, tag = 'internal scratch']
  #allocation2 [shape = 'f32[1,1]{1,0:T(1,128)S(1)}', space=vmem, size = 0x200, scoped, tag = 'scoped memory for cnn_attn_forward.1']
  %s0 = inlined_call_operand.vmem [shape: f32[2,20,32], index: 0, kind: input, shape index: {}]
  %s1 = inlined_call_operand.hbm [shape: f32[32,128], index: 1, kind: input, shape index: {}]
  %s2 = inlined_call_operand.vmem [shape: f32[1,128], index: 2, kind: input, shape index: {}]
  %s3 = inlined_call_operand.hbm [shape: f32[64,128], index: 3, kind: input, shape index: {}]
  %s4 = inlined_call_operand.hbm [shape: f32[1,128], index: 4, kind: input, shape index: {}]
  %s5 = inlined_call_operand.hbm [shape: f32[96,128], index: 5, kind: input, shape index: {}]
  %s6 = inlined_call_operand.hbm [shape: f32[1,128], index: 6, kind: input, shape index: {}]
  %s7 = inlined_call_operand.hbm [shape: f32[128,128], index: 7, kind: input, shape index: {}]
  %s8 = inlined_call_operand.hbm [shape: f32[1,128], index: 8, kind: input, shape index: {}]
  %s9 = inlined_call_operand.vmem [shape: f32[160,128], index: 9, kind: input, shape index: {}]
  %s10 = inlined_call_operand.hbm [shape: f32[1,128], index: 10, kind: input, shape index: {}]
  %s11 = inlined_call_operand.hbm [shape: f32[384,128], index: 11, kind: input, shape index: {}]
  %s12 = inlined_call_operand.hbm [shape: f32[1,128], index: 12, kind: input, shape index: {}]
  %s13 = inlined_call_operand.hbm [shape: f32[384,128], index: 13, kind: input, shape index: {}]
  %s14 = inlined_call_operand.hbm [shape: f32[1,128], index: 14, kind: input, shape index: {}]
  %s15 = inlined_call_operand.hbm [shape: f32[1,128], index: 15, kind: input, shape index: {}]
  %s16 = inlined_call_operand.<no memory space> [shape: f32[1,1], index: 16, kind: input, shape index: {}]
  %s17 = inlined_call_operand.vmem [shape: f32[2,9,128], index: 17, kind: output, shape index: {0}]
  %s18 = inlined_call_operand.vmem [shape: f32[2,9,1], index: 18, kind: output, shape index: {1}]
  %19 = xla_tuple %s17, %s18
  %s20 = sld [smem:[#allocation0]]
  $region161: #{cnn_attn_forward.1} parent=0
    _
  %s22 = ssub.s32 1, %s20
  %s23 = scalar_select 0, %s22, %s20
  %v24 = vstv %s16
  %25 = vst [vmem:[#allocation2] sm:$0x1] %v24
  $region1: #{cnn_attn_forward.1} parent=0
    #allocation3 [shape = 'u8[16384]{0}', space=vmem, size = 0x4000, scoped, tag = 'input window, operand 1, single buffered']
    #allocation4 [shape = 's32[2]{0}', space=sflag, size = 0x8, scoped, tag = 'scoped memory for cnn_attn_forward.1']
    #allocation5 [shape = 'u8[32768]{0}', space=vmem, size = 0x8000, scoped, tag = 'input window, operand 3, single buffered']
    #allocation6 [shape = 's32[1]{0}', space=sflag, size = 0x4, scoped, tag = 'scoped memory for cnn_attn_forward.1']
    #allocation7 [shape = 'u8[512]{0}', space=vmem, size = 0x400, scoped, tag = 'input window, operand 4, single buffered']
    #allocation8 [shape = 'u8[49152]{0}', space=vmem, size = 0xc000, scoped, tag = 'input window, operand 5, single buffered']
    #allocation9 [shape = 's32[1]{0}', space=sflag, size = 0x4, scoped, tag = 'scoped memory for cnn_attn_forward.1']
    #allocation10 [shape = 'u8[512]{0}', space=vmem, size = 0x400, scoped, tag = 'input window, operand 6, single buffered']
    #allocation11 [shape = 'u8[65536]{0}', space=vmem, size = 0x10000, scoped, tag = 'input window, operand 7, single buffered']
    #allocation12 [shape = 's32[1]{0}', space=sflag, size = 0x4, scoped, tag = 'scoped memory for cnn_attn_forward.1']
    #allocation13 [shape = 'u8[512]{0}', space=vmem, size = 0x400, scoped, tag = 'input window, operand 8, single buffered']
    #allocation14 [shape = 'u8[512]{0}', space=vmem, size = 0x400, scoped, tag = 'input window, operand 10, single buffered']
    #allocation15 [shape = 's32[1]{0}', space=sflag, size = 0x4, scoped, tag = 'scoped memory for cnn_attn_forward.1']
    #allocation16 [shape = 'u8[196608]{0}', space=vmem, size = 0x30000, scoped, tag = 'input window, operand 11, single buffered']
    #allocation17 [shape = 'u8[512]{0}', space=vmem, size = 0x400, scoped, tag = 'input window, operand 12, single buffered']
    #allocation18 [shape = 's32[1]{0}', space=sflag, size = 0x4, scoped, tag = 'scoped memory for cnn_attn_forward.1']
    #allocation19 [shape = 'u8[196608]{0}', space=vmem, size = 0x30000, scoped, tag = 'input window, operand 13, single buffered']
    #allocation20 [shape = 'u8[512]{0}', space=vmem, size = 0x400, scoped, tag = 'input window, operand 14, single buffered']
    #allocation21 [shape = 's32[1]{0}', space=sflag, size = 0x4, scoped, tag = 'scoped memory for cnn_attn_forward.1']
    #allocation22 [shape = 'u8[512]{0}', space=vmem, size = 0x400, scoped, tag = 'input window, operand 15, single buffered']
    %26 = vsyncpa [#allocation4], 0
    %27 = vsyncpa [#allocation6], 0
    %28 = vsyncpa [#allocation9], 0
    %29 = vsyncpa [#allocation12], 0
    %30 = vsyncpa [#allocation15], 0
    %31 = vsyncpa [#allocation18], 0
    %32 = vsyncpa [#allocation21], 0
    loop: start=0, step=1, limit=4
    $region2: #{cnn_attn_forward.1} parent=1 // loop_pre_header
      _
    $region3: #{cnn_attn_forward.1} parent=1 // loop_header
      %s34 = sphi 0, %s38
      %p35 = scmp.ge.s32.totalorder %s34, 4
      %s44 = sphi 0, %s46
      %s47 = sphi 0, %s44
      %s48 = sphi 0, %s47
      %s64 = sphi 0, %s48
      %s68 = sphi 0, %s68
      %s70 = sphi 0, %s68
      %s71 = sphi 0, %s70
      %s85 = sphi 0, %s71
      %s89 = sphi 0, %s89
      %s91 = sphi 0, %s89
      %s92 = sphi 0, %s91
      %s106 = sphi 0, %s92
      %s110 = sphi 0, %s110
      %s112 = sphi 0, %s110
      %s113 = sphi 0, %s112
      %s127 = sphi 0, %s113
      %s131 = sphi 0, %s131
      %s133 = sphi 0, %s131
      %s134 = sphi 0, %s133
      %s148 = sphi 0, %s134
      %s152 = sphi 0, %s152
      %s154 = sphi 0, %s152
      %s155 = sphi 0, %s154
      %s169 = sphi 0, %s155
      %s173 = sphi 0, %s173
      %s175 = sphi 0, %s173
      %s176 = sphi 0, %s175
      %s190 = sphi 0, %s176
      %s194 = sphi 0, %s194
      %s196 = sphi 0, %s194
      %s197 = sphi 0, %s196
      %s211 = sphi 0, %s197
      %s215 = sphi 0, %s215
      %s217 = sphi 0, %s215
      %s218 = sphi 0, %s217
      %s232 = sphi 0, %s218
      %s236 = sphi 0, %s236
      %s238 = sphi 0, %s236
      %s239 = sphi 0, %s238
      %s253 = sphi 0, %s239
      %s257 = sphi 0, %s257
      %s259 = sphi 0, %s257
      %s260 = sphi 0, %s259
      %s274 = sphi 0, %s260
      %s278 = sphi 0, %s278
      %s280 = sphi 0, %s278
      %s281 = sphi 0, %s280
      %s295 = sphi 0, %s281
      %s299 = sphi 0, %s299
      %s301 = sphi 0, %s299
      %s302 = sphi 0, %s301
      %s316 = sphi 0, %s302
      %s320 = sphi 0, %s320
      %s322 = sphi 0, %s320
      %s323 = sphi 0, %s322
      %s337 = sphi 0, %s323
      %s341 = sphi 0, %s341
      %s343 = sphi 0, %s341
      %s344 = sphi 0, %s343
      %s358 = sphi 0, %s344
      %s362 = sphi 0, %s362
      %s364 = sphi 0, %s362
      %s365 = sphi 0, %s364
      %s379 = sphi 0, %s365
      %s383 = sphi 0, %s383
      %s385 = sphi 0, %s383
      %s386 = sphi 0, %s385
      %s400 = sphi 0, %s386
      %s406 = sphi 0, %s408
      %s409 = sphi 0, %s406
      %s410 = sphi 0, %s409
      %s426 = sphi 0, %s410
      %s432 = sphi 0, %s434
      %s435 = sphi 0, %s432
      %s436 = sphi 0, %s435
      %s452 = sphi 0, %s436
    $region4: #{cnn_attn_forward.1} parent=1 // loop_header_branch
      %37 = sbr.rel (%p35) target = $region8
    $region5: #{cnn_attn_forward.1} parent=1 // loop_body
      %s39 = ssub.s32 %s34, 1
      %s40 = ssub.s32 %s34, 2
      %s41 = sadd.s32 %s34, 1
      %s42 = ssub.s32 %s34, %s41
      %p43 = scmp.eq.s32.totalorder %s42, 0
      %s45 = sadd.s32 %s44, 1
      %s46 = scalar_select %p43, %s44, %s45
      %p49 = pneg %p43
      %p50 = scmp.eq.s32.totalorder %s34, 1
      %p51 = por %p49, %p50
      %p52 = scmp.ne.s32.totalorder %s44, %s47
      %p53 = scmp.eq.s32.totalorder %s34, 0
      %p54 = por %p52, %p53
      %p55 = scmp.ne.s32.totalorder %s44, %s47
      %p56 = scmp.eq.s32.totalorder %s39, 1
      %p57 = por %p55, %p56
      %p58 = scmp.ne.s32.totalorder %s47, %s48
      %p59 = scmp.eq.s32.totalorder %s39, 0
      %p60 = por %p58, %p59
      %p61 = scmp.ne.s32.totalorder %s47, %s48
      %p62 = scmp.eq.s32.totalorder %s40, 1
      %p63 = por %p61, %p62
      %p65 = scmp.ne.s32.totalorder %s48, %s64
      %p66 = scmp.eq.s32.totalorder %s40, 0
      %p67 = por %p65, %p66
      %s69 = sadd.s32 %s68, 1
      %p72 = scmp.eq.s32.totalorder %s34, 1
      %p73 = scmp.ne.s32.totalorder %s68, %s70
      %p74 = scmp.eq.s32.totalorder %s34, 0
      %p75 = por %p73, %p74
      %p76 = scmp.ne.s32.totalorder %s68, %s70
      %p77 = scmp.eq.s32.totalorder %s39, 1
      %p78 = por %p76, %p77
      %p79 = scmp.ne.s32.totalorder %s70, %s71
      %p80 = scmp.eq.s32.totalorder %s39, 0
      %p81 = por %p79, %p80
      %p82 = scmp.ne.s32.totalorder %s70, %s71
      %p83 = scmp.eq.s32.totalorder %s40, 1
      %p84 = por %p82, %p83
      %p86 = scmp.ne.s32.totalorder %s71, %s85
      %p87 = scmp.eq.s32.totalorder %s40, 0
      %p88 = por %p86, %p87
      %s90 = sadd.s32 %s89, 1
      %p93 = scmp.eq.s32.totalorder %s34, 1
      %p94 = scmp.ne.s32.totalorder %s89, %s91
      %p95 = scmp.eq.s32.totalorder %s34, 0
      %p96 = por %p94, %p95
      %p97 = scmp.ne.s32.totalorder %s89, %s91
      %p98 = scmp.eq.s32.totalorder %s39, 1
      %p99 = por %p97, %p98
      %p100 = scmp.ne.s32.totalorder %s91, %s92
      %p101 = scmp.eq.s32.totalorder %s39, 0
      %p102 = por %p100, %p101
      %p103 = scmp.ne.s32.totalorder %s91, %s92
      %p104 = scmp.eq.s32.totalorder %s40, 1
      %p105 = por %p103, %p104
      %p107 = scmp.ne.s32.totalorder %s92, %s106
      %p108 = scmp.eq.s32.totalorder %s40, 0
      %p109 = por %p107, %p108
      %s111 = sadd.s32 %s110, 1
      %p114 = scmp.eq.s32.totalorder %s34, 1
      %p115 = scmp.ne.s32.totalorder %s110, %s112
      %p116 = scmp.eq.s32.totalorder %s34, 0
      %p117 = por %p115, %p116
      %p118 = scmp.ne.s32.totalorder %s110, %s112
      %p119 = scmp.eq.s32.totalorder %s39, 1
      %p120 = por %p118, %p119
      %p121 = scmp.ne.s32.totalorder %s112, %s113
      %p122 = scmp.eq.s32.totalorder %s39, 0
      %p123 = por %p121, %p122
      %p124 = scmp.ne.s32.totalorder %s112, %s113
      %p125 = scmp.eq.s32.totalorder %s40, 1
      %p126 = por %p124, %p125
      %p128 = scmp.ne.s32.totalorder %s113, %s127
      %p129 = scmp.eq.s32.totalorder %s40, 0
      %p130 = por %p128, %p129
      %s132 = sadd.s32 %s131, 1
      %p135 = scmp.eq.s32.totalorder %s34, 1
      %p136 = scmp.ne.s32.totalorder %s131, %s133
      %p137 = scmp.eq.s32.totalorder %s34, 0
      %p138 = por %p136, %p137
      %p139 = scmp.ne.s32.totalorder %s131, %s133
      %p140 = scmp.eq.s32.totalorder %s39, 1
      %p141 = por %p139, %p140
      %p142 = scmp.ne.s32.totalorder %s133, %s134
      %p143 = scmp.eq.s32.totalorder %s39, 0
      %p144 = por %p142, %p143
      %p145 = scmp.ne.s32.totalorder %s133, %s134
      %p146 = scmp.eq.s32.totalorder %s40, 1
      %p147 = por %p145, %p146
      %p149 = scmp.ne.s32.totalorder %s134, %s148
      %p150 = scmp.eq.s32.totalorder %s40, 0
      %p151 = por %p149, %p150
      %s153 = sadd.s32 %s152, 1
      %p156 = scmp.eq.s32.totalorder %s34, 1
      %p157 = scmp.ne.s32.totalorder %s152, %s154
      %p158 = scmp.eq.s32.totalorder %s34, 0
      %p159 = por %p157, %p158
      %p160 = scmp.ne.s32.totalorder %s152, %s154
      %p161 = scmp.eq.s32.totalorder %s39, 1
      %p162 = por %p160, %p161
      %p163 = scmp.ne.s32.totalorder %s154, %s155
      %p164 = scmp.eq.s32.totalorder %s39, 0
      %p165 = por %p163, %p164
      %p166 = scmp.ne.s32.totalorder %s154, %s155
      %p167 = scmp.eq.s32.totalorder %s40, 1
      %p168 = por %p166, %p167
      %p170 = scmp.ne.s32.totalorder %s155, %s169
      %p171 = scmp.eq.s32.totalorder %s40, 0
      %p172 = por %p170, %p171
      %s174 = sadd.s32 %s173, 1
      %p177 = scmp.eq.s32.totalorder %s34, 1
      %p178 = scmp.ne.s32.totalorder %s173, %s175
      %p179 = scmp.eq.s32.totalorder %s34, 0
      %p180 = por %p178, %p179
      %p181 = scmp.ne.s32.totalorder %s173, %s175
      %p182 = scmp.eq.s32.totalorder %s39, 1
      %p183 = por %p181, %p182
      %p184 = scmp.ne.s32.totalorder %s175, %s176
      %p185 = scmp.eq.s32.totalorder %s39, 0
      %p186 = por %p184, %p185
      %p187 = scmp.ne.s32.totalorder %s175, %s176
      %p188 = scmp.eq.s32.totalorder %s40, 1
      %p189 = por %p187, %p188
      %p191 = scmp.ne.s32.totalorder %s176, %s190
      %p192 = scmp.eq.s32.totalorder %s40, 0
      %p193 = por %p191, %p192
      %s195 = sadd.s32 %s194, 1
      %p198 = scmp.eq.s32.totalorder %s34, 1
      %p199 = scmp.ne.s32.totalorder %s194, %s196
      %p200 = scmp.eq.s32.totalorder %s34, 0
      %p201 = por %p199, %p200
      %p202 = scmp.ne.s32.totalorder %s194, %s196
      %p203 = scmp.eq.s32.totalorder %s39, 1
      %p204 = por %p202, %p203
      %p205 = scmp.ne.s32.totalorder %s196, %s197
      %p206 = scmp.eq.s32.totalorder %s39, 0
      %p207 = por %p205, %p206
      %p208 = scmp.ne.s32.totalorder %s196, %s197
      %p209 = scmp.eq.s32.totalorder %s40, 1
      %p210 = por %p208, %p209
      %p212 = scmp.ne.s32.totalorder %s197, %s211
      %p213 = scmp.eq.s32.totalorder %s40, 0
      %p214 = por %p212, %p213
      %s216 = sadd.s32 %s215, 1
      %p219 = scmp.eq.s32.totalorder %s34, 1
      %p220 = scmp.ne.s32.totalorder %s215, %s217
      %p221 = scmp.eq.s32.totalorder %s34, 0
      %p222 = por %p220, %p221
      %p223 = scmp.ne.s32.totalorder %s215, %s217
      %p224 = scmp.eq.s32.totalorder %s39, 1
      %p225 = por %p223, %p224
      %p226 = scmp.ne.s32.totalorder %s217, %s218
      %p227 = scmp.eq.s32.totalorder %s39, 0
      %p228 = por %p226, %p227
      %p229 = scmp.ne.s32.totalorder %s217, %s218
      %p230 = scmp.eq.s32.totalorder %s40, 1
      %p231 = por %p229, %p230
      %p233 = scmp.ne.s32.totalorder %s218, %s232
      %p234 = scmp.eq.s32.totalorder %s40, 0
      %p235 = por %p233, %p234
      %s237 = sadd.s32 %s236, 1
      %p240 = scmp.eq.s32.totalorder %s34, 1
      %p241 = scmp.ne.s32.totalorder %s236, %s238
      %p242 = scmp.eq.s32.totalorder %s34, 0
      %p243 = por %p241, %p242
      %p244 = scmp.ne.s32.totalorder %s236, %s238
      %p245 = scmp.eq.s32.totalorder %s39, 1
      %p246 = por %p244, %p245
      %p247 = scmp.ne.s32.totalorder %s238, %s239
      %p248 = scmp.eq.s32.totalorder %s39, 0
      %p249 = por %p247, %p248
      %p250 = scmp.ne.s32.totalorder %s238, %s239
      %p251 = scmp.eq.s32.totalorder %s40, 1
      %p252 = por %p250, %p251
      %p254 = scmp.ne.s32.totalorder %s239, %s253
      %p255 = scmp.eq.s32.totalorder %s40, 0
      %p256 = por %p254, %p255
      %s258 = sadd.s32 %s257, 1
      %p261 = scmp.eq.s32.totalorder %s34, 1
      %p262 = scmp.ne.s32.totalorder %s257, %s259
      %p263 = scmp.eq.s32.totalorder %s34, 0
      %p264 = por %p262, %p263
      %p265 = scmp.ne.s32.totalorder %s257, %s259
      %p266 = scmp.eq.s32.totalorder %s39, 1
      %p267 = por %p265, %p266
      %p268 = scmp.ne.s32.totalorder %s259, %s260
      %p269 = scmp.eq.s32.totalorder %s39, 0
      %p270 = por %p268, %p269
      %p271 = scmp.ne.s32.totalorder %s259, %s260
      %p272 = scmp.eq.s32.totalorder %s40, 1
      %p273 = por %p271, %p272
      %p275 = scmp.ne.s32.totalorder %s260, %s274
      %p276 = scmp.eq.s32.totalorder %s40, 0
      %p277 = por %p275, %p276
      %s279 = sadd.s32 %s278, 1
      %p282 = scmp.eq.s32.totalorder %s34, 1
      %p283 = scmp.ne.s32.totalorder %s278, %s280
      %p284 = scmp.eq.s32.totalorder %s34, 0
      %p285 = por %p283, %p284
      %p286 = scmp.ne.s32.totalorder %s278, %s280
      %p287 = scmp.eq.s32.totalorder %s39, 1
      %p288 = por %p286, %p287
      %p289 = scmp.ne.s32.totalorder %s280, %s281
      %p290 = scmp.eq.s32.totalorder %s39, 0
      %p291 = por %p289, %p290
      %p292 = scmp.ne.s32.totalorder %s280, %s281
      %p293 = scmp.eq.s32.totalorder %s40, 1
      %p294 = por %p292, %p293
      %p296 = scmp.ne.s32.totalorder %s281, %s295
      %p297 = scmp.eq.s32.totalorder %s40, 0
      %p298 = por %p296, %p297
      %s300 = sadd.s32 %s299, 1
      %p303 = scmp.eq.s32.totalorder %s34, 1
      %p304 = scmp.ne.s32.totalorder %s299, %s301
      %p305 = scmp.eq.s32.totalorder %s34, 0
      %p306 = por %p304, %p305
      %p307 = scmp.ne.s32.totalorder %s299, %s301
      %p308 = scmp.eq.s32.totalorder %s39, 1
      %p309 = por %p307, %p308
      %p310 = scmp.ne.s32.totalorder %s301, %s302
      %p311 = scmp.eq.s32.totalorder %s39, 0
      %p312 = por %p310, %p311
      %p313 = scmp.ne.s32.totalorder %s301, %s302
      %p314 = scmp.eq.s32.totalorder %s40, 1
      %p315 = por %p313, %p314
      %p317 = scmp.ne.s32.totalorder %s302, %s316
      %p318 = scmp.eq.s32.totalorder %s40, 0
      %p319 = por %p317, %p318
      %s321 = sadd.s32 %s320, 1
      %p324 = scmp.eq.s32.totalorder %s34, 1
      %p325 = scmp.ne.s32.totalorder %s320, %s322
      %p326 = scmp.eq.s32.totalorder %s34, 0
      %p327 = por %p325, %p326
      %p328 = scmp.ne.s32.totalorder %s320, %s322
      %p329 = scmp.eq.s32.totalorder %s39, 1
      %p330 = por %p328, %p329
      %p331 = scmp.ne.s32.totalorder %s322, %s323
      %p332 = scmp.eq.s32.totalorder %s39, 0
      %p333 = por %p331, %p332
      %p334 = scmp.ne.s32.totalorder %s322, %s323
      %p335 = scmp.eq.s32.totalorder %s40, 1
      %p336 = por %p334, %p335
      %p338 = scmp.ne.s32.totalorder %s323, %s337
      %p339 = scmp.eq.s32.totalorder %s40, 0
      %p340 = por %p338, %p339
      %s342 = sadd.s32 %s341, 1
      %p345 = scmp.eq.s32.totalorder %s34, 1
      %p346 = scmp.ne.s32.totalorder %s341, %s343
      %p347 = scmp.eq.s32.totalorder %s34, 0
      %p348 = por %p346, %p347
      %p349 = scmp.ne.s32.totalorder %s341, %s343
      %p350 = scmp.eq.s32.totalorder %s39, 1
      %p351 = por %p349, %p350
      %p352 = scmp.ne.s32.totalorder %s343, %s344
      %p353 = scmp.eq.s32.totalorder %s39, 0
      %p354 = por %p352, %p353
      %p355 = scmp.ne.s32.totalorder %s343, %s344
      %p356 = scmp.eq.s32.totalorder %s40, 1
      %p357 = por %p355, %p356
      %p359 = scmp.ne.s32.totalorder %s344, %s358
      %p360 = scmp.eq.s32.totalorder %s40, 0
      %p361 = por %p359, %p360
      %s363 = sadd.s32 %s362, 1
      %p366 = scmp.eq.s32.totalorder %s34, 1
      %p367 = scmp.ne.s32.totalorder %s362, %s364
      %p368 = scmp.eq.s32.totalorder %s34, 0
      %p369 = por %p367, %p368
      %p370 = scmp.ne.s32.totalorder %s362, %s364
      %p371 = scmp.eq.s32.totalorder %s39, 1
      %p372 = por %p370, %p371
      %p373 = scmp.ne.s32.totalorder %s364, %s365
      %p374 = scmp.eq.s32.totalorder %s39, 0
      %p375 = por %p373, %p374
      %p376 = scmp.ne.s32.totalorder %s364, %s365
      %p377 = scmp.eq.s32.totalorder %s40, 1
      %p378 = por %p376, %p377
      %p380 = scmp.ne.s32.totalorder %s365, %s379
      %p381 = scmp.eq.s32.totalorder %s40, 0
      %p382 = por %p380, %p381
      %s384 = sadd.s32 %s383, 1
      %p387 = scmp.eq.s32.totalorder %s34, 1
      %p388 = scmp.ne.s32.totalorder %s383, %s385
      %p389 = scmp.eq.s32.totalorder %s34, 0
      %p390 = por %p388, %p389
      %p391 = scmp.ne.s32.totalorder %s383, %s385
      %p392 = scmp.eq.s32.totalorder %s39, 1
      %p393 = por %p391, %p392
      %p394 = scmp.ne.s32.totalorder %s385, %s386
      %p395 = scmp.eq.s32.totalorder %s39, 0
      %p396 = por %p394, %p395
      %p397 = scmp.ne.s32.totalorder %s385, %s386
      %p398 = scmp.eq.s32.totalorder %s40, 1
      %p399 = por %p397, %p398
      %p401 = scmp.ne.s32.totalorder %s386, %s400
      %p402 = scmp.eq.s32.totalorder %s40, 0
      %p403 = por %p401, %p402
      %s404 = ssub.s32 %s34, %s41
      %p405 = scmp.eq.s32.totalorder %s404, 0
      %s407 = sadd.s32 %s406, 1
      %s408 = scalar_select %p405, %s406, %s407
      %p411 = pneg %p405
      %p412 = scmp.eq.s32.totalorder %s34, 1
      %p413 = por %p411, %p412
      %p414 = scmp.ne.s32.totalorder %s406, %s409
      %p415 = scmp.eq.s32.totalorder %s34, 0
      %p416 = por %p414, %p415
      %p417 = scmp.ne.s32.totalorder %s406, %s409
      %p418 = scmp.eq.s32.totalorder %s39, 1
      %p419 = por %p417, %p418
      %p420 = scmp.ne.s32.totalorder %s409, %s410
      %p421 = scmp.eq.s32.totalorder %s39, 0
      %p422 = por %p420, %p421
      %p423 = scmp.ne.s32.totalorder %s409, %s410
      %p424 = scmp.eq.s32.totalorder %s40, 1
      %p425 = por %p423, %p424
      %p427 = scmp.ne.s32.totalorder %s410, %s426
      %p428 = scmp.eq.s32.totalorder %s40, 0
      %p429 = por %p427, %p428
      %s430 = ssub.s32 %s34, %s41
      %p431 = scmp.eq.s32.totalorder %s430, 0
      %s433 = sadd.s32 %s432, 1
      %s434 = scalar_select %p431, %s432, %s433
      %p437 = pneg %p431
      %p438 = scmp.eq.s32.totalorder %s34, 1
      %p439 = por %p437, %p438
      %p440 = scmp.ne.s32.totalorder %s432, %s435
      %p441 = scmp.eq.s32.totalorder %s34, 0
      %p442 = por %p440, %p441
      %p443 = scmp.ne.s32.totalorder %s432, %s435
      %p444 = scmp.eq.s32.totalorder %s39, 1
      %p445 = por %p443, %p444
      %p446 = scmp.ne.s32.totalorder %s435, %s436
      %p447 = scmp.eq.s32.totalorder %s39, 0
      %p448 = por %p446, %p447
      %p449 = scmp.ne.s32.totalorder %s435, %s436
      %p450 = scmp.eq.s32.totalorder %s40, 1
      %p451 = por %p449, %p450
      %p453 = scmp.ne.s32.totalorder %s436, %s452
      %p454 = scmp.eq.s32.totalorder %s40, 0
      %p455 = por %p453, %p454
      %p456 = scmp.le.s32.totalorder 1, %s34
      %p457 = scmp.lt.s32.totalorder %s34, 3
      %p458 = pnand %p456, %p457
      %p459 = pneg %p458
      // Predicated region
      $region9: #{cnn_attn_forward.1} parent=5 // pred_check
        _
      $region10: #{cnn_attn_forward.1} parent=5 // pred_check_branch
        %461 = sbr.rel (%p458) target = $region12
      $region11: #{cnn_attn_forward.1} parent=5 // pred_region
        %s462 = ssub.s32 %s34, 1
        // Predicated region
        $region13: #{cnn_attn_forward.1} parent=11 // pred_check
          %p463 = pneg %p81
        $region14: #{cnn_attn_forward.1} parent=11 // pred_check_branch
          %465 = sbr.rel (%p463) target = $region16
        $region15: #{cnn_attn_forward.1} parent=11 // pred_region
          %s467 = ssub.s32 512, 512
          %468 = vsyncadd [#allocation4], %s467
          %s469 = sshll.u32 [#allocation3], 4
          %s470 = int_to_ptr.vmem [resolvable:$true] %s469
          %475 = dma.hbm_to_vmem [thread:$0]  %s1, 512, %s470, [#allocation4], 128, 128, 8
        $region16: #{cnn_attn_forward.1} parent=11 // pred_fallthru
          _
        // Predicated region
        $region17: #{cnn_attn_forward.1} parent=11 // pred_check
          %p476 = pneg %p102
        $region18: #{cnn_attn_forward.1} parent=11 // pred_check_branch
          %478 = sbr.rel (%p476) target = $region20
        $region19: #{cnn_attn_forward.1} parent=11 // pred_region
          _
        $region20: #{cnn_attn_forward.1} parent=11 // pred_fallthru
          _
        // Predicated region
        $region21: #{cnn_attn_forward.1} parent=11 // pred_check
          %p479 = pneg %p123
        $region22: #{cnn_attn_forward.1} parent=11 // pred_check_branch
          %481 = sbr.rel (%p479) target = $region24
        $region23: #{cnn_attn_forward.1} parent=11 // pred_region
          %s483 = ssub.s32 1024, 1024
          %484 = vsyncadd [#allocation6], %s483
          %s485 = sshll.u32 [#allocation5], 4
          %s486 = int_to_ptr.vmem [resolvable:$true] %s485
          %491 = dma.hbm_to_vmem [thread:$0]  %s3, 1024, %s486, [#allocation6], 128, 128, 8
        $region24: #{cnn_attn_forward.1} parent=11 // pred_fallthru
          _
        // Predicated region
        $region25: #{cnn_attn_forward.1} parent=11 // pred_check
          %p492 = pneg %p144
        $region26: #{cnn_attn_forward.1} parent=11 // pred_check_branch
          %494 = sbr.rel (%p492) target = $region28
        $region27: #{cnn_attn_forward.1} parent=11 // pred_region
          %s496 = ssub.s32 16, 16
          %497 = vsyncadd [#allocation6], %s496
          %s499 = sshll.u32 [#allocation7], 4
          %s500 = int_to_ptr.vmem [resolvable:$true] %s499
          %502 = dma.hbm_to_vmem [thread:$0]  %s4, 16, %s500, [#allocation6]
        $region28: #{cnn_attn_forward.1} parent=11 // pred_fallthru
          _
        // Predicated region
        $region29: #{cnn_attn_forward.1} parent=11 // pred_check
          %p503 = pneg %p165
        $region30: #{cnn_attn_forward.1} parent=11 // pred_check_branch
          %505 = sbr.rel (%p503) target = $region32
        $region31: #{cnn_attn_forward.1} parent=11 // pred_region
          %s507 = ssub.s32 1536, 1536
          %508 = vsyncadd [#allocation9], %s507
          %s509 = sshll.u32 [#allocation8], 4
          %s510 = int_to_ptr.vmem [resolvable:$true] %s509
          %515 = dma.hbm_to_vmem [thread:$0]  %s5, 1536, %s510, [#allocation9], 128, 128, 8
        $region32: #{cnn_attn_forward.1} parent=11 // pred_fallthru
          _
        // Predicated region
        $region33: #{cnn_attn_forward.1} parent=11 // pred_check
          %p516 = pneg %p186
        $region34: #{cnn_attn_forward.1} parent=11 // pred_check_branch
          %518 = sbr.rel (%p516) target = $region36
        $region35: #{cnn_attn_forward.1} parent=11 // pred_region
          %s520 = ssub.s32 16, 16
          %521 = vsyncadd [#allocation9], %s520
          %s523 = sshll.u32 [#allocation10], 4
          %s524 = int_to_ptr.vmem [resolvable:$true] %s523
          %526 = dma.hbm_to_vmem [thread:$0]  %s6, 16, %s524, [#allocation9]
        $region36: #{cnn_attn_forward.1} parent=11 // pred_fallthru
          _
        // Predicated region
        $region37: #{cnn_attn_forward.1} parent=11 // pred_check
          %p527 = pneg %p207
        $region38: #{cnn_attn_forward.1} parent=11 // pred_check_branch
          %529 = sbr.rel (%p527) target = $region40
        $region39: #{cnn_attn_forward.1} parent=11 // pred_region
          %s531 = ssub.s32 2048, 2048
          %532 = vsyncadd [#allocation12], %s531
          %s533 = sshll.u32 [#allocation11], 4
          %s534 = int_to_ptr.vmem [resolvable:$true] %s533
          %539 = dma.hbm_to_vmem [thread:$0]  %s7, 2048, %s534, [#allocation12], 128, 128, 8
        $region40: #{cnn_attn_forward.1} parent=11 // pred_fallthru
          _
        // Predicated region
        $region41: #{cnn_attn_forward.1} parent=11 // pred_check
          %p540 = pneg %p228
        $region42: #{cnn_attn_forward.1} parent=11 // pred_check_branch
          %542 = sbr.rel (%p540) target = $region44
        $region43: #{cnn_attn_forward.1} parent=11 // pred_region
          %s544 = ssub.s32 16, 16
          %545 = vsyncadd [#allocation12], %s544
          %s547 = sshll.u32 [#allocation13], 4
          %s548 = int_to_ptr.vmem [resolvable:$true] %s547
          %550 = dma.hbm_to_vmem [thread:$0]  %s8, 16, %s548, [#allocation12]
        $region44: #{cnn_attn_forward.1} parent=11 // pred_fallthru
          _
        // Predicated region
        $region45: #{cnn_attn_forward.1} parent=11 // pred_check
          %p551 = pneg %p249
        $region46: #{cnn_attn_forward.1} parent=11 // pred_check_branch
          %553 = sbr.rel (%p551) target = $region48
        $region47: #{cnn_attn_forward.1} parent=11 // pred_region
          _
        $region48: #{cnn_attn_forward.1} parent=11 // pred_fallthru
          _
        // Predicated region
        $region49: #{cnn_attn_forward.1} parent=11 // pred_check
          %p554 = pneg %p270
        $region50: #{cnn_attn_forward.1} parent=11 // pred_check_branch
          %556 = sbr.rel (%p554) target = $region52
        $region51: #{cnn_attn_forward.1} parent=11 // pred_region
          %s558 = ssub.s32 16, 16
          %559 = vsyncadd [#allocation15], %s558
          %s561 = sshll.u32 [#allocation14], 4
          %s562 = int_to_ptr.vmem [resolvable:$true] %s561
          %564 = dma.hbm_to_vmem [thread:$0]  %s10, 16, %s562, [#allocation15]
        $region52: #{cnn_attn_forward.1} parent=11 // pred_fallthru
          _
        // Predicated region
        $region53: #{cnn_attn_forward.1} parent=11 // pred_check
          %p565 = pneg %p291
        $region54: #{cnn_attn_forward.1} parent=11 // pred_check_branch
          %567 = sbr.rel (%p565) target = $region56
        $region55: #{cnn_attn_forward.1} parent=11 // pred_region
          %s569 = ssub.s32 6144, 6144
          %570 = vsyncadd [#allocation15], %s569
          %s571 = sshll.u32 [#allocation16], 4
          %s572 = int_to_ptr.vmem [resolvable:$true] %s571
          %577 = dma.hbm_to_vmem [thread:$0]  %s11, 6144, %s572, [#allocation15], 128, 128, 8
        $region56: #{cnn_attn_forward.1} parent=11 // pred_fallthru
          _
        // Predicated region
        $region57: #{cnn_attn_forward.1} parent=11 // pred_check
          %p578 = pneg %p312
        $region58: #{cnn_attn_forward.1} parent=11 // pred_check_branch
          %580 = sbr.rel (%p578) target = $region60
        $region59: #{cnn_attn_forward.1} parent=11 // pred_region
          %s582 = ssub.s32 16, 16
          %583 = vsyncadd [#allocation18], %s582
          %s585 = sshll.u32 [#allocation17], 4
          %s586 = int_to_ptr.vmem [resolvable:$true] %s585
          %588 = dma.hbm_to_vmem [thread:$0]  %s12, 16, %s586, [#allocation18]
        $region60: #{cnn_attn_forward.1} parent=11 // pred_fallthru
          _
        // Predicated region
        $region61: #{cnn_attn_forward.1} parent=11 // pred_check
          %p589 = pneg %p333
        $region62: #{cnn_attn_forward.1} parent=11 // pred_check_branch
          %591 = sbr.rel (%p589) target = $region64
        $region63: #{cnn_attn_forward.1} parent=11 // pred_region
          %s593 = ssub.s32 6144, 6144
          %594 = vsyncadd [#allocation18], %s593
          %s595 = sshll.u32 [#allocation19], 4
          %s596 = int_to_ptr.vmem [resolvable:$true] %s595
          %601 = dma.hbm_to_vmem [thread:$0]  %s13, 6144, %s596, [#allocation18], 128, 128, 8
        $region64: #{cnn_attn_forward.1} parent=11 // pred_fallthru
          _
        // Predicated region
        $region65: #{cnn_attn_forward.1} parent=11 // pred_check
          %p602 = pneg %p354
        $region66: #{cnn_attn_forward.1} parent=11 // pred_check_branch
          %604 = sbr.rel (%p602) target = $region68
        $region67: #{cnn_attn_forward.1} parent=11 // pred_region
          %s606 = ssub.s32 16, 16
          %607 = vsyncadd [#allocation21], %s606
          %s609 = sshll.u32 [#allocation20], 4
          %s610 = int_to_ptr.vmem [resolvable:$true] %s609
          %612 = dma.hbm_to_vmem [thread:$0]  %s14, 16, %s610, [#allocation21]
        $region68: #{cnn_attn_forward.1} parent=11 // pred_fallthru
          _
        // Predicated region
        $region69: #{cnn_attn_forward.1} parent=11 // pred_check
          %p613 = pneg %p375
        $region70: #{cnn_attn_forward.1} parent=11 // pred_check_branch
          %615 = sbr.rel (%p613) target = $region72
        $region71: #{cnn_attn_forward.1} parent=11 // pred_region
          %s617 = ssub.s32 16, 16
          %618 = vsyncadd [#allocation21], %s617
          %s620 = sshll.u32 [#allocation22], 4
          %s621 = int_to_ptr.vmem [resolvable:$true] %s620
          %623 = dma.hbm_to_vmem [thread:$0]  %s15, 16, %s621, [#allocation21]
        $region72: #{cnn_attn_forward.1} parent=11 // pred_fallthru
          _
        // Predicated region
        $region73: #{cnn_attn_forward.1} parent=11 // pred_check
          %p624 = pneg %p396
        $region74: #{cnn_attn_forward.1} parent=11 // pred_check_branch
          %626 = sbr.rel (%p624) target = $region76
        $region75: #{cnn_attn_forward.1} parent=11 // pred_region
          _
        $region76: #{cnn_attn_forward.1} parent=11 // pred_fallthru
          _
      $region12: #{cnn_attn_forward.1} parent=5 // pred_fallthru
        _
      %p627 = scmp.lt.s32.totalorder %s34, 2
      // Predicated region
      $region77: #{cnn_attn_forward.1} parent=5 // pred_check
        %p628 = pneg %p627
      $region78: #{cnn_attn_forward.1} parent=5 // pred_check_branch
        %630 = sbr.rel (%p628) target = $region80
      $region79: #{cnn_attn_forward.1} parent=5 // pred_region
        // Predicated region
        $region81: #{cnn_attn_forward.1} parent=79 // pred_check
          %p631 = pneg %p54
        $region82: #{cnn_attn_forward.1} parent=79 // pred_check_branch
          %633 = sbr.rel (%p631) target = $region84
        $region83: #{cnn_attn_forward.1} parent=79 // pred_region
          %p634 = scmp.lt.s32.totalorder %s34, 1
          %s635 = scalar_select %p634, %s34, 1
          %s636 = smul.addr %s635, 3
          %s637 = smul.addr %s636, 8
          %s638 = scalar_lea.vmem %s0, %s637
        $region84: #{cnn_attn_forward.1} parent=79 // pred_fallthru
          _
      $region80: #{cnn_attn_forward.1} parent=5 // pred_fallthru
        _
      %p639 = scmp.le.s32.totalorder 1, %s34
      %p640 = scmp.lt.s32.totalorder %s34, 3
      %p641 = pnand %p639, %p640
      %p642 = pneg %p641
      // Predicated region
      $region85: #{cnn_attn_forward.1} parent=5 // pred_check
        _
      $region86: #{cnn_attn_forward.1} parent=5 // pred_check_branch
        %644 = sbr.rel (%p641) target = $region88
      $region87: #{cnn_attn_forward.1} parent=5 // pred_region
        %s645 = ssub.s32 %s34, 1
        // Predicated region
        $region89: #{cnn_attn_forward.1} parent=87 // pred_check
          %p646 = pneg %p81
        $region90: #{cnn_attn_forward.1} parent=87 // pred_check_branch
          %648 = sbr.rel (%p646) target = $region92
        $region91: #{cnn_attn_forward.1} parent=87 // pred_region
          %649 = dma.done [#allocation4], 512
        $region92: #{cnn_attn_forward.1} parent=87 // pred_fallthru
          _
        // Predicated region
        $region93: #{cnn_attn_forward.1} parent=87 // pred_check
          %p650 = pneg %p123
        $region94: #{cnn_attn_forward.1} parent=87 // pred_check_branch
          %652 = sbr.rel (%p650) target = $region96
        $region95: #{cnn_attn_forward.1} parent=87 // pred_region
          %653 = dma.done [#allocation6], 1024
        $region96: #{cnn_attn_forward.1} parent=87 // pred_fallthru
          _
        // Predicated region
        $region97: #{cnn_attn_forward.1} parent=87 // pred_check
          %p654 = pneg %p144
        $region98: #{cnn_attn_forward.1} parent=87 // pred_check_branch
          %656 = sbr.rel (%p654) target = $region100
        $region99: #{cnn_attn_forward.1} parent=87 // pred_region
          %657 = dma.done [#allocation6], 16
        $region100: #{cnn_attn_forward.1} parent=87 // pred_fallthru
          _
        // Predicated region
        $region101: #{cnn_attn_forward.1} parent=87 // pred_check
          %p658 = pneg %p165
        $region102: #{cnn_attn_forward.1} parent=87 // pred_check_branch
          %660 = sbr.rel (%p658) target = $region104
        $region103: #{cnn_attn_forward.1} parent=87 // pred_region
          %661 = dma.done [#allocation9], 1536
        $region104: #{cnn_attn_forward.1} parent=87 // pred_fallthru
          _
        // Predicated region
        $region105: #{cnn_attn_forward.1} parent=87 // pred_check
          %p662 = pneg %p186
        $region106: #{cnn_attn_forward.1} parent=87 // pred_check_branch
          %664 = sbr.rel (%p662) target = $region108
        $region107: #{cnn_attn_forward.1} parent=87 // pred_region
          %665 = dma.done [#allocation9], 16
        $region108: #{cnn_attn_forward.1} parent=87 // pred_fallthru
          _
        // Predicated region
        $region109: #{cnn_attn_forward.1} parent=87 // pred_check
          %p666 = pneg %p207
        $region110: #{cnn_attn_forward.1} parent=87 // pred_check_branch
          %668 = sbr.rel (%p666) target = $region112
        $region111: #{cnn_attn_forward.1} parent=87 // pred_region
          %669 = dma.done [#allocation12], 2048
        $region112: #{cnn_attn_forward.1} parent=87 // pred_fallthru
          _
        // Predicated region
        $region113: #{cnn_attn_forward.1} parent=87 // pred_check
          %p670 = pneg %p228
        $region114: #{cnn_attn_forward.1} parent=87 // pred_check_branch
          %672 = sbr.rel (%p670) target = $region116
        $region115: #{cnn_attn_forward.1} parent=87 // pred_region
          %673 = dma.done [#allocation12], 16
        $region116: #{cnn_attn_forward.1} parent=87 // pred_fallthru
          _
        // Predicated region
        $region117: #{cnn_attn_forward.1} parent=87 // pred_check
          %p674 = pneg %p270
        $region118: #{cnn_attn_forward.1} parent=87 // pred_check_branch
          %676 = sbr.rel (%p674) target = $region120
        $region119: #{cnn_attn_forward.1} parent=87 // pred_region
          %677 = dma.done [#allocation15], 16
        $region120: #{cnn_attn_forward.1} parent=87 // pred_fallthru
          _
        // Predicated region
        $region121: #{cnn_attn_forward.1} parent=87 // pred_check
          %p678 = pneg %p291
        $region122: #{cnn_attn_forward.1} parent=87 // pred_check_branch
          %680 = sbr.rel (%p678) target = $region124
        $region123: #{cnn_attn_forward.1} parent=87 // pred_region
          %681 = dma.done [#allocation15], 6144
        $region124: #{cnn_attn_forward.1} parent=87 // pred_fallthru
          _
        // Predicated region
        $region125: #{cnn_attn_forward.1} parent=87 // pred_check
          %p682 = pneg %p312
        $region126: #{cnn_attn_forward.1} parent=87 // pred_check_branch
          %684 = sbr.rel (%p682) target = $region128
        $region127: #{cnn_attn_forward.1} parent=87 // pred_region
          %685 = dma.done [#allocation18], 16
        $region128: #{cnn_attn_forward.1} parent=87 // pred_fallthru
          _
        // Predicated region
        $region129: #{cnn_attn_forward.1} parent=87 // pred_check
          %p686 = pneg %p333
        $region130: #{cnn_attn_forward.1} parent=87 // pred_check_branch
          %688 = sbr.rel (%p686) target = $region132
        $region131: #{cnn_attn_forward.1} parent=87 // pred_region
          %689 = dma.done [#allocation18], 6144
        $region132: #{cnn_attn_forward.1} parent=87 // pred_fallthru
          _
        // Predicated region
        $region133: #{cnn_attn_forward.1} parent=87 // pred_check
          %p690 = pneg %p354
        $region134: #{cnn_attn_forward.1} parent=87 // pred_check_branch
          %692 = sbr.rel (%p690) target = $region136
        $region135: #{cnn_attn_forward.1} parent=87 // pred_region
          %693 = dma.done [#allocation21], 16
        $region136: #{cnn_attn_forward.1} parent=87 // pred_fallthru
          _
        // Predicated region
        $region137: #{cnn_attn_forward.1} parent=87 // pred_check
          %p694 = pneg %p375
        $region138: #{cnn_attn_forward.1} parent=87 // pred_check_branch
          %696 = sbr.rel (%p694) target = $region140
        $region139: #{cnn_attn_forward.1} parent=87 // pred_region
          %697 = dma.done [#allocation21], 16
        $region140: #{cnn_attn_forward.1} parent=87 // pred_fallthru
          _
        %p698 = scmp.lt.s32.totalorder %s39, 1
        %s699 = scalar_select %p698, %s39, 1
        %s700 = smul.addr %s699, 3
        %s701 = smul.addr %s700, 8
        %s702 = scalar_lea.vmem %s0, %s701
        %p703 = pneg %p60
        %p704 = pneg %p57
        %p705 = pneg %p81
        %p706 = pneg %p78
        %p707 = pneg %p102
        %p708 = pneg %p99
        %p709 = pneg %p123
        %p710 = pneg %p120
        %p711 = pneg %p144
        %p712 = pneg %p141
        %p713 = pneg %p165
        %p714 = pneg %p162
        %p715 = pneg %p186
        %p716 = pneg %p183
        %p717 = pneg %p207
        %p718 = pneg %p204
        %p719 = pneg %p228
        %p720 = pneg %p225
        %p721 = pneg %p249
        %p722 = pneg %p246
        %p723 = pneg %p270
        %p724 = pneg %p267
        %p725 = pneg %p291
        %p726 = pneg %p288
        %p727 = pneg %p312
        %p728 = pneg %p309
        %p729 = pneg %p333
        %p730 = pneg %p330
        %p731 = pneg %p354
        %p732 = pneg %p351
        %p733 = pneg %p375
        %p734 = pneg %p372
        %p735 = pneg %p396
        %p736 = pneg %p393
        %p737 = pneg %p422
        %p738 = pneg %p419
        %p739 = scmp.lt.s32.totalorder %s39, 1
        %s740 = scalar_select %p739, %s39, 1
        %s741 = smul.addr %s740, 2
        %s742 = smul.addr %s741, 8
        %s743 = scalar_lea.vmem %s17, %s742
        %p744 = pneg %p448
        %p745 = pneg %p445
        %p746 = scmp.lt.s32.totalorder %s39, 1
        %s747 = scalar_select %p746, %s39, 1
        %s748 = smul.addr %s747, 2
        %s749 = smul.addr %s748, 8
        %s750 = scalar_lea.vmem %s18, %s749
        %p751 = scmp.lt.s32.totalorder %s39, 1
        %s752 = scalar_select %p751, %s39, 1
        %s753 = smul.addr %s752, 3
        %s754 = smul.addr %s753, 8
        %s755 = scalar_lea.vmem %s0, %s754
        %p756 = scmp.lt.s32.totalorder %s39, 1
        %s757 = scalar_select %p756, %s39, 1
        %s758 = smul.addr %s757, 2
        %s759 = smul.addr %s758, 8
        %s760 = scalar_lea.vmem %s17, %s759
        %p761 = scmp.lt.s32.totalorder %s39, 1
        %s762 = scalar_select %p761, %s39, 1
        %s763 = smul.addr %s762, 2
        %s764 = smul.addr %s763, 8
        %s765 = scalar_lea.vmem %s18, %s764
        %v766 = vld [vmem:[%s755] sm:$0xff]
        %v767 = vld [vmem:[%s755 + $0x8] sm:$0xff]
        %v768 = vld [vmem:[%s755 + $0x10] sm:$0xf]
        %v769 = vld [vmem:[#allocation3] sm:$0xff]
        %v770 = vld [vmem:[#allocation3 + $0x8] sm:$0xff]
        %v771 = vld [vmem:[#allocation3 + $0x10] sm:$0xff]
        %v772 = vld [vmem:[#allocation3 + $0x18] sm:$0xff]
        %v773 = vld [vmem:[%s2] sm:$0x1]
        %v775 = vlaneseq
        %v776 = vshrl.u32 %v775, 7
        %v777 = vsub.s32 0, %v776
        %v778 = vrot.slane %v773, %v777
        %vm780 = vcmask 261120
        %v782 = vsel %vm780, %v766, 0
        %v785 = vsel %vm780, %v767, 0
        %v788 = vsel %vm780, %v768, 0
        %790 = vmatprep.subr.mxu0 0.0
        %791 = vmatpush1.msra.mxu0 %v769
        %792 = vmatprep.subr.mxu0 0.0
        %793 = vmatpush1.msra.mxu0 %v770
        %794 = vmatprep.subr.mxu0 0.0
        %795 = vmatpush1.msra.mxu0 %v771
        %796 = vmatprep.subr.mxu0 0.0
        %797 = vmatpush1.msra.mxu0 %v772
        %798 = vmatprep.subr.mxu0 0.0
        %799 = vmatpush1.msra.mxu0 0.0
        %800 = vmatprep.subr.mxu0 0.0
        %801 = vmatpush1.msra.mxu0 0.0
        %802 = vmatprep.subr.mxu0 0.0
        %803 = vmatpush1.msra.mxu0 0.0
        %804 = vmatprep.subr.mxu0 0.0
        %805 = vmatpush1.msra.mxu0 0.0
        %806 = vmatprep.subr.mxu0 0.0
        %807 = vmatpush1.msra.mxu0 0.0
        %808 = vmatprep.subr.mxu0 0.0
        %809 = vmatpush1.msra.mxu0 0.0
        %810 = vmatprep.subr.mxu0 0.0
        %811 = vmatpush1.msra.mxu0 0.0
        %812 = vmatprep.subr.mxu0 0.0
        %813 = vmatpush1.msra.mxu0 0.0
        %814 = vmatprep.subr.mxu0 0.0
        %815 = vmatpush1.msra.mxu0 0.0
        %816 = vmatprep.subr.mxu0 0.0
        %817 = vmatpush1.msra.mxu0 0.0
        %818 = vmatprep.subr.mxu0 0.0
        %819 = vmatpush1.msra.mxu0 0.0
        %820 = vmatprep.subr.mxu0 0.0
        %821 = vmatpush1.msra.mxu0 0.0
        %822 = vmatprep.subr.mxu0 0.0
        %823 = vmatpush1.msra.mxu0 0.0
        %824 = vmatprep.subr.mxu0 0.0
        %825 = vmatpush1.msra.mxu0 0.0
        %826 = vmatprep.subr.mxu0 0.0
        %827 = vmatpush1.msra.mxu0 0.0
        %828 = vmatprep.subr.mxu0 0.0
        %829 = vmatpush1.msra.mxu0 0.0
        %830 = vmatprep.subr.mxu0 0.0
        %831 = vmatpush1.msra.mxu0 0.0
        %832 = vmatprep.subr.mxu0 0.0
        %833 = vmatpush1.msra.mxu0 0.0
        %834 = vmatprep.subr.mxu0 0.0
        %835 = vmatpush1.msra.mxu0 0.0
        %836 = vmatprep.subr.mxu0 0.0
        %837 = vmatpush1.msra.mxu0 0.0
        %838 = vmatprep.subr.mxu0 0.0
        %839 = vmatpush1.msra.mxu0 0.0
        %840 = vmatprep.subr.mxu0 0.0
        %841 = vmatpush1.msra.mxu0 0.0
        %842 = vmatprep.subr.mxu0 0.0
        %843 = vmatpush1.msra.mxu0 0.0
        %844 = vmatprep.subr.mxu0 0.0
        %845 = vmatpush1.msra.mxu0 0.0
        %846 = vmatprep.subr.mxu0 0.0
        %847 = vmatpush1.msra.mxu0 0.0
        %848 = vmatprep.subr.mxu0 0.0
        %849 = vmatpush1.msra.mxu0 0.0
        %850 = vmatprep.subr.mxu0 0.0
        %851 = vmatpush1.msra.mxu0 0.0
        %852 = vmatprep.subr.mxu0 0.0
        %853 = vmatpush1.msra.mxu0 0.0
        %854 = vmatprep.mubr.f32.mxu0 0.0
        %855 = vmatmul.mubr.f32.gmra.mrb[0].mxu0 %v782
        %v856 = vpop.f32.mrb[0].mxu0
        %v857 = vadd.f32 %v778, %v856
        %v858 = vpop.f32.mrb[0].mxu0
        %859 = vmatprep.mubr.f32.mxu0 0.0
        %860 = vmatmul.mubr.f32.gmra.mrb[0].mxu0 %v785
        %v861 = vpop.f32.mrb[0].mxu0
        %v862 = vadd.f32 %v778, %v861
        %v863 = vpop.f32.mrb[0].mxu0
        %864 = vmatprep.mubr.f32.mxu0 0.0
        %865 = vmatmul.mubr.f32.gmra.mrb[0].mxu0 %v788
        %v866 = vpop.f32.mrb[0].mxu0
        %v867 = vadd.f32 %v778, %v866
        %v868 = vpop.f32.mrb[0].mxu0
        %869 = vdwg.mxu0
        %v870 = vmax.f32 %v857, 0.0
        %v871 = vmax.f32 %v862, 0.0
        %v872 = vmax.f32 %v867, 0.0
        %v873 = vlaneseq
        %v874 = vshrl.u32 %v873, 7
        %v875 = vadd.s32 %v874, 8
        %v876 = vlaneseq
        %v877 = vand.u32 %v876, 127
        %v878 = vmul.u32 %v874, 2
        %v879 = vmul.u32 %v875, 2
        %vm880 = vcmp.eq.s32.totalorder %v877, %v878
        %vm881 = vcmp.eq.s32.totalorder %v877, %v879
        %v882 = vsel %vm880, 1, 0
        %v883 = vsel %vm881, 1, 0
        %v884 = vcvt.s32.f32 %v882
        %v885 = vcvt.s32.f32 %v883
        %v886 = vadd.s32 %v878, 1
        %v887 = vadd.s32 %v879, 1
        %vm888 = vcmp.eq.s32.totalorder %v877, %v886
        %vm889 = vcmp.eq.s32.totalorder %v877, %v887
        %v890 = vsel %vm888, 1, 0
        %v891 = vsel %vm889, 1, 0
        %v892 = vcvt.s32.f32 %v890
        %v893 = vcvt.s32.f32 %v891
        %vm894 = vcmask 162816
        %v896 = vsel %vm894, %v884, 0
        %v899 = vsel %vm894, %v885, 0
        %vm901 = vcmask 1043456
        %v903 = vsel %vm901, %v872, 0
        %905 = vmatprep.subr.mxu0 0.0
        %906 = vmatpush1.msra.mxu0 %v870
        %907 = vmatprep.subr.mxu0 0.0
        %908 = vmatpush1.msra.mxu0 %v871
        %909 = vmatprep.subr.mxu0 0.0
        %910 = vmatpush1.msra.mxu0 %v903
        %911 = vmatprep.subr.mxu0 0.0
        %912 = vmatpush1.msra.mxu0 0.0
        %913 = vmatprep.subr.mxu0 0.0
        %914 = vmatpush1.msra.mxu0 0.0
        %915 = vmatprep.subr.mxu0 0.0
        %916 = vmatpush1.msra.mxu0 0.0
        %917 = vmatprep.subr.mxu0 0.0
        %918 = vmatpush1.msra.mxu0 0.0
        %919 = vmatprep.subr.mxu0 0.0
        %920 = vmatpush1.msra.mxu0 0.0
        %921 = vmatprep.subr.mxu0 0.0
        %922 = vmatpush1.msra.mxu0 0.0
        %923 = vmatprep.subr.mxu0 0.0
        %924 = vmatpush1.msra.mxu0 0.0
        %925 = vmatprep.subr.mxu0 0.0
        %926 = vmatpush1.msra.mxu0 0.0
        %927 = vmatprep.subr.mxu0 0.0
        %928 = vmatpush1.msra.mxu0 0.0
        %929 = vmatprep.subr.mxu0 0.0
        %930 = vmatpush1.msra.mxu0 0.0
        %931 = vmatprep.subr.mxu0 0.0
        %932 = vmatpush1.msra.mxu0 0.0
        %933 = vmatprep.subr.mxu0 0.0
        %934 = vmatpush1.msra.mxu0 0.0
        %935 = vmatprep.subr.mxu0 0.0
        %936 = vmatpush1.msra.mxu0 0.0
        %937 = vmatprep.subr.mxu0 0.0
        %938 = vmatpush1.msra.mxu0 0.0
        %939 = vmatprep.subr.mxu0 0.0
        %940 = vmatpush1.msra.mxu0 0.0
        %941 = vmatprep.subr.mxu0 0.0
        %942 = vmatpush1.msra.mxu0 0.0
        %943 = vmatprep.subr.mxu0 0.0
        %944 = vmatpush1.msra.mxu0 0.0
        %945 = vmatprep.subr.mxu0 0.0
        %946 = vmatpush1.msra.mxu0 0.0
        %947 = vmatprep.subr.mxu0 0.0
        %948 = vmatpush1.msra.mxu0 0.0
        %949 = vmatprep.subr.mxu0 0.0
        %950 = vmatpush1.msra.mxu0 0.0
        %951 = vmatprep.subr.mxu0 0.0
        %952 = vmatpush1.msra.mxu0 0.0
        %953 = vmatprep.subr.mxu0 0.0
        %954 = vmatpush1.msra.mxu0 0.0
        %955 = vmatprep.subr.mxu0 0.0
        %956 = vmatpush1.msra.mxu0 0.0
        %957 = vmatprep.subr.mxu0 0.0
        %958 = vmatpush1.msra.mxu0 0.0
        %959 = vmatprep.subr.mxu0 0.0
        %960 = vmatpush1.msra.mxu0 0.0
        %961 = vmatprep.subr.mxu0 0.0
        %962 = vmatpush1.msra.mxu0 0.0
        %963 = vmatprep.subr.mxu0 0.0
        %964 = vmatpush1.msra.mxu0 0.0
        %965 = vmatprep.subr.mxu0 0.0
        %966 = vmatpush1.msra.mxu0 0.0
        %967 = vmatprep.subr.mxu0 0.0
        %968 = vmatpush1.msra.mxu0 0.0
        %969 = vmatprep.mubr.f32.mxu0 0.0
        %970 = vmatmul.mubr.f32.gmra.mrb[0].mxu0 %v896
        %v971 = vpop.f32.mrb[0].mxu0
        %v972 = vadd.f32 0.0, %v971
        %v973 = vpop.f32.mrb[0].mxu0
        %974 = vmatprep.mubr.f32.mxu0 0.0
        %975 = vmatmul.mubr.f32.gmra.mrb[0].mxu0 %v899
        %v976 = vpop.f32.mrb[0].mxu0
        %v977 = vadd.f32 0.0, %v976
        %v978 = vpop.f32.mrb[0].mxu0
        %979 = vdwg.mxu0
        %v981 = vsel %vm894, %v892, 0
        %v984 = vsel %vm894, %v893, 0
        %986 = vmatprep.subr.mxu0 0.0
        %987 = vmatpush1.msra.mxu0 %v870
        %988 = vmatprep.subr.mxu0 0.0
        %989 = vmatpush1.msra.mxu0 %v871
        %990 = vmatprep.subr.mxu0 0.0
        %991 = vmatpush1.msra.mxu0 %v903
        %992 = vmatprep.subr.mxu0 0.0
        %993 = vmatpush1.msra.mxu0 0.0
        %994 = vmatprep.subr.mxu0 0.0
        %995 = vmatpush1.msra.mxu0 0.0
        %996 = vmatprep.subr.mxu0 0.0
        %997 = vmatpush1.msra.mxu0 0.0
        %998 = vmatprep.subr.mxu0 0.0
        %999 = vmatpush1.msra.mxu0 0.0
        %1000 = vmatprep.subr.mxu0 0.0
        %1001 = vmatpush1.msra.mxu0 0.0
        %1002 = vmatprep.subr.mxu0 0.0
        %1003 = vmatpush1.msra.mxu0 0.0
        %1004 = vmatprep.subr.mxu0 0.0
        %1005 = vmatpush1.msra.mxu0 0.0
        %1006 = vmatprep.subr.mxu0 0.0
        %1007 = vmatpush1.msra.mxu0 0.0
        %1008 = vmatprep.subr.mxu0 0.0
        %1009 = vmatpush1.msra.mxu0 0.0
        %1010 = vmatprep.subr.mxu0 0.0
        %1011 = vmatpush1.msra.mxu0 0.0
        %1012 = vmatprep.subr.mxu0 0.0
        %1013 = vmatpush1.msra.mxu0 0.0
        %1014 = vmatprep.subr.mxu0 0.0
        %1015 = vmatpush1.msra.mxu0 0.0
        %1016 = vmatprep.subr.mxu0 0.0
        %1017 = vmatpush1.msra.mxu0 0.0
        %1018 = vmatprep.subr.mxu0 0.0
        %1019 = vmatpush1.msra.mxu0 0.0
        %1020 = vmatprep.subr.mxu0 0.0
        %1021 = vmatpush1.msra.mxu0 0.0
        %1022 = vmatprep.subr.mxu0 0.0
        %1023 = vmatpush1.msra.mxu0 0.0
        %1024 = vmatprep.subr.mxu0 0.0
        %1025 = vmatpush1.msra.mxu0 0.0
        %1026 = vmatprep.subr.mxu0 0.0
        %1027 = vmatpush1.msra.mxu0 0.0
        %1028 = vmatprep.subr.mxu0 0.0
        %1029 = vmatpush1.msra.mxu0 0.0
        %1030 = vmatprep.subr.mxu0 0.0
        %1031 = vmatpush1.msra.mxu0 0.0
        %1032 = vmatprep.subr.mxu0 0.0
        %1033 = vmatpush1.msra.mxu0 0.0
        %1034 = vmatprep.subr.mxu0 0.0
        %1035 = vmatpush1.msra.mxu0 0.0
        %1036 = vmatprep.subr.mxu0 0.0
        %1037 = vmatpush1.msra.mxu0 0.0
        %1038 = vmatprep.subr.mxu0 0.0
        %1039 = vmatpush1.msra.mxu0 0.0
        %1040 = vmatprep.subr.mxu0 0.0
        %1041 = vmatpush1.msra.mxu0 0.0
        %1042 = vmatprep.subr.mxu0 0.0
        %1043 = vmatpush1.msra.mxu0 0.0
        %1044 = vmatprep.subr.mxu0 0.0
        %1045 = vmatpush1.msra.mxu0 0.0
        %1046 = vmatprep.subr.mxu0 0.0
        %1047 = vmatpush1.msra.mxu0 0.0
        %1048 = vmatprep.subr.mxu0 0.0
        %1049 = vmatpush1.msra.mxu0 0.0
        %1050 = vmatprep.mubr.f32.mxu0 0.0
        %1051 = vmatmul.mubr.f32.gmra.mrb[0].mxu0 %v981
        %v1052 = vpop.f32.mrb[0].mxu0
        %v1053 = vadd.f32 0.0, %v1052
        %v1054 = vpop.f32.mrb[0].mxu0
        %1055 = vmatprep.mubr.f32.mxu0 0.0
        %1056 = vmatmul.mubr.f32.gmra.mrb[0].mxu0 %v984
        %v1057 = vpop.f32.mrb[0].mxu0
        %v1058 = vadd.f32 0.0, %v1057
        %v1059 = vpop.f32.mrb[0].mxu0
        %1060 = vdwg.mxu0
        %v1061 = vmax.f32 %v972, %v1053
        %v1062 = vmax.f32 %v977, %v1058
        %v1063 = vld [vmem:[#allocation5] sm:$0xff]
        %v1064 = vld [vmem:[#allocation5 + $0x8] sm:$0xff]
        %v1065 = vld [vmem:[#allocation5 + $0x10] sm:$0xff]
        %v1066 = vld [vmem:[#allocation5 + $0x18] sm:$0xff]
        %v1067 = vld [vmem:[#allocation5 + $0x20] sm:$0xff]
        %v1068 = vld [vmem:[#allocation5 + $0x28] sm:$0xff]
        %v1069 = vld [vmem:[#allocation5 + $0x30] sm:$0xff]
        %v1070 = vld [vmem:[#allocation5 + $0x38] sm:$0xff]
        %v1071 = vld [vmem:[#allocation7] sm:$0x1]
        %vm1072 = vcmask 1046528
        %v1073 = vrot.slane %v766, 1
        %v1074 = vrot.slane %v767, 1
        %v1075 = vsel %vm1072, %v1073, %v1074
        %v1076 = vrot.slane %v768, 1
        %v1077 = vsel %vm1072, %v1074, %v1076
        %1078 = vrot.lane.b32.xlu0 %v1075, 32
        %v1079 = vpop.permute.xlu0 %1078
        %1080 = vrot.lane.b32.xlu0 %v1077, 32
        %v1081 = vpop.permute.xlu0 %1080
        %1082 = vrot.lane.b32.xlu0 %v1076, 32
        %v1083 = vpop.permute.xlu0 %1082
        %v1087 = vsel %vm780, %v766, %v1079
        %v1088 = vsel %vm780, %v767, %v1081
        %v1089 = vsel %vm780, %v768, %v1083
        %v1091 = vlaneseq
        %v1092 = vshrl.u32 %v1091, 7
        %v1093 = vsub.s32 0, %v1092
        %v1094 = vrot.slane %v1071, %v1093
        %vm1096 = vcmask 523264
        %v1098 = vsel %vm1096, %v1087, 0
        %v1101 = vsel %vm1096, %v1088, 0
        %v1104 = vsel %vm1096, %v1089, 0
        %1106 = vmatprep.subr.mxu0 0.0
        %1107 = vmatpush1.msra.mxu0 %v1063
        %1108 = vmatprep.subr.mxu0 0.0
        %1109 = vmatpush1.msra.mxu0 %v1064
        %1110 = vmatprep.subr.mxu0 0.0
        %1111 = vmatpush1.msra.mxu0 %v1065
        %1112 = vmatprep.subr.mxu0 0.0
        %1113 = vmatpush1.msra.mxu0 %v1066
        %1114 = vmatprep.subr.mxu0 0.0
        %1115 = vmatpush1.msra.mxu0 %v1067
        %1116 = vmatprep.subr.mxu0 0.0
        %1117 = vmatpush1.msra.mxu0 %v1068
        %1118 = vmatprep.subr.mxu0 0.0
        %1119 = vmatpush1.msra.mxu0 %v1069
        %1120 = vmatprep.subr.mxu0 0.0
        %1121 = vmatpush1.msra.mxu0 %v1070
        %1122 = vmatprep.subr.mxu0 0.0
        %1123 = vmatpush1.msra.mxu0 0.0
        %1124 = vmatprep.subr.mxu0 0.0
        %1125 = vmatpush1.msra.mxu0 0.0
        %1126 = vmatprep.subr.mxu0 0.0
        %1127 = vmatpush1.msra.mxu0 0.0
        %1128 = vmatprep.subr.mxu0 0.0
        %1129 = vmatpush1.msra.mxu0 0.0
        %1130 = vmatprep.subr.mxu0 0.0
        %1131 = vmatpush1.msra.mxu0 0.0
        %1132 = vmatprep.subr.mxu0 0.0
        %1133 = vmatpush1.msra.mxu0 0.0
        %1134 = vmatprep.subr.mxu0 0.0
        %1135 = vmatpush1.msra.mxu0 0.0
        %1136 = vmatprep.subr.mxu0 0.0
        %1137 = vmatpush1.msra.mxu0 0.0
        %1138 = vmatprep.subr.mxu0 0.0
        %1139 = vmatpush1.msra.mxu0 0.0
        %1140 = vmatprep.subr.mxu0 0.0
        %1141 = vmatpush1.msra.mxu0 0.0
        %1142 = vmatprep.subr.mxu0 0.0
        %1143 = vmatpush1.msra.mxu0 0.0
        %1144 = vmatprep.subr.mxu0 0.0
        %1145 = vmatpush1.msra.mxu0 0.0
        %1146 = vmatprep.subr.mxu0 0.0
        %1147 = vmatpush1.msra.mxu0 0.0
        %1148 = vmatprep.subr.mxu0 0.0
        %1149 = vmatpush1.msra.mxu0 0.0
        %1150 = vmatprep.subr.mxu0 0.0
        %1151 = vmatpush1.msra.mxu0 0.0
        %1152 = vmatprep.subr.mxu0 0.0
        %1153 = vmatpush1.msra.mxu0 0.0
        %1154 = vmatprep.subr.mxu0 0.0
        %1155 = vmatpush1.msra.mxu0 0.0
        %1156 = vmatprep.subr.mxu0 0.0
        %1157 = vmatpush1.msra.mxu0 0.0
        %1158 = vmatprep.subr.mxu0 0.0
        %1159 = vmatpush1.msra.mxu0 0.0
        %1160 = vmatprep.subr.mxu0 0.0
        %1161 = vmatpush1.msra.mxu0 0.0
        %1162 = vmatprep.subr.mxu0 0.0
        %1163 = vmatpush1.msra.mxu0 0.0
        %1164 = vmatprep.subr.mxu0 0.0
        %1165 = vmatpush1.msra.mxu0 0.0
        %1166 = vmatprep.subr.mxu0 0.0
        %1167 = vmatpush1.msra.mxu0 0.0
        %1168 = vmatprep.subr.mxu0 0.0
        %1169 = vmatpush1.msra.mxu0 0.0
        %1170 = vmatprep.mubr.f32.mxu0 0.0
        %1171 = vmatmul.mubr.f32.gmra.mrb[0].mxu0 %v1098
        %v1172 = vpop.f32.mrb[0].mxu0
        %v1173 = vadd.f32 %v1094, %v1172
        %v1174 = vpop.f32.mrb[0].mxu0
        %1175 = vmatprep.mubr.f32.mxu0 0.0
        %1176 = vmatmul.mubr.f32.gmra.mrb[0].mxu0 %v1101
        %v1177 = vpop.f32.mrb[0].mxu0
        %v1178 = vadd.f32 %v1094, %v1177
        %v1179 = vpop.f32.mrb[0].mxu0
        %1180 = vmatprep.mubr.f32.mxu0 0.0
        %1181 = vmatmul.mubr.f32.gmra.mrb[0].mxu0 %v1104
        %v1182 = vpop.f32.mrb[0].mxu0
        %v1183 = vadd.f32 %v1094, %v1182
        %v1184 = vpop.f32.mrb[0].mxu0
        %1185 = vdwg.mxu0
        %v1186 = vmax.f32 %v1173, 0.0
        %v1187 = vmax.f32 %v1178, 0.0
        %v1188 = vmax.f32 %v1183, 0.0
        %vm1189 = vcmask 154624
        %v1190 = vsel %vm1189, %v884, 0
        %v1192 = vsel %vm1189, %v885, 0
        %vm1194 = vcmask 1042432
        %v1196 = vsel %vm1194, %v1188, 0
        %1198 = vmatprep.subr.mxu0 0.0
        %1199 = vmatpush1.msra.mxu0 %v1186
        %1200 = vmatprep.subr.mxu0 0.0
        %1201 = vmatpush1.msra.mxu0 %v1187
        %1202 = vmatprep.subr.mxu0 0.0
        %1203 = vmatpush1.msra.mxu0 %v1196
        %1204 = vmatprep.subr.mxu0 0.0
        %1205 = vmatpush1.msra.mxu0 0.0
        %1206 = vmatprep.subr.mxu0 0.0
        %1207 = vmatpush1.msra.mxu0 0.0
        %1208 = vmatprep.subr.mxu0 0.0
        %1209 = vmatpush1.msra.mxu0 0.0
        %1210 = vmatprep.subr.mxu0 0.0
        %1211 = vmatpush1.msra.mxu0 0.0
        %1212 = vmatprep.subr.mxu0 0.0
        %1213 = vmatpush1.msra.mxu0 0.0
        %1214 = vmatprep.subr.mxu0 0.0
        %1215 = vmatpush1.msra.mxu0 0.0
        %1216 = vmatprep.subr.mxu0 0.0
        %1217 = vmatpush1.msra.mxu0 0.0
        %1218 = vmatprep.subr.mxu0 0.0
        %1219 = vmatpush1.msra.mxu0 0.0
        %1220 = vmatprep.subr.mxu0 0.0
        %1221 = vmatpush1.msra.mxu0 0.0
        %1222 = vmatprep.subr.mxu0 0.0
        %1223 = vmatpush1.msra.mxu0 0.0
        %1224 = vmatprep.subr.mxu0 0.0
        %1225 = vmatpush1.msra.mxu0 0.0
        %1226 = vmatprep.subr.mxu0 0.0
        %1227 = vmatpush1.msra.mxu0 0.0
        %1228 = vmatprep.subr.mxu0 0.0
        %1229 = vmatpush1.msra.mxu0 0.0
        %1230 = vmatprep.subr.mxu0 0.0
        %1231 = vmatpush1.msra.mxu0 0.0
        %1232 = vmatprep.subr.mxu0 0.0
        %1233 = vmatpush1.msra.mxu0 0.0
        %1234 = vmatprep.subr.mxu0 0.0
        %1235 = vmatpush1.msra.mxu0 0.0
        %1236 = vmatprep.subr.mxu0 0.0
        %1237 = vmatpush1.msra.mxu0 0.0
        %1238 = vmatprep.subr.mxu0 0.0
        %1239 = vmatpush1.msra.mxu0 0.0
        %1240 = vmatprep.subr.mxu0 0.0
        %1241 = vmatpush1.msra.mxu0 0.0
        %1242 = vmatprep.subr.mxu0 0.0
        %1243 = vmatpush1.msra.mxu0 0.0
        %1244 = vmatprep.subr.mxu0 0.0
        %1245 = vmatpush1.msra.mxu0 0.0
        %1246 = vmatprep.subr.mxu0 0.0
        %1247 = vmatpush1.msra.mxu0 0.0
        %1248 = vmatprep.subr.mxu0 0.0
        %1249 = vmatpush1.msra.mxu0 0.0
        %1250 = vmatprep.subr.mxu0 0.0
        %1251 = vmatpush1.msra.mxu0 0.0
        %1252 = vmatprep.subr.mxu0 0.0
        %1253 = vmatpush1.msra.mxu0 0.0
        %1254 = vmatprep.subr.mxu0 0.0
        %1255 = vmatpush1.msra.mxu0 0.0
        %1256 = vmatprep.subr.mxu0 0.0
        %1257 = vmatpush1.msra.mxu0 0.0
        %1258 = vmatprep.subr.mxu0 0.0
        %1259 = vmatpush1.msra.mxu0 0.0
        %1260 = vmatprep.subr.mxu0 0.0
        %1261 = vmatpush1.msra.mxu0 0.0
        %1262 = vmatprep.mubr.f32.mxu0 0.0
        %1263 = vmatmul.mubr.f32.gmra.mrb[0].mxu0 %v1190
        %v1264 = vpop.f32.mrb[0].mxu0
        %v1265 = vadd.f32 0.0, %v1264
        %v1266 = vpop.f32.mrb[0].mxu0
        %1267 = vmatprep.mubr.f32.mxu0 0.0
        %1268 = vmatmul.mubr.f32.gmra.mrb[0].mxu0 %v1192
        %v1269 = vpop.f32.mrb[0].mxu0
        %v1270 = vadd.f32 0.0, %v1269
        %v1271 = vpop.f32.mrb[0].mxu0
        %1272 = vdwg.mxu0
        %v1273 = vsel %vm1189, %v892, 0
        %v1275 = vsel %vm1189, %v893, 0
        %1277 = vmatprep.subr.mxu0 0.0
        %1278 = vmatpush1.msra.mxu0 %v1186
        %1279 = vmatprep.subr.mxu0 0.0
        %1280 = vmatpush1.msra.mxu0 %v1187
        %1281 = vmatprep.subr.mxu0 0.0
        %1282 = vmatpush1.msra.mxu0 %v1196
        %1283 = vmatprep.subr.mxu0 0.0
        %1284 = vmatpush1.msra.mxu0 0.0
        %1285 = vmatprep.subr.mxu0 0.0
        %1286 = vmatpush1.msra.mxu0 0.0
        %1287 = vmatprep.subr.mxu0 0.0
        %1288 = vmatpush1.msra.mxu0 0.0
        %1289 = vmatprep.subr.mxu0 0.0
        %1290 = vmatpush1.msra.mxu0 0.0
        %1291 = vmatprep.subr.mxu0 0.0
        %1292 = vmatpush1.msra.mxu0 0.0
        %1293 = vmatprep.subr.mxu0 0.0
        %1294 = vmatpush1.msra.mxu0 0.0
        %1295 = vmatprep.subr.mxu0 0.0
        %1296 = vmatpush1.msra.mxu0 0.0
        %1297 = vmatprep.subr.mxu0 0.0
        %1298 = vmatpush1.msra.mxu0 0.0
        %1299 = vmatprep.subr.mxu0 0.0
        %1300 = vmatpush1.msra.mxu0 0.0
        %1301 = vmatprep.subr.mxu0 0.0
        %1302 = vmatpush1.msra.mxu0 0.0
        %1303 = vmatprep.subr.mxu0 0.0
        %1304 = vmatpush1.msra.mxu0 0.0
        %1305 = vmatprep.subr.mxu0 0.0
        %1306 = vmatpush1.msra.mxu0 0.0
        %1307 = vmatprep.subr.mxu0 0.0
        %1308 = vmatpush1.msra.mxu0 0.0
        %1309 = vmatprep.subr.mxu0 0.0
        %1310 = vmatpush1.msra.mxu0 0.0
        %1311 = vmatprep.subr.mxu0 0.0
        %1312 = vmatpush1.msra.mxu0 0.0
        %1313 = vmatprep.subr.mxu0 0.0
        %1314 = vmatpush1.msra.mxu0 0.0
        %1315 = vmatprep.subr.mxu0 0.0
        %1316 = vmatpush1.msra.mxu0 0.0
        %1317 = vmatprep.subr.mxu0 0.0
        %1318 = vmatpush1.msra.mxu0 0.0
        %1319 = vmatprep.subr.mxu0 0.0
        %1320 = vmatpush1.msra.mxu0 0.0
        %1321 = vmatprep.subr.mxu0 0.0
        %1322 = vmatpush1.msra.mxu0 0.0
        %1323 = vmatprep.subr.mxu0 0.0
        %1324 = vmatpush1.msra.mxu0 0.0
        %1325 = vmatprep.subr.mxu0 0.0
        %1326 = vmatpush1.msra.mxu0 0.0
        %1327 = vmatprep.subr.mxu0 0.0
        %1328 = vmatpush1.msra.mxu0 0.0
        %1329 = vmatprep.subr.mxu0 0.0
        %1330 = vmatpush1.msra.mxu0 0.0
        %1331 = vmatprep.subr.mxu0 0.0
        %1332 = vmatpush1.msra.mxu0 0.0
        %1333 = vmatprep.subr.mxu0 0.0
        %1334 = vmatpush1.msra.mxu0 0.0
        %1335 = vmatprep.subr.mxu0 0.0
        %1336 = vmatpush1.msra.mxu0 0.0
        %1337 = vmatprep.subr.mxu0 0.0
        %1338 = vmatpush1.msra.mxu0 0.0
        %1339 = vmatprep.subr.mxu0 0.0
        %1340 = vmatpush1.msra.mxu0 0.0
        %1341 = vmatprep.mubr.f32.mxu0 0.0
        %1342 = vmatmul.mubr.f32.gmra.mrb[0].mxu0 %v1273
        %v1343 = vpop.f32.mrb[0].mxu0
        %v1344 = vadd.f32 0.0, %v1343
        %v1345 = vpop.f32.mrb[0].mxu0
        %1346 = vmatprep.mubr.f32.mxu0 0.0
        %1347 = vmatmul.mubr.f32.gmra.mrb[0].mxu0 %v1275
        %v1348 = vpop.f32.mrb[0].mxu0
        %v1349 = vadd.f32 0.0, %v1348
        %v1350 = vpop.f32.mrb[0].mxu0
        %1351 = vdwg.mxu0
        %v1352 = vmax.f32 %v1265, %v1344
        %v1353 = vmax.f32 %v1270, %v1349
        %v1354 = vld [vmem:[#allocation8] sm:$0xff]
        %v1355 = vld [vmem:[#allocation8 + $0x8] sm:$0xff]
        %v1356 = vld [vmem:[#allocation8 + $0x10] sm:$0xff]
        %v1357 = vld [vmem:[#allocation8 + $0x18] sm:$0xff]
        %v1358 = vld [vmem:[#allocation8 + $0x20] sm:$0xff]
        %v1359 = vld [vmem:[#allocation8 + $0x28] sm:$0xff]
        %v1360 = vld [vmem:[#allocation8 + $0x30] sm:$0xff]
        %v1361 = vld [vmem:[#allocation8 + $0x38] sm:$0xff]
        %v1362 = vld [vmem:[#allocation8 + $0x40] sm:$0xff]
        %v1363 = vld [vmem:[#allocation8 + $0x48] sm:$0xff]
        %v1364 = vld [vmem:[#allocation8 + $0x50] sm:$0xff]
        %v1365 = vld [vmem:[#allocation8 + $0x58] sm:$0xff]
        %v1366 = vld [vmem:[#allocation10] sm:$0x1]
        %vm1367 = vcmask 1045504
        %v1368 = vrot.slane %v766, 2
        %v1369 = vrot.slane %v767, 2
        %v1370 = vsel %vm1367, %v1368, %v1369
        %v1371 = vrot.slane %v768, 2
        %v1372 = vsel %vm1367, %v1369, %v1371
        %1373 = vrot.lane.b32.xlu0 %v1370, 64
        %v1374 = vpop.permute.xlu0 %1373
        %1375 = vrot.lane.b32.xlu0 %v1372, 64
        %v1376 = vpop.permute.xlu0 %1375
        %1377 = vrot.lane.b32.xlu0 %v1371, 64
        %v1378 = vpop.permute.xlu0 %1377
        %v1382 = vsel %vm1096, %v1087, %v1374
        %v1383 = vsel %vm1096, %v1088, %v1376
        %v1384 = vsel %vm1096, %v1089, %v1378
        %v1386 = vlaneseq
        %v1387 = vshrl.u32 %v1386, 7
        %v1388 = vsub.s32 0, %v1387
        %v1389 = vrot.slane %v1366, %v1388
        %vm1391 = vcmask 785408
        %v1393 = vsel %vm1391, %v1382, 0
        %v1396 = vsel %vm1391, %v1383, 0
        %v1399 = vsel %vm1391, %v1384, 0
        %1401 = vmatprep.subr.mxu0 0.0
        %1402 = vmatpush1.msra.mxu0 %v1354
        %1403 = vmatprep.subr.mxu0 0.0
        %1404 = vmatpush1.msra.mxu0 %v1355
        %1405 = vmatprep.subr.mxu0 0.0
        %1406 = vmatpush1.msra.mxu0 %v1356
        %1407 = vmatprep.subr.mxu0 0.0
        %1408 = vmatpush1.msra.mxu0 %v1357
        %1409 = vmatprep.subr.mxu0 0.0
        %1410 = vmatpush1.msra.mxu0 %v1358
        %1411 = vmatprep.subr.mxu0 0.0
        %1412 = vmatpush1.msra.mxu0 %v1359
        %1413 = vmatprep.subr.mxu0 0.0
        %1414 = vmatpush1.msra.mxu0 %v1360
        %1415 = vmatprep.subr.mxu0 0.0
        %1416 = vmatpush1.msra.mxu0 %v1361
        %1417 = vmatprep.subr.mxu0 0.0
        %1418 = vmatpush1.msra.mxu0 %v1362
        %1419 = vmatprep.subr.mxu0 0.0
        %1420 = vmatpush1.msra.mxu0 %v1363
        %1421 = vmatprep.subr.mxu0 0.0
        %1422 = vmatpush1.msra.mxu0 %v1364
        %1423 = vmatprep.subr.mxu0 0.0
        %1424 = vmatpush1.msra.mxu0 %v1365
        %1425 = vmatprep.subr.mxu0 0.0
        %1426 = vmatpush1.msra.mxu0 0.0
        %1427 = vmatprep.subr.mxu0 0.0
        %1428 = vmatpush1.msra.mxu0 0.0
        %1429 = vmatprep.subr.mxu0 0.0
        %1430 = vmatpush1.msra.mxu0 0.0
        %1431 = vmatprep.subr.mxu0 0.0
        %1432 = vmatpush1.msra.mxu0 0.0
        %1433 = vmatprep.subr.mxu0 0.0
        %1434 = vmatpush1.msra.mxu0 0.0
        %1435 = vmatprep.subr.mxu0 0.0
        %1436 = vmatpush1.msra.mxu0 0.0
        %1437 = vmatprep.subr.mxu0 0.0
        %1438 = vmatpush1.msra.mxu0 0.0
        %1439 = vmatprep.subr.mxu0 0.0
        %1440 = vmatpush1.msra.mxu0 0.0
        %1441 = vmatprep.subr.mxu0 0.0
        %1442 = vmatpush1.msra.mxu0 0.0
        %1443 = vmatprep.subr.mxu0 0.0
        %1444 = vmatpush1.msra.mxu0 0.0
        %1445 = vmatprep.subr.mxu0 0.0
        %1446 = vmatpush1.msra.mxu0 0.0
        %1447 = vmatprep.subr.mxu0 0.0
        %1448 = vmatpush1.msra.mxu0 0.0
        %1449 = vmatprep.subr.mxu0 0.0
        %1450 = vmatpush1.msra.mxu0 0.0
        %1451 = vmatprep.subr.mxu0 0.0
        %1452 = vmatpush1.msra.mxu0 0.0
        %1453 = vmatprep.subr.mxu0 0.0
        %1454 = vmatpush1.msra.mxu0 0.0
        %1455 = vmatprep.subr.mxu0 0.0
        %1456 = vmatpush1.msra.mxu0 0.0
        %1457 = vmatprep.subr.mxu0 0.0
        %1458 = vmatpush1.msra.mxu0 0.0
        %1459 = vmatprep.subr.mxu0 0.0
        %1460 = vmatpush1.msra.mxu0 0.0
        %1461 = vmatprep.subr.mxu0 0.0
        %1462 = vmatpush1.msra.mxu0 0.0
        %1463 = vmatprep.subr.mxu0 0.0
        %1464 = vmatpush1.msra.mxu0 0.0
        %1465 = vmatprep.mubr.f32.mxu0 0.0
        %1466 = vmatmul.mubr.f32.gmra.mrb[0].mxu0 %v1393
        %v1467 = vpop.f32.mrb[0].mxu0
        %v1468 = vadd.f32 %v1389, %v1467
        %v1469 = vpop.f32.mrb[0].mxu0
        %1470 = vmatprep.mubr.f32.mxu0 0.0
        %1471 = vmatmul.mubr.f32.gmra.mrb[0].mxu0 %v1396
        %v1472 = vpop.f32.mrb[0].mxu0
        %v1473 = vadd.f32 %v1389, %v1472
        %v1474 = vpop.f32.mrb[0].mxu0
        %1475 = vmatprep.mubr.f32.mxu0 0.0
        %1476 = vmatmul.mubr.f32.gmra.mrb[0].mxu0 %v1399
        %v1477 = vpop.f32.mrb[0].mxu0
        %v1478 = vadd.f32 %v1389, %v1477
        %v1479 = vpop.f32.mrb[0].mxu0
        %1480 = vdwg.mxu0
        %v1481 = vmax.f32 %v1468, 0.0
        %v1482 = vmax.f32 %v1473, 0.0
        %v1483 = vmax.f32 %v1478, 0.0
        %vm1484 = vcmask 146432
        %v1485 = vsel %vm1484, %v884, 0
        %v1487 = vsel %vm1484, %v885, 0
        %vm1489 = vcmask 1041408
        %v1491 = vsel %vm1489, %v1483, 0
        %1493 = vmatprep.subr.mxu0 0.0
        %1494 = vmatpush1.msra.mxu0 %v1481
        %1495 = vmatprep.subr.mxu0 0.0
        %1496 = vmatpush1.msra.mxu0 %v1482
        %1497 = vmatprep.subr.mxu0 0.0
        %1498 = vmatpush1.msra.mxu0 %v1491
        %1499 = vmatprep.subr.mxu0 0.0
        %1500 = vmatpush1.msra.mxu0 0.0
        %1501 = vmatprep.subr.mxu0 0.0
        %1502 = vmatpush1.msra.mxu0 0.0
        %1503 = vmatprep.subr.mxu0 0.0
        %1504 = vmatpush1.msra.mxu0 0.0
        %1505 = vmatprep.subr.mxu0 0.0
        %1506 = vmatpush1.msra.mxu0 0.0
        %1507 = vmatprep.subr.mxu0 0.0
        %1508 = vmatpush1.msra.mxu0 0.0
        %1509 = vmatprep.subr.mxu0 0.0
        %1510 = vmatpush1.msra.mxu0 0.0
        %1511 = vmatprep.subr.mxu0 0.0
        %1512 = vmatpush1.msra.mxu0 0.0
        %1513 = vmatprep.subr.mxu0 0.0
        %1514 = vmatpush1.msra.mxu0 0.0
        %1515 = vmatprep.subr.mxu0 0.0
        %1516 = vmatpush1.msra.mxu0 0.0
        %1517 = vmatprep.subr.mxu0 0.0
        %1518 = vmatpush1.msra.mxu0 0.0
        %1519 = vmatprep.subr.mxu0 0.0
        %1520 = vmatpush1.msra.mxu0 0.0
        %1521 = vmatprep.subr.mxu0 0.0
        %1522 = vmatpush1.msra.mxu0 0.0
        %1523 = vmatprep.subr.mxu0 0.0
        %1524 = vmatpush1.msra.mxu0 0.0
        %1525 = vmatprep.subr.mxu0 0.0
        %1526 = vmatpush1.msra.mxu0 0.0
        %1527 = vmatprep.subr.mxu0 0.0
        %1528 = vmatpush1.msra.mxu0 0.0
        %1529 = vmatprep.subr.mxu0 0.0
        %1530 = vmatpush1.msra.mxu0 0.0
        %1531 = vmatprep.subr.mxu0 0.0
        %1532 = vmatpush1.msra.mxu0 0.0
        %1533 = vmatprep.subr.mxu0 0.0
        %1534 = vmatpush1.msra.mxu0 0.0
        %1535 = vmatprep.subr.mxu0 0.0
        %1536 = vmatpush1.msra.mxu0 0.0
        %1537 = vmatprep.subr.mxu0 0.0
        %1538 = vmatpush1.msra.mxu0 0.0
        %1539 = vmatprep.subr.mxu0 0.0
        %1540 = vmatpush1.msra.mxu0 0.0
        %1541 = vmatprep.subr.mxu0 0.0
        %1542 = vmatpush1.msra.mxu0 0.0
        %1543 = vmatprep.subr.mxu0 0.0
        %1544 = vmatpush1.msra.mxu0 0.0
        %1545 = vmatprep.subr.mxu0 0.0
        %1546 = vmatpush1.msra.mxu0 0.0
        %1547 = vmatprep.subr.mxu0 0.0
        %1548 = vmatpush1.msra.mxu0 0.0
        %1549 = vmatprep.subr.mxu0 0.0
        %1550 = vmatpush1.msra.mxu0 0.0
        %1551 = vmatprep.subr.mxu0 0.0
        %1552 = vmatpush1.msra.mxu0 0.0
        %1553 = vmatprep.subr.mxu0 0.0
        %1554 = vmatpush1.msra.mxu0 0.0
        %1555 = vmatprep.subr.mxu0 0.0
        %1556 = vmatpush1.msra.mxu0 0.0
        %1557 = vmatprep.mubr.f32.mxu0 0.0
        %1558 = vmatmul.mubr.f32.gmra.mrb[0].mxu0 %v1485
        %v1559 = vpop.f32.mrb[0].mxu0
        %v1560 = vadd.f32 0.0, %v1559
        %v1561 = vpop.f32.mrb[0].mxu0
        %1562 = vmatprep.mubr.f32.mxu0 0.0
        %1563 = vmatmul.mubr.f32.gmra.mrb[0].mxu0 %v1487
        %v1564 = vpop.f32.mrb[0].mxu0
        %v1565 = vadd.f32 0.0, %v1564
        %v1566 = vpop.f32.mrb[0].mxu0
        %1567 = vdwg.mxu0
        %v1568 = vsel %vm1484, %v892, 0
        %v1570 = vsel %vm1484, %v893, 0
        %1572 = vmatprep.subr.mxu0 0.0
        %1573 = vmatpush1.msra.mxu0 %v1481
        %1574 = vmatprep.subr.mxu0 0.0
        %1575 = vmatpush1.msra.mxu0 %v1482
        %1576 = vmatprep.subr.mxu0 0.0
        %1577 = vmatpush1.msra.mxu0 %v1491
        %1578 = vmatprep.subr.mxu0 0.0
        %1579 = vmatpush1.msra.mxu0 0.0
        %1580 = vmatprep.subr.mxu0 0.0
        %1581 = vmatpush1.msra.mxu0 0.0
        %1582 = vmatprep.subr.mxu0 0.0
        %1583 = vmatpush1.msra.mxu0 0.0
        %1584 = vmatprep.subr.mxu0 0.0
        %1585 = vmatpush1.msra.mxu0 0.0
        %1586 = vmatprep.subr.mxu0 0.0
        %1587 = vmatpush1.msra.mxu0 0.0
        %1588 = vmatprep.subr.mxu0 0.0
        %1589 = vmatpush1.msra.mxu0 0.0
        %1590 = vmatprep.subr.mxu0 0.0
        %1591 = vmatpush1.msra.mxu0 0.0
        %1592 = vmatprep.subr.mxu0 0.0
        %1593 = vmatpush1.msra.mxu0 0.0
        %1594 = vmatprep.subr.mxu0 0.0
        %1595 = vmatpush1.msra.mxu0 0.0
        %1596 = vmatprep.subr.mxu0 0.0
        %1597 = vmatpush1.msra.mxu0 0.0
        %1598 = vmatprep.subr.mxu0 0.0
        %1599 = vmatpush1.msra.mxu0 0.0
        %1600 = vmatprep.subr.mxu0 0.0
        %1601 = vmatpush1.msra.mxu0 0.0
        %1602 = vmatprep.subr.mxu0 0.0
        %1603 = vmatpush1.msra.mxu0 0.0
        %1604 = vmatprep.subr.mxu0 0.0
        %1605 = vmatpush1.msra.mxu0 0.0
        %1606 = vmatprep.subr.mxu0 0.0
        %1607 = vmatpush1.msra.mxu0 0.0
        %1608 = vmatprep.subr.mxu0 0.0
        %1609 = vmatpush1.msra.mxu0 0.0
        %1610 = vmatprep.subr.mxu0 0.0
        %1611 = vmatpush1.msra.mxu0 0.0
        %1612 = vmatprep.subr.mxu0 0.0
        %1613 = vmatpush1.msra.mxu0 0.0
        %1614 = vmatprep.subr.mxu0 0.0
        %1615 = vmatpush1.msra.mxu0 0.0
        %1616 = vmatprep.subr.mxu0 0.0
        %1617 = vmatpush1.msra.mxu0 0.0
        %1618 = vmatprep.subr.mxu0 0.0
        %1619 = vmatpush1.msra.mxu0 0.0
        %1620 = vmatprep.subr.mxu0 0.0
        %1621 = vmatpush1.msra.mxu0 0.0
        %1622 = vmatprep.subr.mxu0 0.0
        %1623 = vmatpush1.msra.mxu0 0.0
        %1624 = vmatprep.subr.mxu0 0.0
        %1625 = vmatpush1.msra.mxu0 0.0
        %1626 = vmatprep.subr.mxu0 0.0
        %1627 = vmatpush1.msra.mxu0 0.0
        %1628 = vmatprep.subr.mxu0 0.0
        %1629 = vmatpush1.msra.mxu0 0.0
        %1630 = vmatprep.subr.mxu0 0.0
        %1631 = vmatpush1.msra.mxu0 0.0
        %1632 = vmatprep.subr.mxu0 0.0
        %1633 = vmatpush1.msra.mxu0 0.0
        %1634 = vmatprep.subr.mxu0 0.0
        %1635 = vmatpush1.msra.mxu0 0.0
        %1636 = vmatprep.mubr.f32.mxu0 0.0
        %1637 = vmatmul.mubr.f32.gmra.mrb[0].mxu0 %v1568
        %v1638 = vpop.f32.mrb[0].mxu0
        %v1639 = vadd.f32 0.0, %v1638
        %v1640 = vpop.f32.mrb[0].mxu0
        %1641 = vmatprep.mubr.f32.mxu0 0.0
        %1642 = vmatmul.mubr.f32.gmra.mrb[0].mxu0 %v1570
        %v1643 = vpop.f32.mrb[0].mxu0
        %v1644 = vadd.f32 0.0, %v1643
        %v1645 = vpop.f32.mrb[0].mxu0
        %1646 = vdwg.mxu0
        %v1647 = vmax.f32 %v1560, %v1639
        %v1648 = vmax.f32 %v1565, %v1644
        %v1649 = vld [vmem:[#allocation11] sm:$0xff]
        %v1650 = vld [vmem:[#allocation11 + $0x8] sm:$0xff]
        %v1651 = vld [vmem:[#allocation11 + $0x10] sm:$0xff]
        %v1652 = vld [vmem:[#allocation11 + $0x18] sm:$0xff]
        %v1653 = vld [vmem:[#allocation11 + $0x20] sm:$0xff]
        %v1654 = vld [vmem:[#allocation11 + $0x28] sm:$0xff]
        %v1655 = vld [vmem:[#allocation11 + $0x30] sm:$0xff]
        %v1656 = vld [vmem:[#allocation11 + $0x38] sm:$0xff]
        %v1657 = vld [vmem:[#allocation11 + $0x40] sm:$0xff]
        %v1658 = vld [vmem:[#allocation11 + $0x48] sm:$0xff]
        %v1659 = vld [vmem:[#allocation11 + $0x50] sm:$0xff]
        %v1660 = vld [vmem:[#allocation11 + $0x58] sm:$0xff]
        %v1661 = vld [vmem:[#allocation11 + $0x60] sm:$0xff]
        %v1662 = vld [vmem:[#allocation11 + $0x68] sm:$0xff]
        %v1663 = vld [vmem:[#allocation11 + $0x70] sm:$0xff]
        %v1664 = vld [vmem:[#allocation11 + $0x78] sm:$0xff]
        %v1665 = vld [vmem:[#allocation13] sm:$0x1]
        %vm1666 = vcmask 1044480
        %v1667 = vrot.slane %v766, 3
        %v1668 = vrot.slane %v767, 3
        %v1669 = vsel %vm1666, %v1667, %v1668
        %v1670 = vrot.slane %v768, 3
        %v1671 = vsel %vm1666, %v1668, %v1670
        %1672 = vrot.lane.b32.xlu0 %v1669, 96
        %v1673 = vpop.permute.xlu0 %1672
        %1674 = vrot.lane.b32.xlu0 %v1671, 96
        %v1675 = vpop.permute.xlu0 %1674
        %1676 = vrot.lane.b32.xlu0 %v1670, 96
        %v1677 = vpop.permute.xlu0 %1676
        %v1681 = vsel %vm1391, %v1382, %v1673
        %v1682 = vsel %vm1391, %v1383, %v1675
        %v1683 = vsel %vm1391, %v1384, %v1677
        %v1685 = vlaneseq
        %v1686 = vshrl.u32 %v1685, 7
        %v1687 = vsub.s32 0, %v1686
        %v1688 = vrot.slane %v1665, %v1687
        %1690 = vmatprep.subr.mxu0 0.0
        %1691 = vmatpush1.msra.mxu0 %v1649
        %1692 = vmatprep.subr.mxu0 0.0
        %1693 = vmatpush1.msra.mxu0 %v1650
        %1694 = vmatprep.subr.mxu0 0.0
        %1695 = vmatpush1.msra.mxu0 %v1651
        %1696 = vmatprep.subr.mxu0 0.0
        %1697 = vmatpush1.msra.mxu0 %v1652
        %1698 = vmatprep.subr.mxu0 0.0
        %1699 = vmatpush1.msra.mxu0 %v1653
        %1700 = vmatprep.subr.mxu0 0.0
        %1701 = vmatpush1.msra.mxu0 %v1654
        %1702 = vmatprep.subr.mxu0 0.0
        %1703 = vmatpush1.msra.mxu0 %v1655
        %1704 = vmatprep.subr.mxu0 0.0
        %1705 = vmatpush1.msra.mxu0 %v1656
        %1706 = vmatprep.subr.mxu0 0.0
        %1707 = vmatpush1.msra.mxu0 %v1657
        %1708 = vmatprep.subr.mxu0 0.0
        %1709 = vmatpush1.msra.mxu0 %v1658
        %1710 = vmatprep.subr.mxu0 0.0
        %1711 = vmatpush1.msra.mxu0 %v1659
        %1712 = vmatprep.subr.mxu0 0.0
        %1713 = vmatpush1.msra.mxu0 %v1660
        %1714 = vmatprep.subr.mxu0 0.0
        %1715 = vmatpush1.msra.mxu0 %v1661
        %1716 = vmatprep.subr.mxu0 0.0
        %1717 = vmatpush1.msra.mxu0 %v1662
        %1718 = vmatprep.subr.mxu0 0.0
        %1719 = vmatpush1.msra.mxu0 %v1663
        %1720 = vmatprep.subr.mxu0 0.0
        %1721 = vmatpush1.msra.mxu0 %v1664
        %1722 = vmatprep.subr.mxu0 0.0
        %1723 = vmatpush1.msra.mxu0 0.0
        %1724 = vmatprep.subr.mxu0 0.0
        %1725 = vmatpush1.msra.mxu0 0.0
        %1726 = vmatprep.subr.mxu0 0.0
        %1727 = vmatpush1.msra.mxu0 0.0
        %1728 = vmatprep.subr.mxu0 0.0
        %1729 = vmatpush1.msra.mxu0 0.0
        %1730 = vmatprep.subr.mxu0 0.0
        %1731 = vmatpush1.msra.mxu0 0.0
        %1732 = vmatprep.subr.mxu0 0.0
        %1733 = vmatpush1.msra.mxu0 0.0
        %1734 = vmatprep.subr.mxu0 0.0
        %1735 = vmatpush1.msra.mxu0 0.0
        %1736 = vmatprep.subr.mxu0 0.0
        %1737 = vmatpush1.msra.mxu0 0.0
        %1738 = vmatprep.subr.mxu0 0.0
        %1739 = vmatpush1.msra.mxu0 0.0
        %1740 = vmatprep.subr.mxu0 0.0
        %1741 = vmatpush1.msra.mxu0 0.0
        %1742 = vmatprep.subr.mxu0 0.0
        %1743 = vmatpush1.msra.mxu0 0.0
        %1744 = vmatprep.subr.mxu0 0.0
        %1745 = vmatpush1.msra.mxu0 0.0
        %1746 = vmatprep.subr.mxu0 0.0
        %1747 = vmatpush1.msra.mxu0 0.0
        %1748 = vmatprep.subr.mxu0 0.0
        %1749 = vmatpush1.msra.mxu0 0.0
        %1750 = vmatprep.subr.mxu0 0.0
        %1751 = vmatpush1.msra.mxu0 0.0
        %1752 = vmatprep.subr.mxu0 0.0
        %1753 = vmatpush1.msra.mxu0 0.0
        %1754 = vmatprep.mubr.f32.mxu0 0.0
        %1755 = vmatmul.mubr.f32.gmra.mrb[0].mxu0 %v1681
        %v1756 = vpop.f32.mrb[0].mxu0
        %v1757 = vadd.f32 %v1688, %v1756
        %v1758 = vpop.f32.mrb[0].mxu0
        %1759 = vmatprep.mubr.f32.mxu0 0.0
        %1760 = vmatmul.mubr.f32.gmra.mrb[0].mxu0 %v1682
        %v1761 = vpop.f32.mrb[0].mxu0
        %v1762 = vadd.f32 %v1688, %v1761
        %v1763 = vpop.f32.mrb[0].mxu0
        %1764 = vmatprep.mubr.f32.mxu0 0.0
        %1765 = vmatmul.mubr.f32.gmra.mrb[0].mxu0 %v1683
        %v1766 = vpop.f32.mrb[0].mxu0
        %v1767 = vadd.f32 %v1688, %v1766
        %v1768 = vpop.f32.mrb[0].mxu0
        %1769 = vdwg.mxu0
        %v1770 = vmax.f32 %v1757, 0.0
        %v1771 = vmax.f32 %v1762, 0.0
        %v1772 = vmax.f32 %v1767, 0.0
        %vm1773 = vcmask 138240
        %v1774 = vsel %vm1773, %v884, 0
        %vm1776 = vcmask 1040384
        %v1778 = vsel %vm1776, %v1772, 0
        %1780 = vmatprep.subr.mxu0 0.0
        %1781 = vmatpush1.msra.mxu0 %v1770
        %1782 = vmatprep.subr.mxu0 0.0
        %1783 = vmatpush1.msra.mxu0 %v1771
        %1784 = vmatprep.subr.mxu0 0.0
        %1785 = vmatpush1.msra.mxu0 %v1778
        %1786 = vmatprep.subr.mxu0 0.0
        %1787 = vmatpush1.msra.mxu0 0.0
        %1788 = vmatprep.subr.mxu0 0.0
        %1789 = vmatpush1.msra.mxu0 0.0
        %1790 = vmatprep.subr.mxu0 0.0
        %1791 = vmatpush1.msra.mxu0 0.0
        %1792 = vmatprep.subr.mxu0 0.0
        %1793 = vmatpush1.msra.mxu0 0.0
        %1794 = vmatprep.subr.mxu0 0.0
        %1795 = vmatpush1.msra.mxu0 0.0
        %1796 = vmatprep.subr.mxu0 0.0
        %1797 = vmatpush1.msra.mxu0 0.0
        %1798 = vmatprep.subr.mxu0 0.0
        %1799 = vmatpush1.msra.mxu0 0.0
        %1800 = vmatprep.subr.mxu0 0.0
        %1801 = vmatpush1.msra.mxu0 0.0
        %1802 = vmatprep.subr.mxu0 0.0
        %1803 = vmatpush1.msra.mxu0 0.0
        %1804 = vmatprep.subr.mxu0 0.0
        %1805 = vmatpush1.msra.mxu0 0.0
        %1806 = vmatprep.subr.mxu0 0.0
        %1807 = vmatpush1.msra.mxu0 0.0
        %1808 = vmatprep.subr.mxu0 0.0
        %1809 = vmatpush1.msra.mxu0 0.0
        %1810 = vmatprep.subr.mxu0 0.0
        %1811 = vmatpush1.msra.mxu0 0.0
        %1812 = vmatprep.subr.mxu0 0.0
        %1813 = vmatpush1.msra.mxu0 0.0
        %1814 = vmatprep.subr.mxu0 0.0
        %1815 = vmatpush1.msra.mxu0 0.0
        %1816 = vmatprep.subr.mxu0 0.0
        %1817 = vmatpush1.msra.mxu0 0.0
        %1818 = vmatprep.subr.mxu0 0.0
        %1819 = vmatpush1.msra.mxu0 0.0
        %1820 = vmatprep.subr.mxu0 0.0
        %1821 = vmatpush1.msra.mxu0 0.0
        %1822 = vmatprep.subr.mxu0 0.0
        %1823 = vmatpush1.msra.mxu0 0.0
        %1824 = vmatprep.subr.mxu0 0.0
        %1825 = vmatpush1.msra.mxu0 0.0
        %1826 = vmatprep.subr.mxu0 0.0
        %1827 = vmatpush1.msra.mxu0 0.0
        %1828 = vmatprep.subr.mxu0 0.0
        %1829 = vmatpush1.msra.mxu0 0.0
        %1830 = vmatprep.subr.mxu0 0.0
        %1831 = vmatpush1.msra.mxu0 0.0
        %1832 = vmatprep.subr.mxu0 0.0
        %1833 = vmatpush1.msra.mxu0 0.0
        %1834 = vmatprep.subr.mxu0 0.0
        %1835 = vmatpush1.msra.mxu0 0.0
        %1836 = vmatprep.subr.mxu0 0.0
        %1837 = vmatpush1.msra.mxu0 0.0
        %1838 = vmatprep.subr.mxu0 0.0
        %1839 = vmatpush1.msra.mxu0 0.0
        %1840 = vmatprep.subr.mxu0 0.0
        %1841 = vmatpush1.msra.mxu0 0.0
        %1842 = vmatprep.subr.mxu0 0.0
        %1843 = vmatpush1.msra.mxu0 0.0
        %1844 = vmatprep.mubr.f32.mxu0 0.0
        %1845 = vmatmul.mubr.f32.gmra.mrb[0].mxu0 %v1774
        %v1846 = vpop.f32.mrb[0].mxu0
        %v1847 = vadd.f32 0.0, %v1846
        %v1848 = vpop.f32.mrb[0].mxu0
        %1849 = vdwg.mxu0
        %v1850 = vsel %vm1773, %v892, 0
        %1852 = vmatprep.subr.mxu0 0.0
        %1853 = vmatpush1.msra.mxu0 %v1770
        %1854 = vmatprep.subr.mxu0 0.0
        %1855 = vmatpush1.msra.mxu0 %v1771
        %1856 = vmatprep.subr.mxu0 0.0
        %1857 = vmatpush1.msra.mxu0 %v1778
        %1858 = vmatprep.subr.mxu0 0.0
        %1859 = vmatpush1.msra.mxu0 0.0
        %1860 = vmatprep.subr.mxu0 0.0
        %1861 = vmatpush1.msra.mxu0 0.0
        %1862 = vmatprep.subr.mxu0 0.0
        %1863 = vmatpush1.msra.mxu0 0.0
        %1864 = vmatprep.subr.mxu0 0.0
        %1865 = vmatpush1.msra.mxu0 0.0
        %1866 = vmatprep.subr.mxu0 0.0
        %1867 = vmatpush1.msra.mxu0 0.0
        %1868 = vmatprep.subr.mxu0 0.0
        %1869 = vmatpush1.msra.mxu0 0.0
        %1870 = vmatprep.subr.mxu0 0.0
        %1871 = vmatpush1.msra.mxu0 0.0
        %1872 = vmatprep.subr.mxu0 0.0
        %1873 = vmatpush1.msra.mxu0 0.0
        %1874 = vmatprep.subr.mxu0 0.0
        %1875 = vmatpush1.msra.mxu0 0.0
        %1876 = vmatprep.subr.mxu0 0.0
        %1877 = vmatpush1.msra.mxu0 0.0
        %1878 = vmatprep.subr.mxu0 0.0
        %1879 = vmatpush1.msra.mxu0 0.0
        %1880 = vmatprep.subr.mxu0 0.0
        %1881 = vmatpush1.msra.mxu0 0.0
        %1882 = vmatprep.subr.mxu0 0.0
        %1883 = vmatpush1.msra.mxu0 0.0
        %1884 = vmatprep.subr.mxu0 0.0
        %1885 = vmatpush1.msra.mxu0 0.0
        %1886 = vmatprep.subr.mxu0 0.0
        %1887 = vmatpush1.msra.mxu0 0.0
        %1888 = vmatprep.subr.mxu0 0.0
        %1889 = vmatpush1.msra.mxu0 0.0
        %1890 = vmatprep.subr.mxu0 0.0
        %1891 = vmatpush1.msra.mxu0 0.0
        %1892 = vmatprep.subr.mxu0 0.0
        %1893 = vmatpush1.msra.mxu0 0.0
        %1894 = vmatprep.subr.mxu0 0.0
        %1895 = vmatpush1.msra.mxu0 0.0
        %1896 = vmatprep.subr.mxu0 0.0
        %1897 = vmatpush1.msra.mxu0 0.0
        %1898 = vmatprep.subr.mxu0 0.0
        %1899 = vmatpush1.msra.mxu0 0.0
        %1900 = vmatprep.subr.mxu0 0.0
        %1901 = vmatpush1.msra.mxu0 0.0
        %1902 = vmatprep.subr.mxu0 0.0
        %1903 = vmatpush1.msra.mxu0 0.0
        %1904 = vmatprep.subr.mxu0 0.0
        %1905 = vmatpush1.msra.mxu0 0.0
        %1906 = vmatprep.subr.mxu0 0.0
        %1907 = vmatpush1.msra.mxu0 0.0
        %1908 = vmatprep.subr.mxu0 0.0
        %1909 = vmatpush1.msra.mxu0 0.0
        %1910 = vmatprep.subr.mxu0 0.0
        %1911 = vmatpush1.msra.mxu0 0.0
        %1912 = vmatprep.subr.mxu0 0.0
        %1913 = vmatpush1.msra.mxu0 0.0
        %1914 = vmatprep.subr.mxu0 0.0
        %1915 = vmatpush1.msra.mxu0 0.0
        %1916 = vmatprep.mubr.f32.mxu0 0.0
        %1917 = vmatmul.mubr.f32.gmra.mrb[0].mxu0 %v1850
        %v1918 = vpop.f32.mrb[0].mxu0
        %v1919 = vadd.f32 0.0, %v1918
        %v1920 = vpop.f32.mrb[0].mxu0
        %1921 = vdwg.mxu0
        %v1922 = vmax.f32 %v1847, %v1919
        %v1923 = vld [vmem:[%s9] sm:$0xff]
        %v1924 = vld [vmem:[%s9 + $0x8] sm:$0xff]
        %v1925 = vld [vmem:[%s9 + $0x10] sm:$0xff]
        %v1926 = vld [vmem:[%s9 + $0x18] sm:$0xff]
        %v1927 = vld [vmem:[%s9 + $0x20] sm:$0xff]
        %v1928 = vld [vmem:[%s9 + $0x28] sm:$0xff]
        %v1929 = vld [vmem:[%s9 + $0x30] sm:$0xff]
        %v1930 = vld [vmem:[%s9 + $0x38] sm:$0xff]
        %v1931 = vld [vmem:[%s9 + $0x40] sm:$0xff]
        %v1932 = vld [vmem:[%s9 + $0x48] sm:$0xff]
        %v1933 = vld [vmem:[%s9 + $0x50] sm:$0xff]
        %v1934 = vld [vmem:[%s9 + $0x58] sm:$0xff]
        %v1935 = vld [vmem:[%s9 + $0x60] sm:$0xff]
        %v1936 = vld [vmem:[%s9 + $0x68] sm:$0xff]
        %v1937 = vld [vmem:[%s9 + $0x70] sm:$0xff]
        %v1938 = vld [vmem:[%s9 + $0x78] sm:$0xff]
        %v1939 = vld [vmem:[%s9 + $0x80] sm:$0xff]
        %v1940 = vld [vmem:[%s9 + $0x88] sm:$0xff]
        %v1941 = vld [vmem:[%s9 + $0x90] sm:$0xff]
        %v1942 = vld [vmem:[%s9 + $0x98] sm:$0xff]
        %v1943 = vld [vmem:[#allocation14] sm:$0x1]
        %v1944 = vrot.slane %v766, 4
        %v1945 = vrot.slane %v767, 4
        %v1946 = vsel %vm901, %v1944, %v1945
        %v1947 = vrot.slane %v768, 4
        %v1948 = vsel %vm901, %v1945, %v1947
        %v1950 = vlaneseq
        %v1951 = vshrl.u32 %v1950, 7
        %v1952 = vsub.s32 0, %v1951
        %v1953 = vrot.slane %v1943, %v1952
        %v1955 = vsel %vm780, %v1946, 0
        %v1957 = vsel %vm780, %v1948, 0
        %1959 = vmatprep.subr.mxu0 0.0
        %1960 = vmatpush1.msra.mxu0 %v1923
        %1961 = vmatprep.subr.mxu0 0.0
        %1962 = vmatpush1.msra.mxu0 %v1924
        %1963 = vmatprep.subr.mxu0 0.0
        %1964 = vmatpush1.msra.mxu0 %v1925
        %1965 = vmatprep.subr.mxu0 0.0
        %1966 = vmatpush1.msra.mxu0 %v1926
        %1967 = vmatprep.subr.mxu0 0.0
        %1968 = vmatpush1.msra.mxu0 %v1927
        %1969 = vmatprep.subr.mxu0 0.0
        %1970 = vmatpush1.msra.mxu0 %v1928
        %1971 = vmatprep.subr.mxu0 0.0
        %1972 = vmatpush1.msra.mxu0 %v1929
        %1973 = vmatprep.subr.mxu0 0.0
        %1974 = vmatpush1.msra.mxu0 %v1930
        %1975 = vmatprep.subr.mxu0 0.0
        %1976 = vmatpush1.msra.mxu0 %v1931
        %1977 = vmatprep.subr.mxu0 0.0
        %1978 = vmatpush1.msra.mxu0 %v1932
        %1979 = vmatprep.subr.mxu0 0.0
        %1980 = vmatpush1.msra.mxu0 %v1933
        %1981 = vmatprep.subr.mxu0 0.0
        %1982 = vmatpush1.msra.mxu0 %v1934
        %1983 = vmatprep.subr.mxu0 0.0
        %1984 = vmatpush1.msra.mxu0 %v1935
        %1985 = vmatprep.subr.mxu0 0.0
        %1986 = vmatpush1.msra.mxu0 %v1936
        %1987 = vmatprep.subr.mxu0 0.0
        %1988 = vmatpush1.msra.mxu0 %v1937
        %1989 = vmatprep.subr.mxu0 0.0
        %1990 = vmatpush1.msra.mxu0 %v1938
        %1991 = vmatprep.subr.mxu0 0.0
        %1992 = vmatpush1.msra.mxu0 %v1939
        %1993 = vmatprep.subr.mxu0 0.0
        %1994 = vmatpush1.msra.mxu0 %v1940
        %1995 = vmatprep.subr.mxu0 0.0
        %1996 = vmatpush1.msra.mxu0 %v1941
        %1997 = vmatprep.subr.mxu0 0.0
        %1998 = vmatpush1.msra.mxu0 %v1942
        %1999 = vmatprep.subr.mxu0 0.0
        %2000 = vmatpush1.msra.mxu0 0.0
        %2001 = vmatprep.subr.mxu0 0.0
        %2002 = vmatpush1.msra.mxu0 0.0
        %2003 = vmatprep.subr.mxu0 0.0
        %2004 = vmatpush1.msra.mxu0 0.0
        %2005 = vmatprep.subr.mxu0 0.0
        %2006 = vmatpush1.msra.mxu0 0.0
        %2007 = vmatprep.subr.mxu0 0.0
        %2008 = vmatpush1.msra.mxu0 0.0
        %2009 = vmatprep.subr.mxu0 0.0
        %2010 = vmatpush1.msra.mxu0 0.0
        %2011 = vmatprep.subr.mxu0 0.0
        %2012 = vmatpush1.msra.mxu0 0.0
        %2013 = vmatprep.subr.mxu0 0.0
        %2014 = vmatpush1.msra.mxu0 0.0
        %2015 = vmatprep.subr.mxu0 0.0
        %2016 = vmatpush1.msra.mxu0 0.0
        %2017 = vmatprep.subr.mxu0 0.0
        %2018 = vmatpush1.msra.mxu0 0.0
        %2019 = vmatprep.subr.mxu0 0.0
        %2020 = vmatpush1.msra.mxu0 0.0
        %2021 = vmatprep.subr.mxu0 0.0
        %2022 = vmatpush1.msra.mxu0 0.0
        %2023 = vmatprep.mubr.f32.mxu0 %v1955
        %2024 = vmatmul.mubr.f32.gmra.mrb[0].mxu0 %v1681
        %v2025 = vpop.f32.mrb[0].mxu0
        %v2026 = vadd.f32 %v1953, %v2025
        %v2027 = vpop.f32.mrb[0].mxu0
        %2028 = vmatprep.mubr.f32.mxu0 %v1957
        %2029 = vmatmul.mubr.f32.gmra.mrb[0].mxu0 %v1682
        %v2030 = vpop.f32.mrb[0].mxu0
        %v2031 = vadd.f32 %v1953, %v2030
        %v2032 = vpop.f32.mrb[0].mxu0
        %2033 = vdwg.mxu0
        %v2034 = vmax.f32 %v2026, 0.0
        %v2035 = vmax.f32 %v2031, 0.0
        %vm2036 = vcmask 130048
        %v2037 = vsel %vm2036, %v884, 0
        %2039 = vmatprep.subr.mxu0 0.0
        %2040 = vmatpush1.msra.mxu0 %v2034
        %2041 = vmatprep.subr.mxu0 0.0
        %2042 = vmatpush1.msra.mxu0 %v2035
        %2043 = vmatprep.subr.mxu0 0.0
        %2044 = vmatpush1.msra.mxu0 0.0
        %2045 = vmatprep.subr.mxu0 0.0
        %2046 = vmatpush1.msra.mxu0 0.0
        %2047 = vmatprep.subr.mxu0 0.0
        %2048 = vmatpush1.msra.mxu0 0.0
        %2049 = vmatprep.subr.mxu0 0.0
        %2050 = vmatpush1.msra.mxu0 0.0
        %2051 = vmatprep.subr.mxu0 0.0
        %2052 = vmatpush1.msra.mxu0 0.0
        %2053 = vmatprep.subr.mxu0 0.0
        %2054 = vmatpush1.msra.mxu0 0.0
        %2055 = vmatprep.subr.mxu0 0.0
        %2056 = vmatpush1.msra.mxu0 0.0
        %2057 = vmatprep.subr.mxu0 0.0
        %2058 = vmatpush1.msra.mxu0 0.0
        %2059 = vmatprep.subr.mxu0 0.0
        %2060 = vmatpush1.msra.mxu0 0.0
        %2061 = vmatprep.subr.mxu0 0.0
        %2062 = vmatpush1.msra.mxu0 0.0
        %2063 = vmatprep.subr.mxu0 0.0
        %2064 = vmatpush1.msra.mxu0 0.0
        %2065 = vmatprep.subr.mxu0 0.0
        %2066 = vmatpush1.msra.mxu0 0.0
        %2067 = vmatprep.subr.mxu0 0.0
        %2068 = vmatpush1.msra.mxu0 0.0
        %2069 = vmatprep.subr.mxu0 0.0
        %2070 = vmatpush1.msra.mxu0 0.0
        %2071 = vmatprep.subr.mxu0 0.0
        %2072 = vmatpush1.msra.mxu0 0.0
        %2073 = vmatprep.subr.mxu0 0.0
        %2074 = vmatpush1.msra.mxu0 0.0
        %2075 = vmatprep.subr.mxu0 0.0
        %2076 = vmatpush1.msra.mxu0 0.0
        %2077 = vmatprep.subr.mxu0 0.0
        %2078 = vmatpush1.msra.mxu0 0.0
        %2079 = vmatprep.subr.mxu0 0.0
        %2080 = vmatpush1.msra.mxu0 0.0
        %2081 = vmatprep.subr.mxu0 0.0
        %2082 = vmatpush1.msra.mxu0 0.0
        %2083 = vmatprep.subr.mxu0 0.0
        %2084 = vmatpush1.msra.mxu0 0.0
        %2085 = vmatprep.subr.mxu0 0.0
        %2086 = vmatpush1.msra.mxu0 0.0
        %2087 = vmatprep.subr.mxu0 0.0
        %2088 = vmatpush1.msra.mxu0 0.0
        %2089 = vmatprep.subr.mxu0 0.0
        %2090 = vmatpush1.msra.mxu0 0.0
        %2091 = vmatprep.subr.mxu0 0.0
        %2092 = vmatpush1.msra.mxu0 0.0
        %2093 = vmatprep.subr.mxu0 0.0
        %2094 = vmatpush1.msra.mxu0 0.0
        %2095 = vmatprep.subr.mxu0 0.0
        %2096 = vmatpush1.msra.mxu0 0.0
        %2097 = vmatprep.subr.mxu0 0.0
        %2098 = vmatpush1.msra.mxu0 0.0
        %2099 = vmatprep.subr.mxu0 0.0
        %2100 = vmatpush1.msra.mxu0 0.0
        %2101 = vmatprep.subr.mxu0 0.0
        %2102 = vmatpush1.msra.mxu0 0.0
        %2103 = vmatprep.mubr.f32.mxu0 0.0
        %2104 = vmatmul.mubr.f32.gmra.mrb[0].mxu0 %v2037
        %v2105 = vpop.f32.mrb[0].mxu0
        %v2106 = vadd.f32 0.0, %v2105
        %v2107 = vpop.f32.mrb[0].mxu0
        %2108 = vdwg.mxu0
        %v2109 = vsel %vm2036, %v892, 0
        %2111 = vmatprep.subr.mxu0 0.0
        %2112 = vmatpush1.msra.mxu0 %v2034
        %2113 = vmatprep.subr.mxu0 0.0
        %2114 = vmatpush1.msra.mxu0 %v2035
        %2115 = vmatprep.subr.mxu0 0.0
        %2116 = vmatpush1.msra.mxu0 0.0
        %2117 = vmatprep.subr.mxu0 0.0
        %2118 = vmatpush1.msra.mxu0 0.0
        %2119 = vmatprep.subr.mxu0 0.0
        %2120 = vmatpush1.msra.mxu0 0.0
        %2121 = vmatprep.subr.mxu0 0.0
        %2122 = vmatpush1.msra.mxu0 0.0
        %2123 = vmatprep.subr.mxu0 0.0
        %2124 = vmatpush1.msra.mxu0 0.0
        %2125 = vmatprep.subr.mxu0 0.0
        %2126 = vmatpush1.msra.mxu0 0.0
        %2127 = vmatprep.subr.mxu0 0.0
        %2128 = vmatpush1.msra.mxu0 0.0
        %2129 = vmatprep.subr.mxu0 0.0
        %2130 = vmatpush1.msra.mxu0 0.0
        %2131 = vmatprep.subr.mxu0 0.0
        %2132 = vmatpush1.msra.mxu0 0.0
        %2133 = vmatprep.subr.mxu0 0.0
        %2134 = vmatpush1.msra.mxu0 0.0
        %2135 = vmatprep.subr.mxu0 0.0
        %2136 = vmatpush1.msra.mxu0 0.0
        %2137 = vmatprep.subr.mxu0 0.0
        %2138 = vmatpush1.msra.mxu0 0.0
        %2139 = vmatprep.subr.mxu0 0.0
        %2140 = vmatpush1.msra.mxu0 0.0
        %2141 = vmatprep.subr.mxu0 0.0
        %2142 = vmatpush1.msra.mxu0 0.0
        %2143 = vmatprep.subr.mxu0 0.0
        %2144 = vmatpush1.msra.mxu0 0.0
        %2145 = vmatprep.subr.mxu0 0.0
        %2146 = vmatpush1.msra.mxu0 0.0
        %2147 = vmatprep.subr.mxu0 0.0
        %2148 = vmatpush1.msra.mxu0 0.0
        %2149 = vmatprep.subr.mxu0 0.0
        %2150 = vmatpush1.msra.mxu0 0.0
        %2151 = vmatprep.subr.mxu0 0.0
        %2152 = vmatpush1.msra.mxu0 0.0
        %2153 = vmatprep.subr.mxu0 0.0
        %2154 = vmatpush1.msra.mxu0 0.0
        %2155 = vmatprep.subr.mxu0 0.0
        %2156 = vmatpush1.msra.mxu0 0.0
        %2157 = vmatprep.subr.mxu0 0.0
        %2158 = vmatpush1.msra.mxu0 0.0
        %2159 = vmatprep.subr.mxu0 0.0
        %2160 = vmatpush1.msra.mxu0 0.0
        %2161 = vmatprep.subr.mxu0 0.0
        %2162 = vmatpush1.msra.mxu0 0.0
        %2163 = vmatprep.subr.mxu0 0.0
        %2164 = vmatpush1.msra.mxu0 0.0
        %2165 = vmatprep.subr.mxu0 0.0
        %2166 = vmatpush1.msra.mxu0 0.0
        %2167 = vmatprep.subr.mxu0 0.0
        %2168 = vmatpush1.msra.mxu0 0.0
        %2169 = vmatprep.subr.mxu0 0.0
        %2170 = vmatpush1.msra.mxu0 0.0
        %2171 = vmatprep.subr.mxu0 0.0
        %2172 = vmatpush1.msra.mxu0 0.0
        %2173 = vmatprep.subr.mxu0 0.0
        %2174 = vmatpush1.msra.mxu0 0.0
        %2175 = vmatprep.mubr.f32.mxu0 0.0
        %2176 = vmatmul.mubr.f32.gmra.mrb[0].mxu0 %v2109
        %v2177 = vpop.f32.mrb[0].mxu0
        %v2178 = vadd.f32 0.0, %v2177
        %v2179 = vpop.f32.mrb[0].mxu0
        %2180 = vdwg.mxu0
        %v2181 = vmax.f32 %v2106, %v2178
        %v2184 = vrot.slane %v1352, 6
        %v2185 = vrot.slane %v1353, 6
        %v2186 = vsel %vm1489, %v2184, %v2185
        %v2191 = vrot.slane %v1647, 5
        %v2192 = vrot.slane %v1648, 5
        %v2193 = vsel %vm1194, %v2191, %v2192
        %v2197 = vrot.slane %v1922, 4
        %v2200 = vrot.slane %v2181, 4
        %v2202 = vsel %vm1489, %v1062, %v2184
        %v2203 = vsel %vm1194, %v2186, %v2191
        %v2204 = vsel %vm901, %v2193, %v2197
        %v2205 = vsel %vm901, %v2197, %v2200
        %v2206 = vld [vmem:[#allocation16] sm:$0xff]
        %v2207 = vld [vmem:[#allocation16 + $0x8] sm:$0xff]
        %v2208 = vld [vmem:[#allocation16 + $0x10] sm:$0xff]
        %v2209 = vld [vmem:[#allocation16 + $0x18] sm:$0xff]
        %v2210 = vld [vmem:[#allocation16 + $0x20] sm:$0xff]
        %v2211 = vld [vmem:[#allocation16 + $0x28] sm:$0xff]
        %v2212 = vld [vmem:[#allocation16 + $0x30] sm:$0xff]
        %v2213 = vld [vmem:[#allocation16 + $0x38] sm:$0xff]
        %v2214 = vld [vmem:[#allocation16 + $0x40] sm:$0xff]
        %v2215 = vld [vmem:[#allocation16 + $0x48] sm:$0xff]
        %v2216 = vld [vmem:[#allocation16 + $0x50] sm:$0xff]
        %v2217 = vld [vmem:[#allocation16 + $0x58] sm:$0xff]
        %v2218 = vld [vmem:[#allocation16 + $0x60] sm:$0xff]
        %v2219 = vld [vmem:[#allocation16 + $0x68] sm:$0xff]
        %v2220 = vld [vmem:[#allocation16 + $0x70] sm:$0xff]
        %v2221 = vld [vmem:[#allocation16 + $0x78] sm:$0xff]
        %v2222 = vld [vmem:[#allocation16 + $0x80] sm:$0xff]
        %v2223 = vld [vmem:[#allocation16 + $0x88] sm:$0xff]
        %v2224 = vld [vmem:[#allocation16 + $0x90] sm:$0xff]
        %v2225 = vld [vmem:[#allocation16 + $0x98] sm:$0xff]
        %v2226 = vld [vmem:[#allocation16 + $0xa0] sm:$0xff]
        %v2227 = vld [vmem:[#allocation16 + $0xa8] sm:$0xff]
        %v2228 = vld [vmem:[#allocation16 + $0xb0] sm:$0xff]
        %v2229 = vld [vmem:[#allocation16 + $0xb8] sm:$0xff]
        %v2230 = vld [vmem:[#allocation16 + $0xc0] sm:$0xff]
        %v2231 = vld [vmem:[#allocation16 + $0xc8] sm:$0xff]
        %v2232 = vld [vmem:[#allocation16 + $0xd0] sm:$0xff]
        %v2233 = vld [vmem:[#allocation16 + $0xd8] sm:$0xff]
        %v2234 = vld [vmem:[#allocation16 + $0xe0] sm:$0xff]
        %v2235 = vld [vmem:[#allocation16 + $0xe8] sm:$0xff]
        %v2236 = vld [vmem:[#allocation16 + $0xf0] sm:$0xff]
        %v2237 = vld [vmem:[#allocation16 + $0xf8] sm:$0xff]
        %v2238 = vld [vmem:[#allocation16 + $0x100] sm:$0xff]
        %v2239 = vld [vmem:[#allocation16 + $0x108] sm:$0xff]
        %v2240 = vld [vmem:[#allocation16 + $0x110] sm:$0xff]
        %v2241 = vld [vmem:[#allocation16 + $0x118] sm:$0xff]
        %v2242 = vld [vmem:[#allocation16 + $0x120] sm:$0xff]
        %v2243 = vld [vmem:[#allocation16 + $0x128] sm:$0xff]
        %v2244 = vld [vmem:[#allocation16 + $0x130] sm:$0xff]
        %v2245 = vld [vmem:[#allocation16 + $0x138] sm:$0xff]
        %v2246 = vld [vmem:[#allocation16 + $0x140] sm:$0xff]
        %v2247 = vld [vmem:[#allocation16 + $0x148] sm:$0xff]
        %v2248 = vld [vmem:[#allocation16 + $0x150] sm:$0xff]
        %v2249 = vld [vmem:[#allocation16 + $0x158] sm:$0xff]
        %v2250 = vld [vmem:[#allocation16 + $0x160] sm:$0xff]
        %v2251 = vld [vmem:[#allocation16 + $0x168] sm:$0xff]
        %v2252 = vld [vmem:[#allocation16 + $0x170] sm:$0xff]
        %v2253 = vld [vmem:[#allocation16 + $0x178] sm:$0xff]
        %v2254 = vld [vmem:[#allocation17] sm:$0x1]
        %v2260 = vrot.slane %v1061, 1
        %v2261 = vrot.slane %v2202, 1
        %v2262 = vsel %vm1072, %v2260, %v2261
        %v2263 = vrot.slane %v2203, 1
        %v2264 = vsel %vm1072, %v2261, %v2263
        %v2265 = vrot.slane %v2204, 1
        %v2266 = vsel %vm1072, %v2263, %v2265
        %v2267 = vrot.slane %v2205, 1
        %v2268 = vsel %vm1072, %v2265, %v2267
        %v2269 = vrot.slane %v2200, 1
        %v2270 = vsel %vm1072, %v2267, %v2269
        %v2277 = vrot.slane %v1061, 2
        %v2278 = vrot.slane %v2202, 2
        %v2279 = vsel %vm1367, %v2277, %v2278
        %v2280 = vrot.slane %v2203, 2
        %v2281 = vsel %vm1367, %v2278, %v2280
        %v2282 = vrot.slane %v2204, 2
        %v2283 = vsel %vm1367, %v2280, %v2282
        %v2284 = vrot.slane %v2205, 2
        %v2285 = vsel %vm1367, %v2282, %v2284
        %v2286 = vrot.slane %v2200, 2
        %v2287 = vsel %vm1367, %v2284, %v2286
        %v2295 = vlaneseq
        %v2296 = vshrl.u32 %v2295, 7
        %v2297 = vsub.s32 0, %v2296
        %v2298 = vrot.slane %v2254, %v2297
        %2300 = vmatprep.subr.mxu0 0.0
        %2301 = vmatpush1.msra.mxu0 %v2206
        %2302 = vmatprep.subr.mxu0 0.0
        %2303 = vmatpush1.msra.mxu0 %v2207
        %2304 = vmatprep.subr.mxu0 0.0
        %2305 = vmatpush1.msra.mxu0 %v2208
        %2306 = vmatprep.subr.mxu0 0.0
        %2307 = vmatpush1.msra.mxu0 %v2209
        %2308 = vmatprep.subr.mxu0 0.0
        %2309 = vmatpush1.msra.mxu0 %v2210
        %2310 = vmatprep.subr.mxu0 0.0
        %2311 = vmatpush1.msra.mxu0 %v2211
        %2312 = vmatprep.subr.mxu0 0.0
        %2313 = vmatpush1.msra.mxu0 %v2212
        %2314 = vmatprep.subr.mxu0 0.0
        %2315 = vmatpush1.msra.mxu0 %v2213
        %2316 = vmatprep.subr.mxu0 0.0
        %2317 = vmatpush1.msra.mxu0 %v2214
        %2318 = vmatprep.subr.mxu0 0.0
        %2319 = vmatpush1.msra.mxu0 %v2215
        %2320 = vmatprep.subr.mxu0 0.0
        %2321 = vmatpush1.msra.mxu0 %v2216
        %2322 = vmatprep.subr.mxu0 0.0
        %2323 = vmatpush1.msra.mxu0 %v2217
        %2324 = vmatprep.subr.mxu0 0.0
        %2325 = vmatpush1.msra.mxu0 %v2218
        %2326 = vmatprep.subr.mxu0 0.0
        %2327 = vmatpush1.msra.mxu0 %v2219
        %2328 = vmatprep.subr.mxu0 0.0
        %2329 = vmatpush1.msra.mxu0 %v2220
        %2330 = vmatprep.subr.mxu0 0.0
        %2331 = vmatpush1.msra.mxu0 %v2221
        %2332 = vmatprep.subr.mxu0 0.0
        %2333 = vmatpush1.msra.mxu0 %v2222
        %2334 = vmatprep.subr.mxu0 0.0
        %2335 = vmatpush1.msra.mxu0 %v2223
        %2336 = vmatprep.subr.mxu0 0.0
        %2337 = vmatpush1.msra.mxu0 %v2224
        %2338 = vmatprep.subr.mxu0 0.0
        %2339 = vmatpush1.msra.mxu0 %v2225
        %2340 = vmatprep.subr.mxu0 0.0
        %2341 = vmatpush1.msra.mxu0 %v2226
        %2342 = vmatprep.subr.mxu0 0.0
        %2343 = vmatpush1.msra.mxu0 %v2227
        %2344 = vmatprep.subr.mxu0 0.0
        %2345 = vmatpush1.msra.mxu0 %v2228
        %2346 = vmatprep.subr.mxu0 0.0
        %2347 = vmatpush1.msra.mxu0 %v2229
        %2348 = vmatprep.subr.mxu0 0.0
        %2349 = vmatpush1.msra.mxu0 %v2230
        %2350 = vmatprep.subr.mxu0 0.0
        %2351 = vmatpush1.msra.mxu0 %v2231
        %2352 = vmatprep.subr.mxu0 0.0
        %2353 = vmatpush1.msra.mxu0 %v2232
        %2354 = vmatprep.subr.mxu0 0.0
        %2355 = vmatpush1.msra.mxu0 %v2233
        %2356 = vmatprep.subr.mxu0 0.0
        %2357 = vmatpush1.msra.mxu0 %v2234
        %2358 = vmatprep.subr.mxu0 0.0
        %2359 = vmatpush1.msra.mxu0 %v2235
        %2360 = vmatprep.subr.mxu0 0.0
        %2361 = vmatpush1.msra.mxu0 %v2236
        %2362 = vmatprep.subr.mxu0 0.0
        %2363 = vmatpush1.msra.mxu0 %v2237
        %2364 = vmatprep.mubr.f32.mxu0 %v2262
        %2365 = vmatmul.mubr.f32.gmra.mrb[0].mxu0 %v1061
        %v2366 = vpop.f32.mrb[0].mxu0
        %v2367 = vadd.f32 %v2298, %v2366
        %v2368 = vpop.f32.mrb[0].mxu0
        %2369 = vmatprep.mubr.f32.mxu0 %v2264
        %2370 = vmatmul.mubr.f32.gmra.mrb[0].mxu0 %v2202
        %v2371 = vpop.f32.mrb[0].mxu0
        %v2372 = vadd.f32 %v2298, %v2371
        %v2373 = vpop.f32.mrb[0].mxu0
        %2374 = vmatprep.mubr.f32.mxu0 %v2266
        %2375 = vmatmul.mubr.f32.gmra.mrb[0].mxu0 %v2203
        %v2376 = vpop.f32.mrb[0].mxu0
        %v2377 = vadd.f32 %v2298, %v2376
        %v2378 = vpop.f32.mrb[0].mxu0
        %2379 = vmatprep.mubr.f32.mxu0 %v2268
        %2380 = vmatmul.mubr.f32.gmra.mrb[0].mxu0 %v2204
        %v2381 = vpop.f32.mrb[0].mxu0
        %v2382 = vadd.f32 %v2298, %v2381
        %v2383 = vpop.f32.mrb[0].mxu0
        %2384 = vmatprep.mubr.f32.mxu0 %v2270
        %2385 = vmatmul.mubr.f32.gmra.mrb[0].mxu0 %v2205
        %v2386 = vpop.f32.mrb[0].mxu0
        %v2387 = vadd.f32 %v2298, %v2386
        %v2388 = vpop.f32.mrb[0].mxu0
        %2389 = vmatprep.mubr.f32.mxu0 %v2269
        %2390 = vmatmul.mubr.f32.gmra.mrb[0].mxu0 %v2200
        %v2391 = vpop.f32.mrb[0].mxu0
        %v2392 = vadd.f32 %v2298, %v2391
        %v2393 = vpop.f32.mrb[0].mxu0
        %2394 = vdwg.mxu0
        %2395 = vmatprep.subr.mxu0 0.0
        %2396 = vmatpush1.msra.mxu0 %v2238
        %2397 = vmatprep.subr.mxu0 0.0
        %2398 = vmatpush1.msra.mxu0 %v2239
        %2399 = vmatprep.subr.mxu0 0.0
        %2400 = vmatpush1.msra.mxu0 %v2240
        %2401 = vmatprep.subr.mxu0 0.0
        %2402 = vmatpush1.msra.mxu0 %v2241
        %2403 = vmatprep.subr.mxu0 0.0
        %2404 = vmatpush1.msra.mxu0 %v2242
        %2405 = vmatprep.subr.mxu0 0.0
        %2406 = vmatpush1.msra.mxu0 %v2243
        %2407 = vmatprep.subr.mxu0 0.0
        %2408 = vmatpush1.msra.mxu0 %v2244
        %2409 = vmatprep.subr.mxu0 0.0
        %2410 = vmatpush1.msra.mxu0 %v2245
        %2411 = vmatprep.subr.mxu0 0.0
        %2412 = vmatpush1.msra.mxu0 %v2246
        %2413 = vmatprep.subr.mxu0 0.0
        %2414 = vmatpush1.msra.mxu0 %v2247
        %2415 = vmatprep.subr.mxu0 0.0
        %2416 = vmatpush1.msra.mxu0 %v2248
        %2417 = vmatprep.subr.mxu0 0.0
        %2418 = vmatpush1.msra.mxu0 %v2249
        %2419 = vmatprep.subr.mxu0 0.0
        %2420 = vmatpush1.msra.mxu0 %v2250
        %2421 = vmatprep.subr.mxu0 0.0
        %2422 = vmatpush1.msra.mxu0 %v2251
        %2423 = vmatprep.subr.mxu0 0.0
        %2424 = vmatpush1.msra.mxu0 %v2252
        %2425 = vmatprep.subr.mxu0 0.0
        %2426 = vmatpush1.msra.mxu0 %v2253
        %2427 = vmatprep.subr.mxu0 0.0
        %2428 = vmatpush1.msra.mxu0 0.0
        %2429 = vmatprep.subr.mxu0 0.0
        %2430 = vmatpush1.msra.mxu0 0.0
        %2431 = vmatprep.subr.mxu0 0.0
        %2432 = vmatpush1.msra.mxu0 0.0
        %2433 = vmatprep.subr.mxu0 0.0
        %2434 = vmatpush1.msra.mxu0 0.0
        %2435 = vmatprep.subr.mxu0 0.0
        %2436 = vmatpush1.msra.mxu0 0.0
        %2437 = vmatprep.subr.mxu0 0.0
        %2438 = vmatpush1.msra.mxu0 0.0
        %2439 = vmatprep.subr.mxu0 0.0
        %2440 = vmatpush1.msra.mxu0 0.0
        %2441 = vmatprep.subr.mxu0 0.0
        %2442 = vmatpush1.msra.mxu0 0.0
        %2443 = vmatprep.subr.mxu0 0.0
        %2444 = vmatpush1.msra.mxu0 0.0
        %2445 = vmatprep.subr.mxu0 0.0
        %2446 = vmatpush1.msra.mxu0 0.0
        %2447 = vmatprep.subr.mxu0 0.0
        %2448 = vmatpush1.msra.mxu0 0.0
        %2449 = vmatprep.subr.mxu0 0.0
        %2450 = vmatpush1.msra.mxu0 0.0
        %2451 = vmatprep.subr.mxu0 0.0
        %2452 = vmatpush1.msra.mxu0 0.0
        %2453 = vmatprep.subr.mxu0 0.0
        %2454 = vmatpush1.msra.mxu0 0.0
        %2455 = vmatprep.subr.mxu0 0.0
        %2456 = vmatpush1.msra.mxu0 0.0
        %2457 = vmatprep.subr.mxu0 0.0
        %2458 = vmatpush1.msra.mxu0 0.0
        %2459 = vmatprep.mubr.f32.mxu0 0.0
        %2460 = vmatmul.mubr.f32.gmra.mrb[0].mxu0 %v2279
        %v2461 = vpop.f32.mrb[0].mxu0
        %v2462 = vadd.f32 %v2367, %v2461
        %v2463 = vpop.f32.mrb[0].mxu0
        %2464 = vmatprep.mubr.f32.mxu0 0.0
        %2465 = vmatmul.mubr.f32.gmra.mrb[0].mxu0 %v2281
        %v2466 = vpop.f32.mrb[0].mxu0
        %v2467 = vadd.f32 %v2372, %v2466
        %v2468 = vpop.f32.mrb[0].mxu0
        %2469 = vmatprep.mubr.f32.mxu0 0.0
        %2470 = vmatmul.mubr.f32.gmra.mrb[0].mxu0 %v2283
        %v2471 = vpop.f32.mrb[0].mxu0
        %v2472 = vadd.f32 %v2377, %v2471
        %v2473 = vpop.f32.mrb[0].mxu0
        %2474 = vmatprep.mubr.f32.mxu0 0.0
        %2475 = vmatmul.mubr.f32.gmra.mrb[0].mxu0 %v2285
        %v2476 = vpop.f32.mrb[0].mxu0
        %v2477 = vadd.f32 %v2382, %v2476
        %v2478 = vpop.f32.mrb[0].mxu0
        %2479 = vmatprep.mubr.f32.mxu0 0.0
        %2480 = vmatmul.mubr.f32.gmra.mrb[0].mxu0 %v2287
        %v2481 = vpop.f32.mrb[0].mxu0
        %v2482 = vadd.f32 %v2387, %v2481
        %v2483 = vpop.f32.mrb[0].mxu0
        %2484 = vmatprep.mubr.f32.mxu0 0.0
        %2485 = vmatmul.mubr.f32.gmra.mrb[0].mxu0 %v2286
        %v2486 = vpop.f32.mrb[0].mxu0
        %v2487 = vadd.f32 %v2392, %v2486
        %v2488 = vpop.f32.mrb[0].mxu0
        %2489 = vdwg.mxu0
        %v2490 = vmax.f32 %v2462, 0.0
        %v2491 = vmax.f32 %v2467, 0.0
        %v2492 = vmax.f32 %v2472, 0.0
        %v2493 = vmax.f32 %v2477, 0.0
        %v2494 = vmax.f32 %v2482, 0.0
        %v2495 = vmax.f32 %v2487, 0.0
        %v2496 = vadd.s32 %v874, 16
        %v2497 = vmul.u32 %v2496, 2
        %vm2498 = vcmp.eq.s32.totalorder %v877, %v2497
        %v2499 = vsel %vm2498, 1, 0
        %v2500 = vcvt.s32.f32 %v2499
        %v2501 = vadd.s32 %v2497, 1
        %vm2502 = vcmp.eq.s32.totalorder %v877, %v2501
        %v2503 = vsel %vm2502, 1, 0
        %v2504 = vcvt.s32.f32 %v2503
        %vm2505 = vcmask 343040
        %v2506 = vsel %vm2505, %v884, 0
        %v2508 = vsel %vm2505, %v885, 0
        %v2511 = vsel %vm2505, %v2500, 0
        %v2514 = vsel %vm1489, %v2495, 0
        %2516 = vmatprep.subr.mxu0 0.0
        %2517 = vmatpush1.msra.mxu0 %v2490
        %2518 = vmatprep.subr.mxu0 0.0
        %2519 = vmatpush1.msra.mxu0 %v2491
        %2520 = vmatprep.subr.mxu0 0.0
        %2521 = vmatpush1.msra.mxu0 %v2492
        %2522 = vmatprep.subr.mxu0 0.0
        %2523 = vmatpush1.msra.mxu0 %v2493
        %2524 = vmatprep.subr.mxu0 0.0
        %2525 = vmatpush1.msra.mxu0 %v2494
        %2526 = vmatprep.subr.mxu0 0.0
        %2527 = vmatpush1.msra.mxu0 %v2514
        %2528 = vmatprep.subr.mxu0 0.0
        %2529 = vmatpush1.msra.mxu0 0.0
        %2530 = vmatprep.subr.mxu0 0.0
        %2531 = vmatpush1.msra.mxu0 0.0
        %2532 = vmatprep.subr.mxu0 0.0
        %2533 = vmatpush1.msra.mxu0 0.0
        %2534 = vmatprep.subr.mxu0 0.0
        %2535 = vmatpush1.msra.mxu0 0.0
        %2536 = vmatprep.subr.mxu0 0.0
        %2537 = vmatpush1.msra.mxu0 0.0
        %2538 = vmatprep.subr.mxu0 0.0
        %2539 = vmatpush1.msra.mxu0 0.0
        %2540 = vmatprep.subr.mxu0 0.0
        %2541 = vmatpush1.msra.mxu0 0.0
        %2542 = vmatprep.subr.mxu0 0.0
        %2543 = vmatpush1.msra.mxu0 0.0
        %2544 = vmatprep.subr.mxu0 0.0
        %2545 = vmatpush1.msra.mxu0 0.0
        %2546 = vmatprep.subr.mxu0 0.0
        %2547 = vmatpush1.msra.mxu0 0.0
        %2548 = vmatprep.subr.mxu0 0.0
        %2549 = vmatpush1.msra.mxu0 0.0
        %2550 = vmatprep.subr.mxu0 0.0
        %2551 = vmatpush1.msra.mxu0 0.0
        %2552 = vmatprep.subr.mxu0 0.0
        %2553 = vmatpush1.msra.mxu0 0.0
        %2554 = vmatprep.subr.mxu0 0.0
        %2555 = vmatpush1.msra.mxu0 0.0
        %2556 = vmatprep.subr.mxu0 0.0
        %2557 = vmatpush1.msra.mxu0 0.0
        %2558 = vmatprep.subr.mxu0 0.0
        %2559 = vmatpush1.msra.mxu0 0.0
        %2560 = vmatprep.subr.mxu0 0.0
        %2561 = vmatpush1.msra.mxu0 0.0
        %2562 = vmatprep.subr.mxu0 0.0
        %2563 = vmatpush1.msra.mxu0 0.0
        %2564 = vmatprep.subr.mxu0 0.0
        %2565 = vmatpush1.msra.mxu0 0.0
        %2566 = vmatprep.subr.mxu0 0.0
        %2567 = vmatpush1.msra.mxu0 0.0
        %2568 = vmatprep.subr.mxu0 0.0
        %2569 = vmatpush1.msra.mxu0 0.0
        %2570 = vmatprep.subr.mxu0 0.0
        %2571 = vmatpush1.msra.mxu0 0.0
        %2572 = vmatprep.subr.mxu0 0.0
        %2573 = vmatpush1.msra.mxu0 0.0
        %2574 = vmatprep.subr.mxu0 0.0
        %2575 = vmatpush1.msra.mxu0 0.0
        %2576 = vmatprep.subr.mxu0 0.0
        %2577 = vmatpush1.msra.mxu0 0.0
        %2578 = vmatprep.subr.mxu0 0.0
        %2579 = vmatpush1.msra.mxu0 0.0
        %2580 = vmatprep.mubr.f32.mxu0 0.0
        %2581 = vmatmul.mubr.f32.gmra.mrb[0].mxu0 %v2506
        %v2582 = vpop.f32.mrb[0].mxu0
        %v2583 = vadd.f32 0.0, %v2582
        %v2584 = vpop.f32.mrb[0].mxu0
        %2585 = vmatprep.mubr.f32.mxu0 0.0
        %2586 = vmatmul.mubr.f32.gmra.mrb[0].mxu0 %v2508
        %v2587 = vpop.f32.mrb[0].mxu0
        %v2588 = vadd.f32 0.0, %v2587
        %v2589 = vpop.f32.mrb[0].mxu0
        %2590 = vmatprep.mubr.f32.mxu0 0.0
        %2591 = vmatmul.mubr.f32.gmra.mrb[0].mxu0 %v2511
        %v2592 = vpop.f32.mrb[0].mxu0
        %v2593 = vadd.f32 0.0, %v2592
        %v2594 = vpop.f32.mrb[0].mxu0
        %2595 = vdwg.mxu0
        %v2596 = vsel %vm2505, %v892, 0
        %v2598 = vsel %vm2505, %v893, 0
        %v2601 = vsel %vm2505, %v2504, 0
        %2603 = vmatprep.subr.mxu0 0.0
        %2604 = vmatpush1.msra.mxu0 %v2490
        %2605 = vmatprep.subr.mxu0 0.0
        %2606 = vmatpush1.msra.mxu0 %v2491
        %2607 = vmatprep.subr.mxu0 0.0
        %2608 = vmatpush1.msra.mxu0 %v2492
        %2609 = vmatprep.subr.mxu0 0.0
        %2610 = vmatpush1.msra.mxu0 %v2493
        %2611 = vmatprep.subr.mxu0 0.0
        %2612 = vmatpush1.msra.mxu0 %v2494
        %2613 = vmatprep.subr.mxu0 0.0
        %2614 = vmatpush1.msra.mxu0 %v2514
        %2615 = vmatprep.subr.mxu0 0.0
        %2616 = vmatpush1.msra.mxu0 0.0
        %2617 = vmatprep.subr.mxu0 0.0
        %2618 = vmatpush1.msra.mxu0 0.0
        %2619 = vmatprep.subr.mxu0 0.0
        %2620 = vmatpush1.msra.mxu0 0.0
        %2621 = vmatprep.subr.mxu0 0.0
        %2622 = vmatpush1.msra.mxu0 0.0
        %2623 = vmatprep.subr.mxu0 0.0
        %2624 = vmatpush1.msra.mxu0 0.0
        %2625 = vmatprep.subr.mxu0 0.0
        %2626 = vmatpush1.msra.mxu0 0.0
        %2627 = vmatprep.subr.mxu0 0.0
        %2628 = vmatpush1.msra.mxu0 0.0
        %2629 = vmatprep.subr.mxu0 0.0
        %2630 = vmatpush1.msra.mxu0 0.0
        %2631 = vmatprep.subr.mxu0 0.0
        %2632 = vmatpush1.msra.mxu0 0.0
        %2633 = vmatprep.subr.mxu0 0.0
        %2634 = vmatpush1.msra.mxu0 0.0
        %2635 = vmatprep.subr.mxu0 0.0
        %2636 = vmatpush1.msra.mxu0 0.0
        %2637 = vmatprep.subr.mxu0 0.0
        %2638 = vmatpush1.msra.mxu0 0.0
        %2639 = vmatprep.subr.mxu0 0.0
        %2640 = vmatpush1.msra.mxu0 0.0
        %2641 = vmatprep.subr.mxu0 0.0
        %2642 = vmatpush1.msra.mxu0 0.0
        %2643 = vmatprep.subr.mxu0 0.0
        %2644 = vmatpush1.msra.mxu0 0.0
        %2645 = vmatprep.subr.mxu0 0.0
        %2646 = vmatpush1.msra.mxu0 0.0
        %2647 = vmatprep.subr.mxu0 0.0
        %2648 = vmatpush1.msra.mxu0 0.0
        %2649 = vmatprep.subr.mxu0 0.0
        %2650 = vmatpush1.msra.mxu0 0.0
        %2651 = vmatprep.subr.mxu0 0.0
        %2652 = vmatpush1.msra.mxu0 0.0
        %2653 = vmatprep.subr.mxu0 0.0
        %2654 = vmatpush1.msra.mxu0 0.0
        %2655 = vmatprep.subr.mxu0 0.0
        %2656 = vmatpush1.msra.mxu0 0.0
        %2657 = vmatprep.subr.mxu0 0.0
        %2658 = vmatpush1.msra.mxu0 0.0
        %2659 = vmatprep.subr.mxu0 0.0
        %2660 = vmatpush1.msra.mxu0 0.0
        %2661 = vmatprep.subr.mxu0 0.0
        %2662 = vmatpush1.msra.mxu0 0.0
        %2663 = vmatprep.subr.mxu0 0.0
        %2664 = vmatpush1.msra.mxu0 0.0
        %2665 = vmatprep.subr.mxu0 0.0
        %2666 = vmatpush1.msra.mxu0 0.0
        %2667 = vmatprep.mubr.f32.mxu0 0.0
        %2668 = vmatmul.mubr.f32.gmra.mrb[0].mxu0 %v2596
        %v2669 = vpop.f32.mrb[0].mxu0
        %v2670 = vadd.f32 0.0, %v2669
        %v2671 = vpop.f32.mrb[0].mxu0
        %2672 = vmatprep.mubr.f32.mxu0 0.0
        %2673 = vmatmul.mubr.f32.gmra.mrb[0].mxu0 %v2598
        %v2674 = vpop.f32.mrb[0].mxu0
        %v2675 = vadd.f32 0.0, %v2674
        %v2676 = vpop.f32.mrb[0].mxu0
        %2677 = vmatprep.mubr.f32.mxu0 0.0
        %2678 = vmatmul.mubr.f32.gmra.mrb[0].mxu0 %v2601
        %v2679 = vpop.f32.mrb[0].mxu0
        %v2680 = vadd.f32 0.0, %v2679
        %v2681 = vpop.f32.mrb[0].mxu0
        %2682 = vdwg.mxu0
        %v2683 = vmax.f32 %v2583, %v2670
        %v2684 = vmax.f32 %v2588, %v2675
        %v2685 = vmax.f32 %v2593, %v2680
        %v2686 = vld [vmem:[#allocation19] sm:$0xff]
        %v2687 = vld [vmem:[#allocation19 + $0x8] sm:$0xff]
        %v2688 = vld [vmem:[#allocation19 + $0x10] sm:$0xff]
        %v2689 = vld [vmem:[#allocation19 + $0x18] sm:$0xff]
        %v2690 = vld [vmem:[#allocation19 + $0x20] sm:$0xff]
        %v2691 = vld [vmem:[#allocation19 + $0x28] sm:$0xff]
        %v2692 = vld [vmem:[#allocation19 + $0x30] sm:$0xff]
        %v2693 = vld [vmem:[#allocation19 + $0x38] sm:$0xff]
        %v2694 = vld [vmem:[#allocation19 + $0x40] sm:$0xff]
        %v2695 = vld [vmem:[#allocation19 + $0x48] sm:$0xff]
        %v2696 = vld [vmem:[#allocation19 + $0x50] sm:$0xff]
        %v2697 = vld [vmem:[#allocation19 + $0x58] sm:$0xff]
        %v2698 = vld [vmem:[#allocation19 + $0x60] sm:$0xff]
        %v2699 = vld [vmem:[#allocation19 + $0x68] sm:$0xff]
        %v2700 = vld [vmem:[#allocation19 + $0x70] sm:$0xff]
        %v2701 = vld [vmem:[#allocation19 + $0x78] sm:$0xff]
        %v2702 = vld [vmem:[#allocation19 + $0x80] sm:$0xff]
        %v2703 = vld [vmem:[#allocation19 + $0x88] sm:$0xff]
        %v2704 = vld [vmem:[#allocation19 + $0x90] sm:$0xff]
        %v2705 = vld [vmem:[#allocation19 + $0x98] sm:$0xff]
        %v2706 = vld [vmem:[#allocation19 + $0xa0] sm:$0xff]
        %v2707 = vld [vmem:[#allocation19 + $0xa8] sm:$0xff]
        %v2708 = vld [vmem:[#allocation19 + $0xb0] sm:$0xff]
        %v2709 = vld [vmem:[#allocation19 + $0xb8] sm:$0xff]
        %v2710 = vld [vmem:[#allocation19 + $0xc0] sm:$0xff]
        %v2711 = vld [vmem:[#allocation19 + $0xc8] sm:$0xff]
        %v2712 = vld [vmem:[#allocation19 + $0xd0] sm:$0xff]
        %v2713 = vld [vmem:[#allocation19 + $0xd8] sm:$0xff]
        %v2714 = vld [vmem:[#allocation19 + $0xe0] sm:$0xff]
        %v2715 = vld [vmem:[#allocation19 + $0xe8] sm:$0xff]
        %v2716 = vld [vmem:[#allocation19 + $0xf0] sm:$0xff]
        %v2717 = vld [vmem:[#allocation19 + $0xf8] sm:$0xff]
        %v2718 = vld [vmem:[#allocation19 + $0x100] sm:$0xff]
        %v2719 = vld [vmem:[#allocation19 + $0x108] sm:$0xff]
        %v2720 = vld [vmem:[#allocation19 + $0x110] sm:$0xff]
        %v2721 = vld [vmem:[#allocation19 + $0x118] sm:$0xff]
        %v2722 = vld [vmem:[#allocation19 + $0x120] sm:$0xff]
        %v2723 = vld [vmem:[#allocation19 + $0x128] sm:$0xff]
        %v2724 = vld [vmem:[#allocation19 + $0x130] sm:$0xff]
        %v2725 = vld [vmem:[#allocation19 + $0x138] sm:$0xff]
        %v2726 = vld [vmem:[#allocation19 + $0x140] sm:$0xff]
        %v2727 = vld [vmem:[#allocation19 + $0x148] sm:$0xff]
        %v2728 = vld [vmem:[#allocation19 + $0x150] sm:$0xff]
        %v2729 = vld [vmem:[#allocation19 + $0x158] sm:$0xff]
        %v2730 = vld [vmem:[#allocation19 + $0x160] sm:$0xff]
        %v2731 = vld [vmem:[#allocation19 + $0x168] sm:$0xff]
        %v2732 = vld [vmem:[#allocation19 + $0x170] sm:$0xff]
        %v2733 = vld [vmem:[#allocation19 + $0x178] sm:$0xff]
        %v2734 = vld [vmem:[#allocation20] sm:$0x1]
        %v2738 = vrot.slane %v2683, 1
        %v2739 = vrot.slane %v2684, 1
        %v2740 = vsel %vm1072, %v2738, %v2739
        %v2741 = vrot.slane %v2685, 1
        %v2742 = vsel %vm1072, %v2739, %v2741
        %v2746 = vrot.slane %v2683, 2
        %v2747 = vrot.slane %v2684, 2
        %v2748 = vsel %vm1367, %v2746, %v2747
        %v2749 = vrot.slane %v2685, 2
        %v2750 = vsel %vm1367, %v2747, %v2749
        %v2755 = vlaneseq
        %v2756 = vshrl.u32 %v2755, 7
        %v2757 = vsub.s32 0, %v2756
        %v2758 = vrot.slane %v2734, %v2757
        %2760 = vmatprep.subr.mxu0 0.0
        %2761 = vmatpush1.msra.mxu0 %v2686
        %2762 = vmatprep.subr.mxu0 0.0
        %2763 = vmatpush1.msra.mxu0 %v2687
        %2764 = vmatprep.subr.mxu0 0.0
        %2765 = vmatpush1.msra.mxu0 %v2688
        %2766 = vmatprep.subr.mxu0 0.0
        %2767 = vmatpush1.msra.mxu0 %v2689
        %2768 = vmatprep.subr.mxu0 0.0
        %2769 = vmatpush1.msra.mxu0 %v2690
        %2770 = vmatprep.subr.mxu0 0.0
        %2771 = vmatpush1.msra.mxu0 %v2691
        %2772 = vmatprep.subr.mxu0 0.0
        %2773 = vmatpush1.msra.mxu0 %v2692
        %2774 = vmatprep.subr.mxu0 0.0
        %2775 = vmatpush1.msra.mxu0 %v2693
        %2776 = vmatprep.subr.mxu0 0.0
        %2777 = vmatpush1.msra.mxu0 %v2694
        %2778 = vmatprep.subr.mxu0 0.0
        %2779 = vmatpush1.msra.mxu0 %v2695
        %2780 = vmatprep.subr.mxu0 0.0
        %2781 = vmatpush1.msra.mxu0 %v2696
        %2782 = vmatprep.subr.mxu0 0.0
        %2783 = vmatpush1.msra.mxu0 %v2697
        %2784 = vmatprep.subr.mxu0 0.0
        %2785 = vmatpush1.msra.mxu0 %v2698
        %2786 = vmatprep.subr.mxu0 0.0
        %2787 = vmatpush1.msra.mxu0 %v2699
        %2788 = vmatprep.subr.mxu0 0.0
        %2789 = vmatpush1.msra.mxu0 %v2700
        %2790 = vmatprep.subr.mxu0 0.0
        %2791 = vmatpush1.msra.mxu0 %v2701
        %2792 = vmatprep.subr.mxu0 0.0
        %2793 = vmatpush1.msra.mxu0 %v2702
        %2794 = vmatprep.subr.mxu0 0.0
        %2795 = vmatpush1.msra.mxu0 %v2703
        %2796 = vmatprep.subr.mxu0 0.0
        %2797 = vmatpush1.msra.mxu0 %v2704
        %2798 = vmatprep.subr.mxu0 0.0
        %2799 = vmatpush1.msra.mxu0 %v2705
        %2800 = vmatprep.subr.mxu0 0.0
        %2801 = vmatpush1.msra.mxu0 %v2706
        %2802 = vmatprep.subr.mxu0 0.0
        %2803 = vmatpush1.msra.mxu0 %v2707
        %2804 = vmatprep.subr.mxu0 0.0
        %2805 = vmatpush1.msra.mxu0 %v2708
        %2806 = vmatprep.subr.mxu0 0.0
        %2807 = vmatpush1.msra.mxu0 %v2709
        %2808 = vmatprep.subr.mxu0 0.0
        %2809 = vmatpush1.msra.mxu0 %v2710
        %2810 = vmatprep.subr.mxu0 0.0
        %2811 = vmatpush1.msra.mxu0 %v2711
        %2812 = vmatprep.subr.mxu0 0.0
        %2813 = vmatpush1.msra.mxu0 %v2712
        %2814 = vmatprep.subr.mxu0 0.0
        %2815 = vmatpush1.msra.mxu0 %v2713
        %2816 = vmatprep.subr.mxu0 0.0
        %2817 = vmatpush1.msra.mxu0 %v2714
        %2818 = vmatprep.subr.mxu0 0.0
        %2819 = vmatpush1.msra.mxu0 %v2715
        %2820 = vmatprep.subr.mxu0 0.0
        %2821 = vmatpush1.msra.mxu0 %v2716
        %2822 = vmatprep.subr.mxu0 0.0
        %2823 = vmatpush1.msra.mxu0 %v2717
        %2824 = vmatprep.mubr.f32.mxu0 %v2740
        %2825 = vmatmul.mubr.f32.gmra.mrb[0].mxu0 %v2683
        %v2826 = vpop.f32.mrb[0].mxu0
        %v2827 = vadd.f32 %v2758, %v2826
        %v2828 = vpop.f32.mrb[0].mxu0
        %2829 = vmatprep.mubr.f32.mxu0 %v2742
        %2830 = vmatmul.mubr.f32.gmra.mrb[0].mxu0 %v2684
        %v2831 = vpop.f32.mrb[0].mxu0
        %v2832 = vadd.f32 %v2758, %v2831
        %v2833 = vpop.f32.mrb[0].mxu0
        %2834 = vmatprep.mubr.f32.mxu0 %v2741
        %2835 = vmatmul.mubr.f32.gmra.mrb[0].mxu0 %v2685
        %v2836 = vpop.f32.mrb[0].mxu0
        %v2837 = vadd.f32 %v2758, %v2836
        %v2838 = vpop.f32.mrb[0].mxu0
        %2839 = vdwg.mxu0
        %2840 = vmatprep.subr.mxu0 0.0
        %2841 = vmatpush1.msra.mxu0 %v2718
        %2842 = vmatprep.subr.mxu0 0.0
        %2843 = vmatpush1.msra.mxu0 %v2719
        %2844 = vmatprep.subr.mxu0 0.0
        %2845 = vmatpush1.msra.mxu0 %v2720
        %2846 = vmatprep.subr.mxu0 0.0
        %2847 = vmatpush1.msra.mxu0 %v2721
        %2848 = vmatprep.subr.mxu0 0.0
        %2849 = vmatpush1.msra.mxu0 %v2722
        %2850 = vmatprep.subr.mxu0 0.0
        %2851 = vmatpush1.msra.mxu0 %v2723
        %2852 = vmatprep.subr.mxu0 0.0
        %2853 = vmatpush1.msra.mxu0 %v2724
        %2854 = vmatprep.subr.mxu0 0.0
        %2855 = vmatpush1.msra.mxu0 %v2725
        %2856 = vmatprep.subr.mxu0 0.0
        %2857 = vmatpush1.msra.mxu0 %v2726
        %2858 = vmatprep.subr.mxu0 0.0
        %2859 = vmatpush1.msra.mxu0 %v2727
        %2860 = vmatprep.subr.mxu0 0.0
        %2861 = vmatpush1.msra.mxu0 %v2728
        %2862 = vmatprep.subr.mxu0 0.0
        %2863 = vmatpush1.msra.mxu0 %v2729
        %2864 = vmatprep.subr.mxu0 0.0
        %2865 = vmatpush1.msra.mxu0 %v2730
        %2866 = vmatprep.subr.mxu0 0.0
        %2867 = vmatpush1.msra.mxu0 %v2731
        %2868 = vmatprep.subr.mxu0 0.0
        %2869 = vmatpush1.msra.mxu0 %v2732
        %2870 = vmatprep.subr.mxu0 0.0
        %2871 = vmatpush1.msra.mxu0 %v2733
        %2872 = vmatprep.subr.mxu0 0.0
        %2873 = vmatpush1.msra.mxu0 0.0
        %2874 = vmatprep.subr.mxu0 0.0
        %2875 = vmatpush1.msra.mxu0 0.0
        %2876 = vmatprep.subr.mxu0 0.0
        %2877 = vmatpush1.msra.mxu0 0.0
        %2878 = vmatprep.subr.mxu0 0.0
        %2879 = vmatpush1.msra.mxu0 0.0
        %2880 = vmatprep.subr.mxu0 0.0
        %2881 = vmatpush1.msra.mxu0 0.0
        %2882 = vmatprep.subr.mxu0 0.0
        %2883 = vmatpush1.msra.mxu0 0.0
        %2884 = vmatprep.subr.mxu0 0.0
        %2885 = vmatpush1.msra.mxu0 0.0
        %2886 = vmatprep.subr.mxu0 0.0
        %2887 = vmatpush1.msra.mxu0 0.0
        %2888 = vmatprep.subr.mxu0 0.0
        %2889 = vmatpush1.msra.mxu0 0.0
        %2890 = vmatprep.subr.mxu0 0.0
        %2891 = vmatpush1.msra.mxu0 0.0
        %2892 = vmatprep.subr.mxu0 0.0
        %2893 = vmatpush1.msra.mxu0 0.0
        %2894 = vmatprep.subr.mxu0 0.0
        %2895 = vmatpush1.msra.mxu0 0.0
        %2896 = vmatprep.subr.mxu0 0.0
        %2897 = vmatpush1.msra.mxu0 0.0
        %2898 = vmatprep.subr.mxu0 0.0
        %2899 = vmatpush1.msra.mxu0 0.0
        %2900 = vmatprep.subr.mxu0 0.0
        %2901 = vmatpush1.msra.mxu0 0.0
        %2902 = vmatprep.subr.mxu0 0.0
        %2903 = vmatpush1.msra.mxu0 0.0
        %2904 = vmatprep.mubr.f32.mxu0 0.0
        %2905 = vmatmul.mubr.f32.gmra.mrb[0].mxu0 %v2748
        %v2906 = vpop.f32.mrb[0].mxu0
        %v2907 = vadd.f32 %v2827, %v2906
        %v2908 = vpop.f32.mrb[0].mxu0
        %2909 = vmatprep.mubr.f32.mxu0 0.0
        %2910 = vmatmul.mubr.f32.gmra.mrb[0].mxu0 %v2750
        %v2911 = vpop.f32.mrb[0].mxu0
        %v2912 = vadd.f32 %v2832, %v2911
        %v2913 = vpop.f32.mrb[0].mxu0
        %2914 = vmatprep.mubr.f32.mxu0 0.0
        %2915 = vmatmul.mubr.f32.gmra.mrb[0].mxu0 %v2749
        %v2916 = vpop.f32.mrb[0].mxu0
        %v2917 = vadd.f32 %v2837, %v2916
        %v2918 = vpop.f32.mrb[0].mxu0
        %2919 = vdwg.mxu0
        %v2920 = vmax.f32 %v2907, 0.0
        %v2921 = vmax.f32 %v2912, 0.0
        %v2922 = vmax.f32 %v2917, 0.0
        %v2924 = vsel %vm1194, %v2922, 0
        %2926 = vmatprep.subr.mxu0 0.0
        %2927 = vmatpush1.msra.mxu0 %v2920
        %2928 = vmatprep.subr.mxu0 0.0
        %2929 = vmatpush1.msra.mxu0 %v2921
        %2930 = vmatprep.subr.mxu0 0.0
        %2931 = vmatpush1.msra.mxu0 %v2924
        %2932 = vmatprep.subr.mxu0 0.0
        %2933 = vmatpush1.msra.mxu0 0.0
        %2934 = vmatprep.subr.mxu0 0.0
        %2935 = vmatpush1.msra.mxu0 0.0
        %2936 = vmatprep.subr.mxu0 0.0
        %2937 = vmatpush1.msra.mxu0 0.0
        %2938 = vmatprep.subr.mxu0 0.0
        %2939 = vmatpush1.msra.mxu0 0.0
        %2940 = vmatprep.subr.mxu0 0.0
        %2941 = vmatpush1.msra.mxu0 0.0
        %2942 = vmatprep.subr.mxu0 0.0
        %2943 = vmatpush1.msra.mxu0 0.0
        %2944 = vmatprep.subr.mxu0 0.0
        %2945 = vmatpush1.msra.mxu0 0.0
        %2946 = vmatprep.subr.mxu0 0.0
        %2947 = vmatpush1.msra.mxu0 0.0
        %2948 = vmatprep.subr.mxu0 0.0
        %2949 = vmatpush1.msra.mxu0 0.0
        %2950 = vmatprep.subr.mxu0 0.0
        %2951 = vmatpush1.msra.mxu0 0.0
        %2952 = vmatprep.subr.mxu0 0.0
        %2953 = vmatpush1.msra.mxu0 0.0
        %2954 = vmatprep.subr.mxu0 0.0
        %2955 = vmatpush1.msra.mxu0 0.0
        %2956 = vmatprep.subr.mxu0 0.0
        %2957 = vmatpush1.msra.mxu0 0.0
        %2958 = vmatprep.subr.mxu0 0.0
        %2959 = vmatpush1.msra.mxu0 0.0
        %2960 = vmatprep.subr.mxu0 0.0
        %2961 = vmatpush1.msra.mxu0 0.0
        %2962 = vmatprep.subr.mxu0 0.0
        %2963 = vmatpush1.msra.mxu0 0.0
        %2964 = vmatprep.subr.mxu0 0.0
        %2965 = vmatpush1.msra.mxu0 0.0
        %2966 = vmatprep.subr.mxu0 0.0
        %2967 = vmatpush1.msra.mxu0 0.0
        %2968 = vmatprep.subr.mxu0 0.0
        %2969 = vmatpush1.msra.mxu0 0.0
        %2970 = vmatprep.subr.mxu0 0.0
        %2971 = vmatpush1.msra.mxu0 0.0
        %2972 = vmatprep.subr.mxu0 0.0
        %2973 = vmatpush1.msra.mxu0 0.0
        %2974 = vmatprep.subr.mxu0 0.0
        %2975 = vmatpush1.msra.mxu0 0.0
        %2976 = vmatprep.subr.mxu0 0.0
        %2977 = vmatpush1.msra.mxu0 0.0
        %2978 = vmatprep.subr.mxu0 0.0
        %2979 = vmatpush1.msra.mxu0 0.0
        %2980 = vmatprep.subr.mxu0 0.0
        %2981 = vmatpush1.msra.mxu0 0.0
        %2982 = vmatprep.subr.mxu0 0.0
        %2983 = vmatpush1.msra.mxu0 0.0
        %2984 = vmatprep.subr.mxu0 0.0
        %2985 = vmatpush1.msra.mxu0 0.0
        %2986 = vmatprep.subr.mxu0 0.0
        %2987 = vmatpush1.msra.mxu0 0.0
        %2988 = vmatprep.subr.mxu0 0.0
        %2989 = vmatpush1.msra.mxu0 0.0
        %2990 = vmatprep.mubr.f32.mxu0 0.0
        %2991 = vmatmul.mubr.f32.gmra.mrb[0].mxu0 %v1190
        %v2992 = vpop.f32.mrb[0].mxu0
        %v2993 = vadd.f32 0.0, %v2992
        %v2994 = vpop.f32.mrb[0].mxu0
        %2995 = vmatprep.mubr.f32.mxu0 0.0
        %2996 = vmatmul.mubr.f32.gmra.mrb[0].mxu0 %v1192
        %v2997 = vpop.f32.mrb[0].mxu0
        %v2998 = vadd.f32 0.0, %v2997
        %v2999 = vpop.f32.mrb[0].mxu0
        %3000 = vdwg.mxu0
        %3001 = vmatprep.subr.mxu0 0.0
        %3002 = vmatpush1.msra.mxu0 %v2920
        %3003 = vmatprep.subr.mxu0 0.0
        %3004 = vmatpush1.msra.mxu0 %v2921
        %3005 = vmatprep.subr.mxu0 0.0
        %3006 = vmatpush1.msra.mxu0 %v2924
        %3007 = vmatprep.subr.mxu0 0.0
        %3008 = vmatpush1.msra.mxu0 0.0
        %3009 = vmatprep.subr.mxu0 0.0
        %3010 = vmatpush1.msra.mxu0 0.0
        %3011 = vmatprep.subr.mxu0 0.0
        %3012 = vmatpush1.msra.mxu0 0.0
        %3013 = vmatprep.subr.mxu0 0.0
        %3014 = vmatpush1.msra.mxu0 0.0
        %3015 = vmatprep.subr.mxu0 0.0
        %3016 = vmatpush1.msra.mxu0 0.0
        %3017 = vmatprep.subr.mxu0 0.0
        %3018 = vmatpush1.msra.mxu0 0.0
        %3019 = vmatprep.subr.mxu0 0.0
        %3020 = vmatpush1.msra.mxu0 0.0
        %3021 = vmatprep.subr.mxu0 0.0
        %3022 = vmatpush1.msra.mxu0 0.0
        %3023 = vmatprep.subr.mxu0 0.0
        %3024 = vmatpush1.msra.mxu0 0.0
        %3025 = vmatprep.subr.mxu0 0.0
        %3026 = vmatpush1.msra.mxu0 0.0
        %3027 = vmatprep.subr.mxu0 0.0
        %3028 = vmatpush1.msra.mxu0 0.0
        %3029 = vmatprep.subr.mxu0 0.0
        %3030 = vmatpush1.msra.mxu0 0.0
        %3031 = vmatprep.subr.mxu0 0.0
        %3032 = vmatpush1.msra.mxu0 0.0
        %3033 = vmatprep.subr.mxu0 0.0
        %3034 = vmatpush1.msra.mxu0 0.0
        %3035 = vmatprep.subr.mxu0 0.0
        %3036 = vmatpush1.msra.mxu0 0.0
        %3037 = vmatprep.subr.mxu0 0.0
        %3038 = vmatpush1.msra.mxu0 0.0
        %3039 = vmatprep.subr.mxu0 0.0
        %3040 = vmatpush1.msra.mxu0 0.0
        %3041 = vmatprep.subr.mxu0 0.0
        %3042 = vmatpush1.msra.mxu0 0.0
        %3043 = vmatprep.subr.mxu0 0.0
        %3044 = vmatpush1.msra.mxu0 0.0
        %3045 = vmatprep.subr.mxu0 0.0
        %3046 = vmatpush1.msra.mxu0 0.0
        %3047 = vmatprep.subr.mxu0 0.0
        %3048 = vmatpush1.msra.mxu0 0.0
        %3049 = vmatprep.subr.mxu0 0.0
        %3050 = vmatpush1.msra.mxu0 0.0
        %3051 = vmatprep.subr.mxu0 0.0
        %3052 = vmatpush1.msra.mxu0 0.0
        %3053 = vmatprep.subr.mxu0 0.0
        %3054 = vmatpush1.msra.mxu0 0.0
        %3055 = vmatprep.subr.mxu0 0.0
        %3056 = vmatpush1.msra.mxu0 0.0
        %3057 = vmatprep.subr.mxu0 0.0
        %3058 = vmatpush1.msra.mxu0 0.0
        %3059 = vmatprep.subr.mxu0 0.0
        %3060 = vmatpush1.msra.mxu0 0.0
        %3061 = vmatprep.subr.mxu0 0.0
        %3062 = vmatpush1.msra.mxu0 0.0
        %3063 = vmatprep.subr.mxu0 0.0
        %3064 = vmatpush1.msra.mxu0 0.0
        %3065 = vmatprep.mubr.f32.mxu0 0.0
        %3066 = vmatmul.mubr.f32.gmra.mrb[0].mxu0 %v1273
        %v3067 = vpop.f32.mrb[0].mxu0
        %v3068 = vadd.f32 0.0, %v3067
        %v3069 = vpop.f32.mrb[0].mxu0
        %3070 = vmatprep.mubr.f32.mxu0 0.0
        %3071 = vmatmul.mubr.f32.gmra.mrb[0].mxu0 %v1275
        %v3072 = vpop.f32.mrb[0].mxu0
        %v3073 = vadd.f32 0.0, %v3072
        %v3074 = vpop.f32.mrb[0].mxu0
        %3075 = vdwg.mxu0
        %v3076 = vmax.f32 %v2993, %v3068
        %v3077 = vmax.f32 %v2998, %v3073
        %v3078 = vld [vmem:[#allocation22] sm:$0x1]
        %v3079 = vld [vmem:[#allocation2] sm:$0x1]
        %v3081 = vlaneseq
        %v3082 = vshrl.u32 %v3081, 7
        %v3083 = vsub.s32 0, %v3082
        %v3084 = vrot.slane %v3078, %v3083
        %v3086 = vmul.f32 %v3076, %v3084
        %v3087 = vmul.f32 %v3077, %v3084
        %3088 = vadd.xlane.f32.xlu0 %v3086
        %v3089 = vpop.xlane.xlu0 %3088
        %v3090 = vsel %vm1776, %v3087, 0.0
        %3091 = vadd.xlane.f32.xlu0 %v3090
        %v3092 = vpop.xlane.xlu0 %3091
        %v3094 = vlaneseq
        %v3095 = vshrl.u32 %v3094, 7
        %v3096 = vsub.s32 0, %v3095
        %v3097 = vrot.slane %v3079, %v3096
        %v3099 = vadd.f32 %v3089, %v3097
        %v3100 = vadd.f32 %v3092, %v3097
        %v3101 = vtanh.pop %v3099
        %v3102 = vtanh.pop %v3100
        %3103 = vst [vmem:[%s760] sm:$0xff] %v3076
        %3104 = vst [vmem:[%s760 + $0x8] sm:$0x1] %v3077
        %vm3105 = vcmask 7168
        %3106 = vst.msk [vmem:[%s765] sm:$0xff] %vm3105, %v3101
        %vm3107 = vcmask 0
        %3108 = vst.msk [vmem:[%s765 + $0x8] sm:$0x1] %vm3107, %v3102
        %p3109 = scmp.lt.s32.totalorder %s39, 1
        %s3110 = scalar_select %p3109, %s39, 1
        %s3111 = smul.addr %s3110, 2
        %s3112 = smul.addr %s3111, 8
        %s3113 = scalar_lea.vmem %s17, %s3112
        %p3114 = scmp.lt.s32.totalorder %s39, 1
        %s3115 = scalar_select %p3114, %s39, 1
        %s3116 = smul.addr %s3115, 2
        %s3117 = smul.addr %s3116, 8
        %s3118 = scalar_lea.vmem %s18, %s3117
        // Predicated region
        $region141: #{cnn_attn_forward.1} parent=87 // pred_check
          %p3119 = pneg %p419
        $region142: #{cnn_attn_forward.1} parent=87 // pred_check_branch
          %3121 = sbr.rel (%p3119) target = $region144
        $region143: #{cnn_attn_forward.1} parent=87 // pred_region
          _
        $region144: #{cnn_attn_forward.1} parent=87 // pred_fallthru
          _
        // Predicated region
        $region145: #{cnn_attn_forward.1} parent=87 // pred_check
          %p3122 = pneg %p445
        $region146: #{cnn_attn_forward.1} parent=87 // pred_check_branch
          %3124 = sbr.rel (%p3122) target = $region148
        $region147: #{cnn_attn_forward.1} parent=87 // pred_region
          _
        $region148: #{cnn_attn_forward.1} parent=87 // pred_fallthru
          _
      $region88: #{cnn_attn_forward.1} parent=5 // pred_fallthru
        _
      %p3125 = scmp.le.s32.totalorder 2, %s34
      // Predicated region
      $region149: #{cnn_attn_forward.1} parent=5 // pred_check
        %p3126 = pneg %p3125
      $region150: #{cnn_attn_forward.1} parent=5 // pred_check_branch
        %3128 = sbr.rel (%p3126) target = $region152
      $region151: #{cnn_attn_forward.1} parent=5 // pred_region
        %s3129 = ssub.s32 %s34, 2
        // Predicated region
        $region153: #{cnn_attn_forward.1} parent=151 // pred_check
          %p3130 = pneg %p425
        $region154: #{cnn_attn_forward.1} parent=151 // pred_check_branch
          %3132 = sbr.rel (%p3130) target = $region156
        $region155: #{cnn_attn_forward.1} parent=151 // pred_region
          %p3133 = scmp.lt.s32.totalorder %s40, 1
          %s3134 = scalar_select %p3133, %s40, 1
          %s3135 = smul.addr %s3134, 2
          %s3136 = smul.addr %s3135, 8
          %s3137 = scalar_lea.vmem %s17, %s3136
        $region156: #{cnn_attn_forward.1} parent=151 // pred_fallthru
          _
        // Predicated region
        $region157: #{cnn_attn_forward.1} parent=151 // pred_check
          %p3138 = pneg %p451
        $region158: #{cnn_attn_forward.1} parent=151 // pred_check_branch
          %3140 = sbr.rel (%p3138) target = $region160
        $region159: #{cnn_attn_forward.1} parent=151 // pred_region
          %p3141 = scmp.lt.s32.totalorder %s40, 1
          %s3142 = scalar_select %p3141, %s40, 1
          %s3143 = smul.addr %s3142, 2
          %s3144 = smul.addr %s3143, 8
          %s3145 = scalar_lea.vmem %s18, %s3144
        $region160: #{cnn_attn_forward.1} parent=151 // pred_fallthru
          _
      $region152: #{cnn_attn_forward.1} parent=5 // pred_fallthru
        _
    $region6: #{cnn_attn_forward.1} parent=1 // loop_footer
      %s38 = sadd.s32 1, %s34
    $region7: #{cnn_attn_forward.1} parent=1 // loop_footer_branch
      %33 = sbr.rel target = $region3
    $region8: #{cnn_attn_forward.1} parent=1 // loop_exit
      _
    %3146 = vsyncpa [#allocation4], 1
    %s3147 = scalar_lea.sflag [#allocation4], 1
    %3148 = vsyncpa %s3147, 1
    %3149 = vsyncpa [#allocation6], 1
    %3150 = vsyncpa [#allocation9], 1
    %3151 = vsyncpa [#allocation12], 1
    %3152 = vsyncpa [#allocation15], 1
    %3153 = vsyncpa [#allocation18], 1
    %3154 = vsyncpa [#allocation21], 1

</llo_original>
